<compile_context>
chip_gen: v5e
topology: v5e:2x2
jax: 0.10.0
libtpu: 0.0.40
codegen_flags: <defaults>
</compile_context>

<pallas_src>
import functools

import jax
import jax.numpy as jnp
import numpy as np
from jax.experimental import pallas as pl
from jax.experimental.pallas import tpu as pltpu


def _round_up(x, m):
    return ((x + m - 1) // m) * m


# ----------------------------------------------------------------------------
# Kernel 1: fused bidirectional LSTM recurrence (input projection fused in)
# ----------------------------------------------------------------------------
def _bilstm_fused_kernel(T, H, cdt,
                         x_ref,
                         wih_f_ref, wih_b_ref, whh_f_ref, whh_b_ref,
                         b_f_ref, b_b_ref,
                         out_f_ref, out_b_ref,
                         hf_ref, hb_ref, cf_ref, cb_ref):
    # Fresh h/c state for this batch chunk (scratch persists across grid steps).
    hf_ref[...] = jnp.zeros_like(hf_ref)
    hb_ref[...] = jnp.zeros_like(hb_ref)
    cf_ref[...] = jnp.zeros_like(cf_ref)
    cb_ref[...] = jnp.zeros_like(cb_ref)

    def cell(g, c):
        # PyTorch gate order [i, f, g, o]; elementwise math stays f32.
        i = jax.nn.sigmoid(g[:, 0 * H:1 * H])
        f = jax.nn.sigmoid(g[:, 1 * H:2 * H])
        gg = jnp.tanh(g[:, 2 * H:3 * H])
        o = jax.nn.sigmoid(g[:, 3 * H:4 * H])
        c_new = f * c + i * gg
        h_new = o * jnp.tanh(c_new)
        return h_new, c_new

    def step(t, _):
        s = T - 1 - t                                   # backward time index
        # Input projection fused into the recurrence: the x-term is read from
        # the (T, tile_b, nIn) VMEM block, never from a precomputed gates tensor.
        x_f = x_ref[t].astype(cdt)                      # (tile_b, nIn)
        x_b = x_ref[s].astype(cdt)
        # Two independent (no zero-block) recurrent dots; weights streamed from
        # their VMEM refs inside the step.
        g_f = (jnp.dot(x_f, wih_f_ref[...], preferred_element_type=jnp.float32)
               + jnp.dot(hf_ref[...].astype(cdt), whh_f_ref[...],
                         preferred_element_type=jnp.float32)
               + b_f_ref[...])
        g_b = (jnp.dot(x_b, wih_b_ref[...], preferred_element_type=jnp.float32)
               + jnp.dot(hb_ref[...].astype(cdt), whh_b_ref[...],
                         preferred_element_type=jnp.float32)
               + b_b_ref[...])
        h_f, c_f = cell(g_f, cf_ref[...])
        h_b, c_b = cell(g_b, cb_ref[...])
        hf_ref[...] = h_f
        hb_ref[...] = h_b
        cf_ref[...] = c_f
        cb_ref[...] = c_b
        # Outputs stay VMEM-resident; Pallas writes the block back once.
        out_f_ref[pl.ds(t, 1), :, :] = h_f[None]
        out_b_ref[pl.ds(s, 1), :, :] = h_b[None]
        return 0

    # Full unroll only for tiny T (test size); moderate unroll for long T so
    # code size / live ranges don't blow the register file.
    unroll = True if T <= 16 else 2
    jax.lax.fori_loop(0, T, step, 0, unroll=unroll)


def bilstm_fused_pallas(x, packed, H, compute_dtype):
    """x: (T, B, nIn) f32.  Returns (out_fwd, out_bwd), each (T, B, H) f32."""
    T, B, nIn = x.shape
    # Chunk the batch so per-chunk VMEM stays bounded (v7x: 64 MiB physical).
    # TODO(synk): for production pad B to a multiple of the tile (and of 8).
    tile_b = B if B <= 128 else 128
    grid = (pl.cdiv(B, tile_b),)

    kernel = functools.partial(_bilstm_fused_kernel, T, H, compute_dtype)
    return pl.pallas_call(
        kernel,
        out_shape=(jax.ShapeDtypeStruct((T, B, H), jnp.float32),
                   jax.ShapeDtypeStruct((T, B, H), jnp.float32)),
        grid=grid,
        in_specs=[
            pl.BlockSpec((T, tile_b, nIn), lambda b: (0, b, 0)),
            pl.BlockSpec((nIn, 4 * H), lambda b: (0, 0)),
            pl.BlockSpec((nIn, 4 * H), lambda b: (0, 0)),
            pl.BlockSpec((H, 4 * H), lambda b: (0, 0)),
            pl.BlockSpec((H, 4 * H), lambda b: (0, 0)),
            pl.BlockSpec((1, 4 * H), lambda b: (0, 0)),
            pl.BlockSpec((1, 4 * H), lambda b: (0, 0)),
        ],
        out_specs=(pl.BlockSpec((T, tile_b, H), lambda b: (0, b, 0)),
                   pl.BlockSpec((T, tile_b, H), lambda b: (0, b, 0))),
        scratch_shapes=[pltpu.VMEM((tile_b, H), jnp.float32)] * 4,  # h_f,h_b,c_f,c_b
        compiler_params=pltpu.CompilerParams(
            dimension_semantics=("parallel",),        # batch chunks independent
            vmem_limit_bytes=32 * 1024 * 1024),       # safe on v5e/v6e/v7x
    )(x, packed["wih_f"], packed["wih_b"], packed["whh_f"], packed["whh_b"],
      packed["b_f"], packed["b_b"])


# ----------------------------------------------------------------------------
# Kernel 2: embedding linear layer, row-tiled, no concat round trip
# ----------------------------------------------------------------------------
def _embedding_kernel(cdt, hf_ref, hb_ref, wf_ref, wb_ref, b_ref, o_ref):
    o_ref[...] = (jnp.dot(hf_ref[...].astype(cdt), wf_ref[...],
                          preferred_element_type=jnp.float32)
                  + jnp.dot(hb_ref[...].astype(cdt), wb_ref[...],
                            preferred_element_type=jnp.float32)
                  + b_ref[...])


def embedding_pallas(hf, hb, wf, wb, b, compute_dtype):
    """hf, hb: (N, H) f32; wf, wb: (H, Dout_pad); b: (1, Dout_pad) -> (N, Dout_pad)."""
    N, H = hf.shape
    Dout = wf.shape[1]                       # already padded to a multiple of 128
    tile_m = min(512, _round_up(N, 8))       # row tiling -> pipelined DMA
    grid = (pl.cdiv(N, tile_m),)
    return pl.pallas_call(
        functools.partial(_embedding_kernel, compute_dtype),
        out_shape=jax.ShapeDtypeStruct((N, Dout), jnp.float32),
        grid=grid,
        in_specs=[pl.BlockSpec((tile_m, H), lambda i: (i, 0)),
                  pl.BlockSpec((tile_m, H), lambda i: (i, 0)),
                  pl.BlockSpec((H, Dout), lambda i: (0, 0)),
                  pl.BlockSpec((H, Dout), lambda i: (0, 0)),
                  pl.BlockSpec((1, Dout), lambda i: (0, 0))],
        out_specs=pl.BlockSpec((tile_m, Dout), lambda i: (i, 0)),
        compiler_params=pltpu.CompilerParams(
            dimension_semantics=("parallel",)),       # row axis shards on v7x
    )(hf, hb, wf, wb, b)


# ----------------------------------------------------------------------------
# Full module forward (Pallas path)
# ----------------------------------------------------------------------------
def bidirectional_lstm_forward(x, packed, nHidden, nOut, compute_dtype):
    T, B, _ = x.shape
    H = nHidden
    out_f, out_b = bilstm_fused_pallas(x, packed, H, compute_dtype)
    out_pad = embedding_pallas(out_f.reshape(T * B, H), out_b.reshape(T * B, H),
                               packed["w_emb_f"], packed["w_emb_b"],
                               packed["b_emb"], compute_dtype)
    return out_pad[:, :nOut].reshape(T, B, nOut)        # drop lane padding; view(T,b,-1)


def pack_params(p, H, nOut, compute_dtype):
    """Cast matmul weights to the compute dtype; pad the output projection to a
    lane-dense multiple of 128 columns. Biases stay f32 (added post-accumulation)."""
    nOut_pad = _round_up(nOut, 128)
    pad = nOut_pad - nOut
    w_emb_f = p["w_emb_t"][:H]
    w_emb_b = p["w_emb_t"][H:]
    b_emb = p["b_emb"]
    if pad:
        w_emb_f = jnp.pad(w_emb_f, ((0, 0), (0, pad)))
        w_emb_b = jnp.pad(w_emb_b, ((0, 0), (0, pad)))
        b_emb = jnp.pad(b_emb, ((0, 0), (0, pad)))
    return {
        "wih_f": p["wih_f"].astype(compute_dtype),      # (nIn, 4H)
        "wih_b": p["wih_b"].astype(compute_dtype),
        "whh_f": p["whh_f"].astype(compute_dtype),      # (H, 4H)
        "whh_b": p["whh_b"].astype(compute_dtype),
        "b_f": p["b_f"],                                # (1, 4H) f32 (b_ih + b_hh)
        "b_b": p["b_b"],
        "w_emb_f": w_emb_f.astype(compute_dtype),       # (H, nOut_pad)
        "w_emb_b": w_emb_b.astype(compute_dtype),
        "b_emb": b_emb,                                 # (1, nOut_pad) f32
    }


# ----------------------------------------------------------------------------
# Pure-JAX reference (for correctness check)
# ----------------------------------------------------------------------------
def _lstm_ref_dir(x, wih, whh, bias, H):
    B = x.shape[1]

    def step(carry, xt):
        h, c = carry
        gates = xt @ wih + h @ whh + bias
        i = jax.nn.sigmoid(gates[:, 0 * H:1 * H])
        f = jax.nn.sigmoid(gates[:, 1 * H:2 * H])
        g = jnp.tanh(gates[:, 2 * H:3 * H])
        o = jax.nn.sigmoid(gates[:, 3 * H:4 * H])
        c = f * c + i * g
        h = o * jnp.tanh(c)
        return (h, c), h

    h0 = jnp.zeros((B, H), jnp.float32)
    c0 = jnp.zeros((B, H), jnp.float32)
    _, hs = jax.lax.scan(step, (h0, c0), x)
    return hs


def reference_forward(x, params, nHidden):
    H = nHidden
    out_f = _lstm_ref_dir(x, params["wih_f"], params["whh_f"], params["b_f"], H)
    out_b = _lstm_ref_dir(x[::-1], params["wih_b"], params["whh_b"],
                          params["b_b"], H)[::-1]
    rec = jnp.concatenate([out_f, out_b], axis=-1)
    T, B, _ = x.shape
    out = rec.reshape(T * B, 2 * H) @ params["w_emb_t"] + params["b_emb"]
    return out.reshape(T, B, -1)


# ----------------------------------------------------------------------------
# Main
# ----------------------------------------------------------------------------
if __name__ == "__main__":
    T, B = 8, 2
    nIn, nHidden, nOut = 16, 32, 16

    key = jax.random.PRNGKey(0)
    keys = jax.random.split(key, 10)
    scale = 1.0 / np.sqrt(nHidden)

    def u(k, shape):
        return jax.random.uniform(k, shape, jnp.float32, -scale, scale)

    # PyTorch LSTM weights are (4H, nIn)/(4H, H); store pre-transposed and fold
    # b_ih + b_hh into a single (1, 4H) bias per direction.
    params = {
        "wih_f": u(keys[0], (nIn, 4 * nHidden)),
        "whh_f": u(keys[1], (nHidden, 4 * nHidden)),
        "b_f": u(keys[2], (1, 4 * nHidden)) + u(keys[3], (1, 4 * nHidden)),
        "wih_b": u(keys[4], (nIn, 4 * nHidden)),
        "whh_b": u(keys[5], (nHidden, 4 * nHidden)),
        "b_b": u(keys[6], (1, 4 * nHidden)) + u(keys[7], (1, 4 * nHidden)),
        # nn.Linear(2H, nOut): weight (nOut, 2H) stored transposed, bias (nOut,)
        "w_emb_t": u(keys[8], (2 * nHidden, nOut)),
        "b_emb": u(keys[9], (1, nOut)),
    }

    x = jax.random.normal(jax.random.PRNGKey(1), (T, B, nIn), jnp.float32)
    ref = reference_forward(x, params, nHidden)

    # --- f32 MXU path: tight correctness check ------------------------------
    packed_f32 = pack_params(params, nHidden, nOut, jnp.float32)
    fwd_f32 = jax.jit(lambda xx, pp: bidirectional_lstm_forward(
        xx, pp, nHidden, nOut, jnp.float32))
    out_f32 = jax.block_until_ready(fwd_f32(x, packed_f32))
    np.testing.assert_allclose(np.asarray(out_f32), np.asarray(ref),
                               rtol=1e-4, atol=1e-4)
    assert out_f32.shape == (T, B, nOut)

    # --- bf16 MXU path (production default on v5e/v6e/v7x): relaxed check ---
    packed_bf16 = pack_params(params, nHidden, nOut, jnp.bfloat16)
    fwd_bf16 = jax.jit(lambda xx, pp: bidirectional_lstm_forward(
        xx, pp, nHidden, nOut, jnp.bfloat16))
    out_bf16 = jax.block_until_ready(fwd_bf16(x, packed_bf16))
    np.testing.assert_allclose(np.asarray(out_bf16), np.asarray(ref),
                               rtol=2e-2, atol=5e-2)
    assert out_bf16.shape == (T, B, nOut)

    print("KERNEL_OK")
</pallas_src>

<mosaic_0001>
module attributes {stable_mosaic.version = 11 : i64} {
  func.func @_embedding_kernel(%arg0: i32, %arg1: memref<16x32xf32, #tpu.memory_space<vmem>>, %arg2: memref<16x32xf32, #tpu.memory_space<vmem>>, %arg3: memref<32x128xf32, #tpu.memory_space<vmem>>, %arg4: memref<32x128xf32, #tpu.memory_space<vmem>>, %arg5: memref<1x128xf32, #tpu.memory_space<vmem>>, %arg6: memref<16x128xf32, #tpu.memory_space<vmem>>) attributes {dimension_semantics = [#tpu.dimension_semantics<parallel>], iteration_bounds = array<i64: 1>, scalar_prefetch = 0 : i64, scratch_operands = 0 : i64, tpu.core_type = #tpu.core_type<tc>, window_params = [{transform_indices = @transform_0, window_bounds = array<i64: 16, 32>}, {transform_indices = @transform_1, window_bounds = array<i64: 16, 32>}, {pipeline_mode = #tpu.pipeline_mode<synchronous>, transform_indices = @transform_2, window_bounds = array<i64: 32, 128>}, {pipeline_mode = #tpu.pipeline_mode<synchronous>, transform_indices = @transform_3, window_bounds = array<i64: 32, 128>}, {pipeline_mode = #tpu.pipeline_mode<synchronous>, transform_indices = @transform_4, window_bounds = array<i64: 1, 128>}, {transform_indices = @transform_5, window_bounds = array<i64: 16, 128>}]} {
    %c0 = arith.constant 0 : index
    %c0_0 = arith.constant 0 : index
    %0 = vector.load %arg1[%c0, %c0_0] : memref<16x32xf32, #tpu.memory_space<vmem>>, vector<16x32xf32>
    %c0_1 = arith.constant 0 : index
    %c0_2 = arith.constant 0 : index
    %1 = vector.load %arg3[%c0_1, %c0_2] : memref<32x128xf32, #tpu.memory_space<vmem>>, vector<32x128xf32>
    %cst = arith.constant dense<0.000000e+00> : vector<16x128xf32>
    %2 = tpu.matmul %0, %1, %cst {dimension_numbers = #tpu.dot_dimension_numbers<[1], [0], [0], [1], [0, 0, 1, 1], [], []>} : vector<16x32xf32>, vector<32x128xf32>, vector<16x128xf32> -> vector<16x128xf32>
    %c0_3 = arith.constant 0 : index
    %c0_4 = arith.constant 0 : index
    %3 = vector.load %arg2[%c0_3, %c0_4] : memref<16x32xf32, #tpu.memory_space<vmem>>, vector<16x32xf32>
    %c0_5 = arith.constant 0 : index
    %c0_6 = arith.constant 0 : index
    %4 = vector.load %arg4[%c0_5, %c0_6] : memref<32x128xf32, #tpu.memory_space<vmem>>, vector<32x128xf32>
    %cst_7 = arith.constant dense<0.000000e+00> : vector<16x128xf32>
    %5 = tpu.matmul %3, %4, %cst_7 {dimension_numbers = #tpu.dot_dimension_numbers<[1], [0], [0], [1], [0, 0, 1, 1], [], []>} : vector<16x32xf32>, vector<32x128xf32>, vector<16x128xf32> -> vector<16x128xf32>
    %6 = arith.addf %2, %5 : vector<16x128xf32>
    %c0_8 = arith.constant 0 : index
    %c0_9 = arith.constant 0 : index
    %7 = vector.load %arg5[%c0_8, %c0_9] : memref<1x128xf32, #tpu.memory_space<vmem>>, vector<1x128xf32>
    %8 = vector.broadcast %7 : vector<1x128xf32> to vector<16x128xf32>
    %9 = arith.addf %6, %8 : vector<16x128xf32>
    %c0_10 = arith.constant 0 : index
    %c0_11 = arith.constant 0 : index
    %10 = vector.load %arg6[%c0_10, %c0_11] : memref<16x128xf32, #tpu.memory_space<vmem>>, vector<16x128xf32>
    tpu.vector_store %arg6[%c0_10, %c0_11], %9 {strides = array<i32>} : memref<16x128xf32, #tpu.memory_space<vmem>>, vector<16x128xf32>,
    return
  }
  func.func @transform_0(%arg0: i32) -> (i32, i32) {
    %c0_i32 = arith.constant 0 : i32
    %c0_i32_0 = arith.constant 0 : i32
    return %arg0, %c0_i32 : i32, i32
  }
  func.func @transform_1(%arg0: i32) -> (i32, i32) {
    %c0_i32 = arith.constant 0 : i32
    %c0_i32_0 = arith.constant 0 : i32
    return %arg0, %c0_i32 : i32, i32
  }
  func.func @transform_2(%arg0: i32) -> (i32, i32) {
    %c0_i32 = arith.constant 0 : i32
    %c0_i32_0 = arith.constant 0 : i32
    %c0_i32_1 = arith.constant 0 : i32
    return %c0_i32, %c0_i32_0 : i32, i32
  }
  func.func @transform_3(%arg0: i32) -> (i32, i32) {
    %c0_i32 = arith.constant 0 : i32
    %c0_i32_0 = arith.constant 0 : i32
    %c0_i32_1 = arith.constant 0 : i32
    return %c0_i32, %c0_i32_0 : i32, i32
  }
  func.func @transform_4(%arg0: i32) -> (i32, i32) {
    %c0_i32 = arith.constant 0 : i32
    %c0_i32_0 = arith.constant 0 : i32
    %c0_i32_1 = arith.constant 0 : i32
    return %c0_i32, %c0_i32_0 : i32, i32
  }
  func.func @transform_5(%arg0: i32) -> (i32, i32) {
    %c0_i32 = arith.constant 0 : i32
    %c0_i32_0 = arith.constant 0 : i32
    return %arg0, %c0_i32 : i32, i32
  }
}

module attributes {stable_mosaic.version = 11 : i64} {
  func.func @_bilstm_fused_kernel(%arg0: i32, %arg1: memref<8x2x16xf32, #tpu.memory_space<vmem>>, %arg2: memref<16x128xf32, #tpu.memory_space<vmem>>, %arg3: memref<16x128xf32, #tpu.memory_space<vmem>>, %arg4: memref<32x128xf32, #tpu.memory_space<vmem>>, %arg5: memref<32x128xf32, #tpu.memory_space<vmem>>, %arg6: memref<1x128xf32, #tpu.memory_space<vmem>>, %arg7: memref<1x128xf32, #tpu.memory_space<vmem>>, %arg8: memref<8x2x32xf32, #tpu.memory_space<vmem>>, %arg9: memref<8x2x32xf32, #tpu.memory_space<vmem>>, %arg10: memref<2x32xf32, #tpu.memory_space<vmem>>, %arg11: memref<2x32xf32, #tpu.memory_space<vmem>>, %arg12: memref<2x32xf32, #tpu.memory_space<vmem>>, %arg13: memref<2x32xf32, #tpu.memory_space<vmem>>) attributes {dimension_semantics = [#tpu.dimension_semantics<parallel>], iteration_bounds = array<i64: 1>, scalar_prefetch = 0 : i64, scratch_operands = 4 : i64, tpu.core_type = #tpu.core_type<tc>, window_params = [{transform_indices = @transform_0, window_bounds = array<i64: 8, 2, 16>}, {pipeline_mode = #tpu.pipeline_mode<synchronous>, transform_indices = @transform_1, window_bounds = array<i64: 16, 128>}, {pipeline_mode = #tpu.pipeline_mode<synchronous>, transform_indices = @transform_2, window_bounds = array<i64: 16, 128>}, {pipeline_mode = #tpu.pipeline_mode<synchronous>, transform_indices = @transform_3, window_bounds = array<i64: 32, 128>}, {pipeline_mode = #tpu.pipeline_mode<synchronous>, transform_indices = @transform_4, window_bounds = array<i64: 32, 128>}, {pipeline_mode = #tpu.pipeline_mode<synchronous>, transform_indices = @transform_5, window_bounds = array<i64: 1, 128>}, {pipeline_mode = #tpu.pipeline_mode<synchronous>, transform_indices = @transform_6, window_bounds = array<i64: 1, 128>}, {transform_indices = @transform_7, window_bounds = array<i64: 8, 2, 32>}, {transform_indices = @transform_8, window_bounds = array<i64: 8, 2, 32>}]} {
    %cst = arith.constant 0.000000e+00 : f32
    %0 = vector.broadcast %cst : f32 to vector<2x32xf32>
    %c0 = arith.constant 0 : index
    %c0_0 = arith.constant 0 : index
    %1 = vector.load %arg10[%c0, %c0_0] : memref<2x32xf32, #tpu.memory_space<vmem>>, vector<2x32xf32>
    tpu.vector_store %arg10[%c0, %c0_0], %0 {strides = array<i32>} : memref<2x32xf32, #tpu.memory_space<vmem>>, vector<2x32xf32>,
    %cst_1 = arith.constant 0.000000e+00 : f32
    %2 = vector.broadcast %cst_1 : f32 to vector<2x32xf32>
    %c0_2 = arith.constant 0 : index
    %c0_3 = arith.constant 0 : index
    %3 = vector.load %arg11[%c0_2, %c0_3] : memref<2x32xf32, #tpu.memory_space<vmem>>, vector<2x32xf32>
    tpu.vector_store %arg11[%c0_2, %c0_3], %2 {strides = array<i32>} : memref<2x32xf32, #tpu.memory_space<vmem>>, vector<2x32xf32>,
    %cst_4 = arith.constant 0.000000e+00 : f32
    %4 = vector.broadcast %cst_4 : f32 to vector<2x32xf32>
    %c0_5 = arith.constant 0 : index
    %c0_6 = arith.constant 0 : index
    %5 = vector.load %arg12[%c0_5, %c0_6] : memref<2x32xf32, #tpu.memory_space<vmem>>, vector<2x32xf32>
    tpu.vector_store %arg12[%c0_5, %c0_6], %4 {strides = array<i32>} : memref<2x32xf32, #tpu.memory_space<vmem>>, vector<2x32xf32>,
    %cst_7 = arith.constant 0.000000e+00 : f32
    %6 = vector.broadcast %cst_7 : f32 to vector<2x32xf32>
    %c0_8 = arith.constant 0 : index
    %c0_9 = arith.constant 0 : index
    %7 = vector.load %arg13[%c0_8, %c0_9] : memref<2x32xf32, #tpu.memory_space<vmem>>, vector<2x32xf32>
    tpu.vector_store %arg13[%c0_8, %c0_9], %6 {strides = array<i32>} : memref<2x32xf32, #tpu.memory_space<vmem>>, vector<2x32xf32>,
    %c0_i32 = arith.constant 0 : i32
    %c7_i32 = arith.constant 7 : i32
    %8 = arith.subi %c7_i32, %c0_i32 : i32
    %9 = arith.index_cast %c0_i32 : i32 to index
    %c0_10 = arith.constant 0 : index
    %c0_11 = arith.constant 0 : index
    %10 = vector.load %arg1[%9, %c0_10, %c0_11] : memref<8x2x16xf32, #tpu.memory_space<vmem>>, vector<1x2x16xf32>
    %11 = vector.shape_cast %10 : vector<1x2x16xf32> to vector<2x16xf32>
    %12 = arith.index_cast %8 : i32 to index
    %c0_12 = arith.constant 0 : index
    %c0_13 = arith.constant 0 : index
    %13 = vector.load %arg1[%12, %c0_12, %c0_13] : memref<8x2x16xf32, #tpu.memory_space<vmem>>, vector<1x2x16xf32>
    %14 = vector.shape_cast %13 : vector<1x2x16xf32> to vector<2x16xf32>
    %c0_14 = arith.constant 0 : index
    %c0_15 = arith.constant 0 : index
    %15 = vector.load %arg2[%c0_14, %c0_15] : memref<16x128xf32, #tpu.memory_space<vmem>>, vector<16x128xf32>
    %cst_16 = arith.constant dense<0.000000e+00> : vector<2x128xf32>
    %16 = tpu.matmul %11, %15, %cst_16 {dimension_numbers = #tpu.dot_dimension_numbers<[1], [0], [0], [1], [0, 0, 1, 1], [], []>} : vector<2x16xf32>, vector<16x128xf32>, vector<2x128xf32> -> vector<2x128xf32>
    %c0_17 = arith.constant 0 : index
    %c0_18 = arith.constant 0 : index
    %17 = vector.load %arg10[%c0_17, %c0_18] : memref<2x32xf32, #tpu.memory_space<vmem>>, vector<2x32xf32>
    %c0_19 = arith.constant 0 : index
    %c0_20 = arith.constant 0 : index
    %18 = vector.load %arg4[%c0_19, %c0_20] : memref<32x128xf32, #tpu.memory_space<vmem>>, vector<32x128xf32>
    %cst_21 = arith.constant dense<0.000000e+00> : vector<2x128xf32>
    %19 = tpu.matmul %17, %18, %cst_21 {dimension_numbers = #tpu.dot_dimension_numbers<[1], [0], [0], [1], [0, 0, 1, 1], [], []>} : vector<2x32xf32>, vector<32x128xf32>, vector<2x128xf32> -> vector<2x128xf32>
    %20 = arith.addf %16, %19 : vector<2x128xf32>
    %c0_22 = arith.constant 0 : index
    %c0_23 = arith.constant 0 : index
    %21 = vector.load %arg6[%c0_22, %c0_23] : memref<1x128xf32, #tpu.memory_space<vmem>>, vector<1x128xf32>
    %22 = vector.broadcast %21 : vector<1x128xf32> to vector<2x128xf32>
    %23 = arith.addf %20, %22 : vector<2x128xf32>
    %c0_24 = arith.constant 0 : index
    %c0_25 = arith.constant 0 : index
    %24 = vector.load %arg3[%c0_24, %c0_25] : memref<16x128xf32, #tpu.memory_space<vmem>>, vector<16x128xf32>
    %cst_26 = arith.constant dense<0.000000e+00> : vector<2x128xf32>
    %25 = tpu.matmul %14, %24, %cst_26 {dimension_numbers = #tpu.dot_dimension_numbers<[1], [0], [0], [1], [0, 0, 1, 1], [], []>} : vector<2x16xf32>, vector<16x128xf32>, vector<2x128xf32> -> vector<2x128xf32>
    %c0_27 = arith.constant 0 : index
    %c0_28 = arith.constant 0 : index
    %26 = vector.load %arg11[%c0_27, %c0_28] : memref<2x32xf32, #tpu.memory_space<vmem>>, vector<2x32xf32>
    %c0_29 = arith.constant 0 : index
    %c0_30 = arith.constant 0 : index
    %27 = vector.load %arg5[%c0_29, %c0_30] : memref<32x128xf32, #tpu.memory_space<vmem>>, vector<32x128xf32>
    %cst_31 = arith.constant dense<0.000000e+00> : vector<2x128xf32>
    %28 = tpu.matmul %26, %27, %cst_31 {dimension_numbers = #tpu.dot_dimension_numbers<[1], [0], [0], [1], [0, 0, 1, 1], [], []>} : vector<2x32xf32>, vector<32x128xf32>, vector<2x128xf32> -> vector<2x128xf32>
    %29 = arith.addf %25, %28 : vector<2x128xf32>
    %c0_32 = arith.constant 0 : index
    %c0_33 = arith.constant 0 : index
    %30 = vector.load %arg7[%c0_32, %c0_33] : memref<1x128xf32, #tpu.memory_space<vmem>>, vector<1x128xf32>
    %31 = vector.broadcast %30 : vector<1x128xf32> to vector<2x128xf32>
    %32 = arith.addf %29, %31 : vector<2x128xf32>
    %c0_34 = arith.constant 0 : index
    %c0_35 = arith.constant 0 : index
    %33 = vector.load %arg12[%c0_34, %c0_35] : memref<2x32xf32, #tpu.memory_space<vmem>>, vector<2x32xf32>
    %34 = vector.extract_strided_slice %23 {offsets = [0, 0], sizes = [2, 32], strides = [1, 1]} : vector<2x128xf32> to vector<2x32xf32>
    %35 = arith.negf %34 : vector<2x32xf32>
    %36 = math.exp %35 : vector<2x32xf32>
    %cst_36 = arith.constant 1.000000e+00 : f32
    %37 = vector.broadcast %cst_36 : f32 to vector<2x32xf32>
    %38 = arith.addf %37, %36 : vector<2x32xf32>
    %39 = arith.divf %37, %38 : vector<2x32xf32>
    %40 = vector.extract_strided_slice %23 {offsets = [0, 32], sizes = [2, 32], strides = [1, 1]} : vector<2x128xf32> to vector<2x32xf32>
    %41 = arith.negf %40 : vector<2x32xf32>
    %42 = math.exp %41 : vector<2x32xf32>
    %cst_37 = arith.constant 1.000000e+00 : f32
    %43 = vector.broadcast %cst_37 : f32 to vector<2x32xf32>
    %44 = arith.addf %43, %42 : vector<2x32xf32>
    %45 = arith.divf %43, %44 : vector<2x32xf32>
    %46 = vector.extract_strided_slice %23 {offsets = [0, 64], sizes = [2, 32], strides = [1, 1]} : vector<2x128xf32> to vector<2x32xf32>
    %47 = math.tanh %46 : vector<2x32xf32>
    %48 = vector.extract_strided_slice %23 {offsets = [0, 96], sizes = [2, 32], strides = [1, 1]} : vector<2x128xf32> to vector<2x32xf32>
    %49 = arith.negf %48 : vector<2x32xf32>
    %50 = math.exp %49 : vector<2x32xf32>
    %cst_38 = arith.constant 1.000000e+00 : f32
    %51 = vector.broadcast %cst_38 : f32 to vector<2x32xf32>
    %52 = arith.addf %51, %50 : vector<2x32xf32>
    %53 = arith.divf %51, %52 : vector<2x32xf32>
    %54 = arith.mulf %45, %33 : vector<2x32xf32>
    %55 = arith.mulf %39, %47 : vector<2x32xf32>
    %56 = arith.addf %54, %55 : vector<2x32xf32>
    %57 = math.tanh %56 : vector<2x32xf32>
    %58 = arith.mulf %53, %57 : vector<2x32xf32>
    %c0_39 = arith.constant 0 : index
    %c0_40 = arith.constant 0 : index
    %59 = vector.load %arg13[%c0_39, %c0_40] : memref<2x32xf32, #tpu.memory_space<vmem>>, vector<2x32xf32>
    %60 = vector.extract_strided_slice %32 {offsets = [0, 0], sizes = [2, 32], strides = [1, 1]} : vector<2x128xf32> to vector<2x32xf32>
    %61 = arith.negf %60 : vector<2x32xf32>
    %62 = math.exp %61 : vector<2x32xf32>
    %cst_41 = arith.constant 1.000000e+00 : f32
    %63 = vector.broadcast %cst_41 : f32 to vector<2x32xf32>
    %64 = arith.addf %63, %62 : vector<2x32xf32>
    %65 = arith.divf %63, %64 : vector<2x32xf32>
    %66 = vector.extract_strided_slice %32 {offsets = [0, 32], sizes = [2, 32], strides = [1, 1]} : vector<2x128xf32> to vector<2x32xf32>
    %67 = arith.negf %66 : vector<2x32xf32>
    %68 = math.exp %67 : vector<2x32xf32>
    %cst_42 = arith.constant 1.000000e+00 : f32
    %69 = vector.broadcast %cst_42 : f32 to vector<2x32xf32>
    %70 = arith.addf %69, %68 : vector<2x32xf32>
    %71 = arith.divf %69, %70 : vector<2x32xf32>
    %72 = vector.extract_strided_slice %32 {offsets = [0, 64], sizes = [2, 32], strides = [1, 1]} : vector<2x128xf32> to vector<2x32xf32>
    %73 = math.tanh %72 : vector<2x32xf32>
    %74 = vector.extract_strided_slice %32 {offsets = [0, 96], sizes = [2, 32], strides = [1, 1]} : vector<2x128xf32> to vector<2x32xf32>
    %75 = arith.negf %74 : vector<2x32xf32>
    %76 = math.exp %75 : vector<2x32xf32>
    %cst_43 = arith.constant 1.000000e+00 : f32
    %77 = vector.broadcast %cst_43 : f32 to vector<2x32xf32>
    %78 = arith.addf %77, %76 : vector<2x32xf32>
    %79 = arith.divf %77, %78 : vector<2x32xf32>
    %80 = arith.mulf %71, %59 : vector<2x32xf32>
    %81 = arith.mulf %65, %73 : vector<2x32xf32>
    %82 = arith.addf %80, %81 : vector<2x32xf32>
    %83 = math.tanh %82 : vector<2x32xf32>
    %84 = arith.mulf %79, %83 : vector<2x32xf32>
    %c0_44 = arith.constant 0 : index
    %c0_45 = arith.constant 0 : index
    %85 = vector.load %arg10[%c0_44, %c0_45] : memref<2x32xf32, #tpu.memory_space<vmem>>, vector<2x32xf32>
    tpu.vector_store %arg10[%c0_44, %c0_45], %58 {strides = array<i32>} : memref<2x32xf32, #tpu.memory_space<vmem>>, vector<2x32xf32>,
    %c0_46 = arith.constant 0 : index
    %c0_47 = arith.constant 0 : index
    %86 = vector.load %arg11[%c0_46, %c0_47] : memref<2x32xf32, #tpu.memory_space<vmem>>, vector<2x32xf32>
    tpu.vector_store %arg11[%c0_46, %c0_47], %84 {strides = array<i32>} : memref<2x32xf32, #tpu.memory_space<vmem>>, vector<2x32xf32>,
    %c0_48 = arith.constant 0 : index
    %c0_49 = arith.constant 0 : index
    %87 = vector.load %arg12[%c0_48, %c0_49] : memref<2x32xf32, #tpu.memory_space<vmem>>, vector<2x32xf32>
    tpu.vector_store %arg12[%c0_48, %c0_49], %56 {strides = array<i32>} : memref<2x32xf32, #tpu.memory_space<vmem>>, vector<2x32xf32>,
    %c0_50 = arith.constant 0 : index
    %c0_51 = arith.constant 0 : index
    %88 = vector.load %arg13[%c0_50, %c0_51] : memref<2x32xf32, #tpu.memory_space<vmem>>, vector<2x32xf32>
    tpu.vector_store %arg13[%c0_50, %c0_51], %82 {strides = array<i32>} : memref<2x32xf32, #tpu.memory_space<vmem>>, vector<2x32xf32>,
    %89 = vector.shape_cast %58 : vector<2x32xf32> to vector<1x2x32xf32>
    %90 = arith.index_cast %c0_i32 : i32 to index
    %c0_52 = arith.constant 0 : index
    %c0_53 = arith.constant 0 : index
    %91 = vector.load %arg8[%90, %c0_52, %c0_53] : memref<8x2x32xf32, #tpu.memory_space<vmem>>, vector<1x2x32xf32>
    tpu.vector_store %arg8[%90, %c0_52, %c0_53], %89 {strides = array<i32>} : memref<8x2x32xf32, #tpu.memory_space<vmem>>, vector<1x2x32xf32>,
    %92 = vector.shape_cast %84 : vector<2x32xf32> to vector<1x2x32xf32>
    %93 = arith.index_cast %8 : i32 to index
    %c0_54 = arith.constant 0 : index
    %c0_55 = arith.constant 0 : index
    %94 = vector.load %arg9[%93, %c0_54, %c0_55] : memref<8x2x32xf32, #tpu.memory_space<vmem>>, vector<1x2x32xf32>
    tpu.vector_store %arg9[%93, %c0_54, %c0_55], %92 {strides = array<i32>} : memref<8x2x32xf32, #tpu.memory_space<vmem>>, vector<1x2x32xf32>,
    %c1_i32 = arith.constant 1 : i32
    %c7_i32_56 = arith.constant 7 : i32
    %95 = arith.subi %c7_i32_56, %c1_i32 : i32
    %96 = arith.index_cast %c1_i32 : i32 to index
    %c0_57 = arith.constant 0 : index
    %c0_58 = arith.constant 0 : index
    %97 = vector.load %arg1[%96, %c0_57, %c0_58] : memref<8x2x16xf32, #tpu.memory_space<vmem>>, vector<1x2x16xf32>
    %98 = vector.shape_cast %97 : vector<1x2x16xf32> to vector<2x16xf32>
    %99 = arith.index_cast %95 : i32 to index
    %c0_59 = arith.constant 0 : index
    %c0_60 = arith.constant 0 : index
    %100 = vector.load %arg1[%99, %c0_59, %c0_60] : memref<8x2x16xf32, #tpu.memory_space<vmem>>, vector<1x2x16xf32>
    %101 = vector.shape_cast %100 : vector<1x2x16xf32> to vector<2x16xf32>
    %c0_61 = arith.constant 0 : index
    %c0_62 = arith.constant 0 : index
    %102 = vector.load %arg2[%c0_61, %c0_62] : memref<16x128xf32, #tpu.memory_space<vmem>>, vector<16x128xf32>
    %cst_63 = arith.constant dense<0.000000e+00> : vector<2x128xf32>
    %103 = tpu.matmul %98, %102, %cst_63 {dimension_numbers = #tpu.dot_dimension_numbers<[1], [0], [0], [1], [0, 0, 1, 1], [], []>} : vector<2x16xf32>, vector<16x128xf32>, vector<2x128xf32> -> vector<2x128xf32>
    %c0_64 = arith.constant 0 : index
    %c0_65 = arith.constant 0 : index
    %104 = vector.load %arg10[%c0_64, %c0_65] : memref<2x32xf32, #tpu.memory_space<vmem>>, vector<2x32xf32>
    %c0_66 = arith.constant 0 : index
    %c0_67 = arith.constant 0 : index
    %105 = vector.load %arg4[%c0_66, %c0_67] : memref<32x128xf32, #tpu.memory_space<vmem>>, vector<32x128xf32>
    %cst_68 = arith.constant dense<0.000000e+00> : vector<2x128xf32>
    %106 = tpu.matmul %104, %105, %cst_68 {dimension_numbers = #tpu.dot_dimension_numbers<[1], [0], [0], [1], [0, 0, 1, 1], [], []>} : vector<2x32xf32>, vector<32x128xf32>, vector<2x128xf32> -> vector<2x128xf32>
    %107 = arith.addf %103, %106 : vector<2x128xf32>
    %c0_69 = arith.constant 0 : index
    %c0_70 = arith.constant 0 : index
    %108 = vector.load %arg6[%c0_69, %c0_70] : memref<1x128xf32, #tpu.memory_space<vmem>>, vector<1x128xf32>
    %109 = vector.broadcast %108 : vector<1x128xf32> to vector<2x128xf32>
    %110 = arith.addf %107, %109 : vector<2x128xf32>
    %c0_71 = arith.constant 0 : index
    %c0_72 = arith.constant 0 : index
    %111 = vector.load %arg3[%c0_71, %c0_72] : memref<16x128xf32, #tpu.memory_space<vmem>>, vector<16x128xf32>
    %cst_73 = arith.constant dense<0.000000e+00> : vector<2x128xf32>
    %112 = tpu.matmul %101, %111, %cst_73 {dimension_numbers = #tpu.dot_dimension_numbers<[1], [0], [0], [1], [0, 0, 1, 1], [], []>} : vector<2x16xf32>, vector<16x128xf32>, vector<2x128xf32> -> vector<2x128xf32>
    %c0_74 = arith.constant 0 : index
    %c0_75 = arith.constant 0 : index
    %113 = vector.load %arg11[%c0_74, %c0_75] : memref<2x32xf32, #tpu.memory_space<vmem>>, vector<2x32xf32>
    %c0_76 = arith.constant 0 : index
    %c0_77 = arith.constant 0 : index
    %114 = vector.load %arg5[%c0_76, %c0_77] : memref<32x128xf32, #tpu.memory_space<vmem>>, vector<32x128xf32>
    %cst_78 = arith.constant dense<0.000000e+00> : vector<2x128xf32>
    %115 = tpu.matmul %113, %114, %cst_78 {dimension_numbers = #tpu.dot_dimension_numbers<[1], [0], [0], [1], [0, 0, 1, 1], [], []>} : vector<2x32xf32>, vector<32x128xf32>, vector<2x128xf32> -> vector<2x128xf32>
    %116 = arith.addf %112, %115 : vector<2x128xf32>
    %c0_79 = arith.constant 0 : index
    %c0_80 = arith.constant 0 : index
    %117 = vector.load %arg7[%c0_79, %c0_80] : memref<1x128xf32, #tpu.memory_space<vmem>>, vector<1x128xf32>
    %118 = vector.broadcast %117 : vector<1x128xf32> to vector<2x128xf32>
    %119 = arith.addf %116, %118 : vector<2x128xf32>
    %c0_81 = arith.constant 0 : index
    %c0_82 = arith.constant 0 : index
    %120 = vector.load %arg12[%c0_81, %c0_82] : memref<2x32xf32, #tpu.memory_space<vmem>>, vector<2x32xf32>
    %121 = vector.extract_strided_slice %110 {offsets = [0, 0], sizes = [2, 32], strides = [1, 1]} : vector<2x128xf32> to vector<2x32xf32>
    %122 = arith.negf %121 : vector<2x32xf32>
    %123 = math.exp %122 : vector<2x32xf32>
    %cst_83 = arith.constant 1.000000e+00 : f32
    %124 = vector.broadcast %cst_83 : f32 to vector<2x32xf32>
    %125 = arith.addf %124, %123 : vector<2x32xf32>
    %126 = arith.divf %124, %125 : vector<2x32xf32>
    %127 = vector.extract_strided_slice %110 {offsets = [0, 32], sizes = [2, 32], strides = [1, 1]} : vector<2x128xf32> to vector<2x32xf32>
    %128 = arith.negf %127 : vector<2x32xf32>
    %129 = math.exp %128 : vector<2x32xf32>
    %cst_84 = arith.constant 1.000000e+00 : f32
    %130 = vector.broadcast %cst_84 : f32 to vector<2x32xf32>
    %131 = arith.addf %130, %129 : vector<2x32xf32>
    %132 = arith.divf %130, %131 : vector<2x32xf32>
    %133 = vector.extract_strided_slice %110 {offsets = [0, 64], sizes = [2, 32], strides = [1, 1]} : vector<2x128xf32> to vector<2x32xf32>
    %134 = math.tanh %133 : vector<2x32xf32>
    %135 = vector.extract_strided_slice %110 {offsets = [0, 96], sizes = [2, 32], strides = [1, 1]} : vector<2x128xf32> to vector<2x32xf32>
    %136 = arith.negf %135 : vector<2x32xf32>
    %137 = math.exp %136 : vector<2x32xf32>
    %cst_85 = arith.constant 1.000000e+00 : f32
    %138 = vector.broadcast %cst_85 : f32 to vector<2x32xf32>
    %139 = arith.addf %138, %137 : vector<2x32xf32>
    %140 = arith.divf %138, %139 : vector<2x32xf32>
    %141 = arith.mulf %132, %120 : vector<2x32xf32>
    %142 = arith.mulf %126, %134 : vector<2x32xf32>
    %143 = arith.addf %141, %142 : vector<2x32xf32>
    %144 = math.tanh %143 : vector<2x32xf32>
    %145 = arith.mulf %140, %144 : vector<2x32xf32>
    %c0_86 = arith.constant 0 : index
    %c0_87 = arith.constant 0 : index
    %146 = vector.load %arg13[%c0_86, %c0_87] : memref<2x32xf32, #tpu.memory_space<vmem>>, vector<2x32xf32>
    %147 = vector.extract_strided_slice %119 {offsets = [0, 0], sizes = [2, 32], strides = [1, 1]} : vector<2x128xf32> to vector<2x32xf32>
    %148 = arith.negf %147 : vector<2x32xf32>
    %149 = math.exp %148 : vector<2x32xf32>
    %cst_88 = arith.constant 1.000000e+00 : f32
    %150 = vector.broadcast %cst_88 : f32 to vector<2x32xf32>
    %151 = arith.addf %150, %149 : vector<2x32xf32>
    %152 = arith.divf %150, %151 : vector<2x32xf32>
    %153 = vector.extract_strided_slice %119 {offsets = [0, 32], sizes = [2, 32], strides = [1, 1]} : vector<2x128xf32> to vector<2x32xf32>
    %154 = arith.negf %153 : vector<2x32xf32>
    %155 = math.exp %154 : vector<2x32xf32>
    %cst_89 = arith.constant 1.000000e+00 : f32
    %156 = vector.broadcast %cst_89 : f32 to vector<2x32xf32>
    %157 = arith.addf %156, %155 : vector<2x32xf32>
    %158 = arith.divf %156, %157 : vector<2x32xf32>
    %159 = vector.extract_strided_slice %119 {offsets = [0, 64], sizes = [2, 32], strides = [1, 1]} : vector<2x128xf32> to vector<2x32xf32>
    %160 = math.tanh %159 : vector<2x32xf32>
    %161 = vector.extract_strided_slice %119 {offsets = [0, 96], sizes = [2, 32], strides = [1, 1]} : vector<2x128xf32> to vector<2x32xf32>
    %162 = arith.negf %161 : vector<2x32xf32>
    %163 = math.exp %162 : vector<2x32xf32>
    %cst_90 = arith.constant 1.000000e+00 : f32
    %164 = vector.broadcast %cst_90 : f32 to vector<2x32xf32>
    %165 = arith.addf %164, %163 : vector<2x32xf32>
    %166 = arith.divf %164, %165 : vector<2x32xf32>
    %167 = arith.mulf %158, %146 : vector<2x32xf32>
    %168 = arith.mulf %152, %160 : vector<2x32xf32>
    %169 = arith.addf %167, %168 : vector<2x32xf32>
    %170 = math.tanh %169 : vector<2x32xf32>
    %171 = arith.mulf %166, %170 : vector<2x32xf32>
    %c0_91 = arith.constant 0 : index
    %c0_92 = arith.constant 0 : index
    %172 = vector.load %arg10[%c0_91, %c0_92] : memref<2x32xf32, #tpu.memory_space<vmem>>, vector<2x32xf32>
    tpu.vector_store %arg10[%c0_91, %c0_92], %145 {strides = array<i32>} : memref<2x32xf32, #tpu.memory_space<vmem>>, vector<2x32xf32>,
    %c0_93 = arith.constant 0 : index
    %c0_94 = arith.constant 0 : index
    %173 = vector.load %arg11[%c0_93, %c0_94] : memref<2x32xf32, #tpu.memory_space<vmem>>, vector<2x32xf32>
    tpu.vector_store %arg11[%c0_93, %c0_94], %171 {strides = array<i32>} : memref<2x32xf32, #tpu.memory_space<vmem>>, vector<2x32xf32>,
    %c0_95 = arith.constant 0 : index
    %c0_96 = arith.constant 0 : index
    %174 = vector.load %arg12[%c0_95, %c0_96] : memref<2x32xf32, #tpu.memory_space<vmem>>, vector<2x32xf32>
    tpu.vector_store %arg12[%c0_95, %c0_96], %143 {strides = array<i32>} : memref<2x32xf32, #tpu.memory_space<vmem>>, vector<2x32xf32>,
    %c0_97 = arith.constant 0 : index
    %c0_98 = arith.constant 0 : index
    %175 = vector.load %arg13[%c0_97, %c0_98] : memref<2x32xf32, #tpu.memory_space<vmem>>, vector<2x32xf32>
    tpu.vector_store %arg13[%c0_97, %c0_98], %169 {strides = array<i32>} : memref<2x32xf32, #tpu.memory_space<vmem>>, vector<2x32xf32>,
    %176 = vector.shape_cast %145 : vector<2x32xf32> to vector<1x2x32xf32>
    %177 = arith.index_cast %c1_i32 : i32 to index
    %c0_99 = arith.constant 0 : index
    %c0_100 = arith.constant 0 : index
    %178 = vector.load %arg8[%177, %c0_99, %c0_100] : memref<8x2x32xf32, #tpu.memory_space<vmem>>, vector<1x2x32xf32>
    tpu.vector_store %arg8[%177, %c0_99, %c0_100], %176 {strides = array<i32>} : memref<8x2x32xf32, #tpu.memory_space<vmem>>, vector<1x2x32xf32>,
    %179 = vector.shape_cast %171 : vector<2x32xf32> to vector<1x2x32xf32>
    %180 = arith.index_cast %95 : i32 to index
    %c0_101 = arith.constant 0 : index
    %c0_102 = arith.constant 0 : index
    %181 = vector.load %arg9[%180, %c0_101, %c0_102] : memref<8x2x32xf32, #tpu.memory_space<vmem>>, vector<1x2x32xf32>
    tpu.vector_store %arg9[%180, %c0_101, %c0_102], %179 {strides = array<i32>} : memref<8x2x32xf32, #tpu.memory_space<vmem>>, vector<1x2x32xf32>,
    %c2_i32 = arith.constant 2 : i32
    %c7_i32_103 = arith.constant 7 : i32
    %182 = arith.subi %c7_i32_103, %c2_i32 : i32
    %183 = arith.index_cast %c2_i32 : i32 to index
    %c0_104 = arith.constant 0 : index
    %c0_105 = arith.constant 0 : index
    %184 = vector.load %arg1[%183, %c0_104, %c0_105] : memref<8x2x16xf32, #tpu.memory_space<vmem>>, vector<1x2x16xf32>
    %185 = vector.shape_cast %184 : vector<1x2x16xf32> to vector<2x16xf32>
    %186 = arith.index_cast %182 : i32 to index
    %c0_106 = arith.constant 0 : index
    %c0_107 = arith.constant 0 : index
    %187 = vector.load %arg1[%186, %c0_106, %c0_107] : memref<8x2x16xf32, #tpu.memory_space<vmem>>, vector<1x2x16xf32>
    %188 = vector.shape_cast %187 : vector<1x2x16xf32> to vector<2x16xf32>
    %c0_108 = arith.constant 0 : index
    %c0_109 = arith.constant 0 : index
    %189 = vector.load %arg2[%c0_108, %c0_109] : memref<16x128xf32, #tpu.memory_space<vmem>>, vector<16x128xf32>
    %cst_110 = arith.constant dense<0.000000e+00> : vector<2x128xf32>
    %190 = tpu.matmul %185, %189, %cst_110 {dimension_numbers = #tpu.dot_dimension_numbers<[1], [0], [0], [1], [0, 0, 1, 1], [], []>} : vector<2x16xf32>, vector<16x128xf32>, vector<2x128xf32> -> vector<2x128xf32>
    %c0_111 = arith.constant 0 : index
    %c0_112 = arith.constant 0 : index
    %191 = vector.load %arg10[%c0_111, %c0_112] : memref<2x32xf32, #tpu.memory_space<vmem>>, vector<2x32xf32>
    %c0_113 = arith.constant 0 : index
    %c0_114 = arith.constant 0 : index
    %192 = vector.load %arg4[%c0_113, %c0_114] : memref<32x128xf32, #tpu.memory_space<vmem>>, vector<32x128xf32>
    %cst_115 = arith.constant dense<0.000000e+00> : vector<2x128xf32>
    %193 = tpu.matmul %191, %192, %cst_115 {dimension_numbers = #tpu.dot_dimension_numbers<[1], [0], [0], [1], [0, 0, 1, 1], [], []>} : vector<2x32xf32>, vector<32x128xf32>, vector<2x128xf32> -> vector<2x128xf32>
    %194 = arith.addf %190, %193 : vector<2x128xf32>
    %c0_116 = arith.constant 0 : index
    %c0_117 = arith.constant 0 : index
    %195 = vector.load %arg6[%c0_116, %c0_117] : memref<1x128xf32, #tpu.memory_space<vmem>>, vector<1x128xf32>
    %196 = vector.broadcast %195 : vector<1x128xf32> to vector<2x128xf32>
    %197 = arith.addf %194, %196 : vector<2x128xf32>
    %c0_118 = arith.constant 0 : index
    %c0_119 = arith.constant 0 : index
    %198 = vector.load %arg3[%c0_118, %c0_119] : memref<16x128xf32, #tpu.memory_space<vmem>>, vector<16x128xf32>
    %cst_120 = arith.constant dense<0.000000e+00> : vector<2x128xf32>
    %199 = tpu.matmul %188, %198, %cst_120 {dimension_numbers = #tpu.dot_dimension_numbers<[1], [0], [0], [1], [0, 0, 1, 1], [], []>} : vector<2x16xf32>, vector<16x128xf32>, vector<2x128xf32> -> vector<2x128xf32>
    %c0_121 = arith.constant 0 : index
    %c0_122 = arith.constant 0 : index
    %200 = vector.load %arg11[%c0_121, %c0_122] : memref<2x32xf32, #tpu.memory_space<vmem>>, vector<2x32xf32>
    %c0_123 = arith.constant 0 : index
    %c0_124 = arith.constant 0 : index
    %201 = vector.load %arg5[%c0_123, %c0_124] : memref<32x128xf32, #tpu.memory_space<vmem>>, vector<32x128xf32>
    %cst_125 = arith.constant dense<0.000000e+00> : vector<2x128xf32>
    %202 = tpu.matmul %200, %201, %cst_125 {dimension_numbers = #tpu.dot_dimension_numbers<[1], [0], [0], [1], [0, 0, 1, 1], [], []>} : vector<2x32xf32>, vector<32x128xf32>, vector<2x128xf32> -> vector<2x128xf32>
    %203 = arith.addf %199, %202 : vector<2x128xf32>
    %c0_126 = arith.constant 0 : index
    %c0_127 = arith.constant 0 : index
    %204 = vector.load %arg7[%c0_126, %c0_127] : memref<1x128xf32, #tpu.memory_space<vmem>>, vector<1x128xf32>
    %205 = vector.broadcast %204 : vector<1x128xf32> to vector<2x128xf32>
    %206 = arith.addf %203, %205 : vector<2x128xf32>
    %c0_128 = arith.constant 0 : index
    %c0_129 = arith.constant 0 : index
    %207 = vector.load %arg12[%c0_128, %c0_129] : memref<2x32xf32, #tpu.memory_space<vmem>>, vector<2x32xf32>
    %208 = vector.extract_strided_slice %197 {offsets = [0, 0], sizes = [2, 32], strides = [1, 1]} : vector<2x128xf32> to vector<2x32xf32>
    %209 = arith.negf %208 : vector<2x32xf32>
    %210 = math.exp %209 : vector<2x32xf32>
    %cst_130 = arith.constant 1.000000e+00 : f32
    %211 = vector.broadcast %cst_130 : f32 to vector<2x32xf32>
    %212 = arith.addf %211, %210 : vector<2x32xf32>
    %213 = arith.divf %211, %212 : vector<2x32xf32>
    %214 = vector.extract_strided_slice %197 {offsets = [0, 32], sizes = [2, 32], strides = [1, 1]} : vector<2x128xf32> to vector<2x32xf32>
    %215 = arith.negf %214 : vector<2x32xf32>
    %216 = math.exp %215 : vector<2x32xf32>
    %cst_131 = arith.constant 1.000000e+00 : f32
    %217 = vector.broadcast %cst_131 : f32 to vector<2x32xf32>
    %218 = arith.addf %217, %216 : vector<2x32xf32>
    %219 = arith.divf %217, %218 : vector<2x32xf32>
    %220 = vector.extract_strided_slice %197 {offsets = [0, 64], sizes = [2, 32], strides = [1, 1]} : vector<2x128xf32> to vector<2x32xf32>
    %221 = math.tanh %220 : vector<2x32xf32>
    %222 = vector.extract_strided_slice %197 {offsets = [0, 96], sizes = [2, 32], strides = [1, 1]} : vector<2x128xf32> to vector<2x32xf32>
    %223 = arith.negf %222 : vector<2x32xf32>
    %224 = math.exp %223 : vector<2x32xf32>
    %cst_132 = arith.constant 1.000000e+00 : f32
    %225 = vector.broadcast %cst_132 : f32 to vector<2x32xf32>
    %226 = arith.addf %225, %224 : vector<2x32xf32>
    %227 = arith.divf %225, %226 : vector<2x32xf32>
    %228 = arith.mulf %219, %207 : vector<2x32xf32>
    %229 = arith.mulf %213, %221 : vector<2x32xf32>
    %230 = arith.addf %228, %229 : vector<2x32xf32>
    %231 = math.tanh %230 : vector<2x32xf32>
    %232 = arith.mulf %227, %231 : vector<2x32xf32>
    %c0_133 = arith.constant 0 : index
    %c0_134 = arith.constant 0 : index
    %233 = vector.load %arg13[%c0_133, %c0_134] : memref<2x32xf32, #tpu.memory_space<vmem>>, vector<2x32xf32>
    %234 = vector.extract_strided_slice %206 {offsets = [0, 0], sizes = [2, 32], strides = [1, 1]} : vector<2x128xf32> to vector<2x32xf32>
    %235 = arith.negf %234 : vector<2x32xf32>
    %236 = math.exp %235 : vector<2x32xf32>
    %cst_135 = arith.constant 1.000000e+00 : f32
    %237 = vector.broadcast %cst_135 : f32 to vector<2x32xf32>
    %238 = arith.addf %237, %236 : vector<2x32xf32>
    %239 = arith.divf %237, %238 : vector<2x32xf32>
    %240 = vector.extract_strided_slice %206 {offsets = [0, 32], sizes = [2, 32], strides = [1, 1]} : vector<2x128xf32> to vector<2x32xf32>
    %241 = arith.negf %240 : vector<2x32xf32>
    %242 = math.exp %241 : vector<2x32xf32>
    %cst_136 = arith.constant 1.000000e+00 : f32
    %243 = vector.broadcast %cst_136 : f32 to vector<2x32xf32>
    %244 = arith.addf %243, %242 : vector<2x32xf32>
    %245 = arith.divf %243, %244 : vector<2x32xf32>
    %246 = vector.extract_strided_slice %206 {offsets = [0, 64], sizes = [2, 32], strides = [1, 1]} : vector<2x128xf32> to vector<2x32xf32>
    %247 = math.tanh %246 : vector<2x32xf32>
    %248 = vector.extract_strided_slice %206 {offsets = [0, 96], sizes = [2, 32], strides = [1, 1]} : vector<2x128xf32> to vector<2x32xf32>
    %249 = arith.negf %248 : vector<2x32xf32>
    %250 = math.exp %249 : vector<2x32xf32>
    %cst_137 = arith.constant 1.000000e+00 : f32
    %251 = vector.broadcast %cst_137 : f32 to vector<2x32xf32>
    %252 = arith.addf %251, %250 : vector<2x32xf32>
    %253 = arith.divf %251, %252 : vector<2x32xf32>
    %254 = arith.mulf %245, %233 : vector<2x32xf32>
    %255 = arith.mulf %239, %247 : vector<2x32xf32>
    %256 = arith.addf %254, %255 : vector<2x32xf32>
    %257 = math.tanh %256 : vector<2x32xf32>
    %258 = arith.mulf %253, %257 : vector<2x32xf32>
    %c0_138 = arith.constant 0 : index
    %c0_139 = arith.constant 0 : index
    %259 = vector.load %arg10[%c0_138, %c0_139] : memref<2x32xf32, #tpu.memory_space<vmem>>, vector<2x32xf32>
    tpu.vector_store %arg10[%c0_138, %c0_139], %232 {strides = array<i32>} : memref<2x32xf32, #tpu.memory_space<vmem>>, vector<2x32xf32>,
    %c0_140 = arith.constant 0 : index
    %c0_141 = arith.constant 0 : index
    %260 = vector.load %arg11[%c0_140, %c0_141] : memref<2x32xf32, #tpu.memory_space<vmem>>, vector<2x32xf32>
    tpu.vector_store %arg11[%c0_140, %c0_141], %258 {strides = array<i32>} : memref<2x32xf32, #tpu.memory_space<vmem>>, vector<2x32xf32>,
    %c0_142 = arith.constant 0 : index
    %c0_143 = arith.constant 0 : index
    %261 = vector.load %arg12[%c0_142, %c0_143] : memref<2x32xf32, #tpu.memory_space<vmem>>, vector<2x32xf32>
    tpu.vector_store %arg12[%c0_142, %c0_143], %230 {strides = array<i32>} : memref<2x32xf32, #tpu.memory_space<vmem>>, vector<2x32xf32>,
    %c0_144 = arith.constant 0 : index
    %c0_145 = arith.constant 0 : index
    %262 = vector.load %arg13[%c0_144, %c0_145] : memref<2x32xf32, #tpu.memory_space<vmem>>, vector<2x32xf32>
    tpu.vector_store %arg13[%c0_144, %c0_145], %256 {strides = array<i32>} : memref<2x32xf32, #tpu.memory_space<vmem>>, vector<2x32xf32>,
    %263 = vector.shape_cast %232 : vector<2x32xf32> to vector<1x2x32xf32>
    %264 = arith.index_cast %c2_i32 : i32 to index
    %c0_146 = arith.constant 0 : index
    %c0_147 = arith.constant 0 : index
    %265 = vector.load %arg8[%264, %c0_146, %c0_147] : memref<8x2x32xf32, #tpu.memory_space<vmem>>, vector<1x2x32xf32>
    tpu.vector_store %arg8[%264, %c0_146, %c0_147], %263 {strides = array<i32>} : memref<8x2x32xf32, #tpu.memory_space<vmem>>, vector<1x2x32xf32>,
    %266 = vector.shape_cast %258 : vector<2x32xf32> to vector<1x2x32xf32>
    %267 = arith.index_cast %182 : i32 to index
    %c0_148 = arith.constant 0 : index
    %c0_149 = arith.constant 0 : index
    %268 = vector.load %arg9[%267, %c0_148, %c0_149] : memref<8x2x32xf32, #tpu.memory_space<vmem>>, vector<1x2x32xf32>
    tpu.vector_store %arg9[%267, %c0_148, %c0_149], %266 {strides = array<i32>} : memref<8x2x32xf32, #tpu.memory_space<vmem>>, vector<1x2x32xf32>,
    %c3_i32 = arith.constant 3 : i32
    %c7_i32_150 = arith.constant 7 : i32
    %269 = arith.subi %c7_i32_150, %c3_i32 : i32
    %270 = arith.index_cast %c3_i32 : i32 to index
    %c0_151 = arith.constant 0 : index
    %c0_152 = arith.constant 0 : index
    %271 = vector.load %arg1[%270, %c0_151, %c0_152] : memref<8x2x16xf32, #tpu.memory_space<vmem>>, vector<1x2x16xf32>
    %272 = vector.shape_cast %271 : vector<1x2x16xf32> to vector<2x16xf32>
    %273 = arith.index_cast %269 : i32 to index
    %c0_153 = arith.constant 0 : index
    %c0_154 = arith.constant 0 : index
    %274 = vector.load %arg1[%273, %c0_153, %c0_154] : memref<8x2x16xf32, #tpu.memory_space<vmem>>, vector<1x2x16xf32>
    %275 = vector.shape_cast %274 : vector<1x2x16xf32> to vector<2x16xf32>
    %c0_155 = arith.constant 0 : index
    %c0_156 = arith.constant 0 : index
    %276 = vector.load %arg2[%c0_155, %c0_156] : memref<16x128xf32, #tpu.memory_space<vmem>>, vector<16x128xf32>
    %cst_157 = arith.constant dense<0.000000e+00> : vector<2x128xf32>
    %277 = tpu.matmul %272, %276, %cst_157 {dimension_numbers = #tpu.dot_dimension_numbers<[1], [0], [0], [1], [0, 0, 1, 1], [], []>} : vector<2x16xf32>, vector<16x128xf32>, vector<2x128xf32> -> vector<2x128xf32>
    %c0_158 = arith.constant 0 : index
    %c0_159 = arith.constant 0 : index
    %278 = vector.load %arg10[%c0_158, %c0_159] : memref<2x32xf32, #tpu.memory_space<vmem>>, vector<2x32xf32>
    %c0_160 = arith.constant 0 : index
    %c0_161 = arith.constant 0 : index
    %279 = vector.load %arg4[%c0_160, %c0_161] : memref<32x128xf32, #tpu.memory_space<vmem>>, vector<32x128xf32>
    %cst_162 = arith.constant dense<0.000000e+00> : vector<2x128xf32>
    %280 = tpu.matmul %278, %279, %cst_162 {dimension_numbers = #tpu.dot_dimension_numbers<[1], [0], [0], [1], [0, 0, 1, 1], [], []>} : vector<2x32xf32>, vector<32x128xf32>, vector<2x128xf32> -> vector<2x128xf32>
    %281 = arith.addf %277, %280 : vector<2x128xf32>
    %c0_163 = arith.constant 0 : index
    %c0_164 = arith.constant 0 : index
    %282 = vector.load %arg6[%c0_163, %c0_164] : memref<1x128xf32, #tpu.memory_space<vmem>>, vector<1x128xf32>
    %283 = vector.broadcast %282 : vector<1x128xf32> to vector<2x128xf32>
    %284 = arith.addf %281, %283 : vector<2x128xf32>
    %c0_165 = arith.constant 0 : index
    %c0_166 = arith.constant 0 : index
    %285 = vector.load %arg3[%c0_165, %c0_166] : memref<16x128xf32, #tpu.memory_space<vmem>>, vector<16x128xf32>
    %cst_167 = arith.constant dense<0.000000e+00> : vector<2x128xf32>
    %286 = tpu.matmul %275, %285, %cst_167 {dimension_numbers = #tpu.dot_dimension_numbers<[1], [0], [0], [1], [0, 0, 1, 1], [], []>} : vector<2x16xf32>, vector<16x128xf32>, vector<2x128xf32> -> vector<2x128xf32>
    %c0_168 = arith.constant 0 : index
    %c0_169 = arith.constant 0 : index
    %287 = vector.load %arg11[%c0_168, %c0_169] : memref<2x32xf32, #tpu.memory_space<vmem>>, vector<2x32xf32>
    %c0_170 = arith.constant 0 : index
    %c0_171 = arith.constant 0 : index
    %288 = vector.load %arg5[%c0_170, %c0_171] : memref<32x128xf32, #tpu.memory_space<vmem>>, vector<32x128xf32>
    %cst_172 = arith.constant dense<0.000000e+00> : vector<2x128xf32>
    %289 = tpu.matmul %287, %288, %cst_172 {dimension_numbers = #tpu.dot_dimension_numbers<[1], [0], [0], [1], [0, 0, 1, 1], [], []>} : vector<2x32xf32>, vector<32x128xf32>, vector<2x128xf32> -> vector<2x128xf32>
    %290 = arith.addf %286, %289 : vector<2x128xf32>
    %c0_173 = arith.constant 0 : index
    %c0_174 = arith.constant 0 : index
    %291 = vector.load %arg7[%c0_173, %c0_174] : memref<1x128xf32, #tpu.memory_space<vmem>>, vector<1x128xf32>
    %292 = vector.broadcast %291 : vector<1x128xf32> to vector<2x128xf32>
    %293 = arith.addf %290, %292 : vector<2x128xf32>
    %c0_175 = arith.constant 0 : index
    %c0_176 = arith.constant 0 : index
    %294 = vector.load %arg12[%c0_175, %c0_176] : memref<2x32xf32, #tpu.memory_space<vmem>>, vector<2x32xf32>
    %295 = vector.extract_strided_slice %284 {offsets = [0, 0], sizes = [2, 32], strides = [1, 1]} : vector<2x128xf32> to vector<2x32xf32>
    %296 = arith.negf %295 : vector<2x32xf32>
    %297 = math.exp %296 : vector<2x32xf32>
    %cst_177 = arith.constant 1.000000e+00 : f32
    %298 = vector.broadcast %cst_177 : f32 to vector<2x32xf32>
    %299 = arith.addf %298, %297 : vector<2x32xf32>
    %300 = arith.divf %298, %299 : vector<2x32xf32>
    %301 = vector.extract_strided_slice %284 {offsets = [0, 32], sizes = [2, 32], strides = [1, 1]} : vector<2x128xf32> to vector<2x32xf32>
    %302 = arith.negf %301 : vector<2x32xf32>
    %303 = math.exp %302 : vector<2x32xf32>
    %cst_178 = arith.constant 1.000000e+00 : f32
    %304 = vector.broadcast %cst_178 : f32 to vector<2x32xf32>
    %305 = arith.addf %304, %303 : vector<2x32xf32>
    %306 = arith.divf %304, %305 : vector<2x32xf32>
    %307 = vector.extract_strided_slice %284 {offsets = [0, 64], sizes = [2, 32], strides = [1, 1]} : vector<2x128xf32> to vector<2x32xf32>
    %308 = math.tanh %307 : vector<2x32xf32>
    %309 = vector.extract_strided_slice %284 {offsets = [0, 96], sizes = [2, 32], strides = [1, 1]} : vector<2x128xf32> to vector<2x32xf32>
    %310 = arith.negf %309 : vector<2x32xf32>
    %311 = math.exp %310 : vector<2x32xf32>
    %cst_179 = arith.constant 1.000000e+00 : f32
    %312 = vector.broadcast %cst_179 : f32 to vector<2x32xf32>
    %313 = arith.addf %312, %311 : vector<2x32xf32>
    %314 = arith.divf %312, %313 : vector<2x32xf32>
    %315 = arith.mulf %306, %294 : vector<2x32xf32>
    %316 = arith.mulf %300, %308 : vector<2x32xf32>
    %317 = arith.addf %315, %316 : vector<2x32xf32>
    %318 = math.tanh %317 : vector<2x32xf32>
    %319 = arith.mulf %314, %318 : vector<2x32xf32>
    %c0_180 = arith.constant 0 : index
    %c0_181 = arith.constant 0 : index
    %320 = vector.load %arg13[%c0_180, %c0_181] : memref<2x32xf32, #tpu.memory_space<vmem>>, vector<2x32xf32>
    %321 = vector.extract_strided_slice %293 {offsets = [0, 0], sizes = [2, 32], strides = [1, 1]} : vector<2x128xf32> to vector<2x32xf32>
    %322 = arith.negf %321 : vector<2x32xf32>
    %323 = math.exp %322 : vector<2x32xf32>
    %cst_182 = arith.constant 1.000000e+00 : f32
    %324 = vector.broadcast %cst_182 : f32 to vector<2x32xf32>
    %325 = arith.addf %324, %323 : vector<2x32xf32>
    %326 = arith.divf %324, %325 : vector<2x32xf32>
    %327 = vector.extract_strided_slice %293 {offsets = [0, 32], sizes = [2, 32], strides = [1, 1]} : vector<2x128xf32> to vector<2x32xf32>
    %328 = arith.negf %327 : vector<2x32xf32>
    %329 = math.exp %328 : vector<2x32xf32>
    %cst_183 = arith.constant 1.000000e+00 : f32
    %330 = vector.broadcast %cst_183 : f32 to vector<2x32xf32>
    %331 = arith.addf %330, %329 : vector<2x32xf32>
    %332 = arith.divf %330, %331 : vector<2x32xf32>
    %333 = vector.extract_strided_slice %293 {offsets = [0, 64], sizes = [2, 32], strides = [1, 1]} : vector<2x128xf32> to vector<2x32xf32>
    %334 = math.tanh %333 : vector<2x32xf32>
    %335 = vector.extract_strided_slice %293 {offsets = [0, 96], sizes = [2, 32], strides = [1, 1]} : vector<2x128xf32> to vector<2x32xf32>
    %336 = arith.negf %335 : vector<2x32xf32>
    %337 = math.exp %336 : vector<2x32xf32>
    %cst_184 = arith.constant 1.000000e+00 : f32
    %338 = vector.broadcast %cst_184 : f32 to vector<2x32xf32>
    %339 = arith.addf %338, %337 : vector<2x32xf32>
    %340 = arith.divf %338, %339 : vector<2x32xf32>
    %341 = arith.mulf %332, %320 : vector<2x32xf32>
    %342 = arith.mulf %326, %334 : vector<2x32xf32>
    %343 = arith.addf %341, %342 : vector<2x32xf32>
    %344 = math.tanh %343 : vector<2x32xf32>
    %345 = arith.mulf %340, %344 : vector<2x32xf32>
    %c0_185 = arith.constant 0 : index
    %c0_186 = arith.constant 0 : index
    %346 = vector.load %arg10[%c0_185, %c0_186] : memref<2x32xf32, #tpu.memory_space<vmem>>, vector<2x32xf32>
    tpu.vector_store %arg10[%c0_185, %c0_186], %319 {strides = array<i32>} : memref<2x32xf32, #tpu.memory_space<vmem>>, vector<2x32xf32>,
    %c0_187 = arith.constant 0 : index
    %c0_188 = arith.constant 0 : index
    %347 = vector.load %arg11[%c0_187, %c0_188] : memref<2x32xf32, #tpu.memory_space<vmem>>, vector<2x32xf32>
    tpu.vector_store %arg11[%c0_187, %c0_188], %345 {strides = array<i32>} : memref<2x32xf32, #tpu.memory_space<vmem>>, vector<2x32xf32>,
    %c0_189 = arith.constant 0 : index
    %c0_190 = arith.constant 0 : index
    %348 = vector.load %arg12[%c0_189, %c0_190] : memref<2x32xf32, #tpu.memory_space<vmem>>, vector<2x32xf32>
    tpu.vector_store %arg12[%c0_189, %c0_190], %317 {strides = array<i32>} : memref<2x32xf32, #tpu.memory_space<vmem>>, vector<2x32xf32>,
    %c0_191 = arith.constant 0 : index
    %c0_192 = arith.constant 0 : index
    %349 = vector.load %arg13[%c0_191, %c0_192] : memref<2x32xf32, #tpu.memory_space<vmem>>, vector<2x32xf32>
    tpu.vector_store %arg13[%c0_191, %c0_192], %343 {strides = array<i32>} : memref<2x32xf32, #tpu.memory_space<vmem>>, vector<2x32xf32>,
    %350 = vector.shape_cast %319 : vector<2x32xf32> to vector<1x2x32xf32>
    %351 = arith.index_cast %c3_i32 : i32 to index
    %c0_193 = arith.constant 0 : index
    %c0_194 = arith.constant 0 : index
    %352 = vector.load %arg8[%351, %c0_193, %c0_194] : memref<8x2x32xf32, #tpu.memory_space<vmem>>, vector<1x2x32xf32>
    tpu.vector_store %arg8[%351, %c0_193, %c0_194], %350 {strides = array<i32>} : memref<8x2x32xf32, #tpu.memory_space<vmem>>, vector<1x2x32xf32>,
    %353 = vector.shape_cast %345 : vector<2x32xf32> to vector<1x2x32xf32>
    %354 = arith.index_cast %269 : i32 to index
    %c0_195 = arith.constant 0 : index
    %c0_196 = arith.constant 0 : index
    %355 = vector.load %arg9[%354, %c0_195, %c0_196] : memref<8x2x32xf32, #tpu.memory_space<vmem>>, vector<1x2x32xf32>
    tpu.vector_store %arg9[%354, %c0_195, %c0_196], %353 {strides = array<i32>} : memref<8x2x32xf32, #tpu.memory_space<vmem>>, vector<1x2x32xf32>,
    %c4_i32 = arith.constant 4 : i32
    %c7_i32_197 = arith.constant 7 : i32
    %356 = arith.subi %c7_i32_197, %c4_i32 : i32
    %357 = arith.index_cast %c4_i32 : i32 to index
    %c0_198 = arith.constant 0 : index
    %c0_199 = arith.constant 0 : index
    %358 = vector.load %arg1[%357, %c0_198, %c0_199] : memref<8x2x16xf32, #tpu.memory_space<vmem>>, vector<1x2x16xf32>
    %359 = vector.shape_cast %358 : vector<1x2x16xf32> to vector<2x16xf32>
    %360 = arith.index_cast %356 : i32 to index
    %c0_200 = arith.constant 0 : index
    %c0_201 = arith.constant 0 : index
    %361 = vector.load %arg1[%360, %c0_200, %c0_201] : memref<8x2x16xf32, #tpu.memory_space<vmem>>, vector<1x2x16xf32>
    %362 = vector.shape_cast %361 : vector<1x2x16xf32> to vector<2x16xf32>
    %c0_202 = arith.constant 0 : index
    %c0_203 = arith.constant 0 : index
    %363 = vector.load %arg2[%c0_202, %c0_203] : memref<16x128xf32, #tpu.memory_space<vmem>>, vector<16x128xf32>
    %cst_204 = arith.constant dense<0.000000e+00> : vector<2x128xf32>
    %364 = tpu.matmul %359, %363, %cst_204 {dimension_numbers = #tpu.dot_dimension_numbers<[1], [0], [0], [1], [0, 0, 1, 1], [], []>} : vector<2x16xf32>, vector<16x128xf32>, vector<2x128xf32> -> vector<2x128xf32>
    %c0_205 = arith.constant 0 : index
    %c0_206 = arith.constant 0 : index
    %365 = vector.load %arg10[%c0_205, %c0_206] : memref<2x32xf32, #tpu.memory_space<vmem>>, vector<2x32xf32>
    %c0_207 = arith.constant 0 : index
    %c0_208 = arith.constant 0 : index
    %366 = vector.load %arg4[%c0_207, %c0_208] : memref<32x128xf32, #tpu.memory_space<vmem>>, vector<32x128xf32>
    %cst_209 = arith.constant dense<0.000000e+00> : vector<2x128xf32>
    %367 = tpu.matmul %365, %366, %cst_209 {dimension_numbers = #tpu.dot_dimension_numbers<[1], [0], [0], [1], [0, 0, 1, 1], [], []>} : vector<2x32xf32>, vector<32x128xf32>, vector<2x128xf32> -> vector<2x128xf32>
    %368 = arith.addf %364, %367 : vector<2x128xf32>
    %c0_210 = arith.constant 0 : index
    %c0_211 = arith.constant 0 : index
    %369 = vector.load %arg6[%c0_210, %c0_211] : memref<1x128xf32, #tpu.memory_space<vmem>>, vector<1x128xf32>
    %370 = vector.broadcast %369 : vector<1x128xf32> to vector<2x128xf32>
    %371 = arith.addf %368, %370 : vector<2x128xf32>
    %c0_212 = arith.constant 0 : index
    %c0_213 = arith.constant 0 : index
    %372 = vector.load %arg3[%c0_212, %c0_213] : memref<16x128xf32, #tpu.memory_space<vmem>>, vector<16x128xf32>
    %cst_214 = arith.constant dense<0.000000e+00> : vector<2x128xf32>
    %373 = tpu.matmul %362, %372, %cst_214 {dimension_numbers = #tpu.dot_dimension_numbers<[1], [0], [0], [1], [0, 0, 1, 1], [], []>} : vector<2x16xf32>, vector<16x128xf32>, vector<2x128xf32> -> vector<2x128xf32>
    %c0_215 = arith.constant 0 : index
    %c0_216 = arith.constant 0 : index
    %374 = vector.load %arg11[%c0_215, %c0_216] : memref<2x32xf32, #tpu.memory_space<vmem>>, vector<2x32xf32>
    %c0_217 = arith.constant 0 : index
    %c0_218 = arith.constant 0 : index
    %375 = vector.load %arg5[%c0_217, %c0_218] : memref<32x128xf32, #tpu.memory_space<vmem>>, vector<32x128xf32>
    %cst_219 = arith.constant dense<0.000000e+00> : vector<2x128xf32>
    %376 = tpu.matmul %374, %375, %cst_219 {dimension_numbers = #tpu.dot_dimension_numbers<[1], [0], [0], [1], [0, 0, 1, 1], [], []>} : vector<2x32xf32>, vector<32x128xf32>, vector<2x128xf32> -> vector<2x128xf32>
    %377 = arith.addf %373, %376 : vector<2x128xf32>
    %c0_220 = arith.constant 0 : index
    %c0_221 = arith.constant 0 : index
    %378 = vector.load %arg7[%c0_220, %c0_221] : memref<1x128xf32, #tpu.memory_space<vmem>>, vector<1x128xf32>
    %379 = vector.broadcast %378 : vector<1x128xf32> to vector<2x128xf32>
    %380 = arith.addf %377, %379 : vector<2x128xf32>
    %c0_222 = arith.constant 0 : index
    %c0_223 = arith.constant 0 : index
    %381 = vector.load %arg12[%c0_222, %c0_223] : memref<2x32xf32, #tpu.memory_space<vmem>>, vector<2x32xf32>
    %382 = vector.extract_strided_slice %371 {offsets = [0, 0], sizes = [2, 32], strides = [1, 1]} : vector<2x128xf32> to vector<2x32xf32>
    %383 = arith.negf %382 : vector<2x32xf32>
    %384 = math.exp %383 : vector<2x32xf32>
    %cst_224 = arith.constant 1.000000e+00 : f32
    %385 = vector.broadcast %cst_224 : f32 to vector<2x32xf32>
    %386 = arith.addf %385, %384 : vector<2x32xf32>
    %387 = arith.divf %385, %386 : vector<2x32xf32>
    %388 = vector.extract_strided_slice %371 {offsets = [0, 32], sizes = [2, 32], strides = [1, 1]} : vector<2x128xf32> to vector<2x32xf32>
    %389 = arith.negf %388 : vector<2x32xf32>
    %390 = math.exp %389 : vector<2x32xf32>
    %cst_225 = arith.constant 1.000000e+00 : f32
    %391 = vector.broadcast %cst_225 : f32 to vector<2x32xf32>
    %392 = arith.addf %391, %390 : vector<2x32xf32>
    %393 = arith.divf %391, %392 : vector<2x32xf32>
    %394 = vector.extract_strided_slice %371 {offsets = [0, 64], sizes = [2, 32], strides = [1, 1]} : vector<2x128xf32> to vector<2x32xf32>
    %395 = math.tanh %394 : vector<2x32xf32>
    %396 = vector.extract_strided_slice %371 {offsets = [0, 96], sizes = [2, 32], strides = [1, 1]} : vector<2x128xf32> to vector<2x32xf32>
    %397 = arith.negf %396 : vector<2x32xf32>
    %398 = math.exp %397 : vector<2x32xf32>
    %cst_226 = arith.constant 1.000000e+00 : f32
    %399 = vector.broadcast %cst_226 : f32 to vector<2x32xf32>
    %400 = arith.addf %399, %398 : vector<2x32xf32>
    %401 = arith.divf %399, %400 : vector<2x32xf32>
    %402 = arith.mulf %393, %381 : vector<2x32xf32>
    %403 = arith.mulf %387, %395 : vector<2x32xf32>
    %404 = arith.addf %402, %403 : vector<2x32xf32>
    %405 = math.tanh %404 : vector<2x32xf32>
    %406 = arith.mulf %401, %405 : vector<2x32xf32>
    %c0_227 = arith.constant 0 : index
    %c0_228 = arith.constant 0 : index
    %407 = vector.load %arg13[%c0_227, %c0_228] : memref<2x32xf32, #tpu.memory_space<vmem>>, vector<2x32xf32>
    %408 = vector.extract_strided_slice %380 {offsets = [0, 0], sizes = [2, 32], strides = [1, 1]} : vector<2x128xf32> to vector<2x32xf32>
    %409 = arith.negf %408 : vector<2x32xf32>
    %410 = math.exp %409 : vector<2x32xf32>
    %cst_229 = arith.constant 1.000000e+00 : f32
    %411 = vector.broadcast %cst_229 : f32 to vector<2x32xf32>
    %412 = arith.addf %411, %410 : vector<2x32xf32>
    %413 = arith.divf %411, %412 : vector<2x32xf32>
    %414 = vector.extract_strided_slice %380 {offsets = [0, 32], sizes = [2, 32], strides = [1, 1]} : vector<2x128xf32> to vector<2x32xf32>
    %415 = arith.negf %414 : vector<2x32xf32>
    %416 = math.exp %415 : vector<2x32xf32>
    %cst_230 = arith.constant 1.000000e+00 : f32
    %417 = vector.broadcast %cst_230 : f32 to vector<2x32xf32>
    %418 = arith.addf %417, %416 : vector<2x32xf32>
    %419 = arith.divf %417, %418 : vector<2x32xf32>
    %420 = vector.extract_strided_slice %380 {offsets = [0, 64], sizes = [2, 32], strides = [1, 1]} : vector<2x128xf32> to vector<2x32xf32>
    %421 = math.tanh %420 : vector<2x32xf32>
    %422 = vector.extract_strided_slice %380 {offsets = [0, 96], sizes = [2, 32], strides = [1, 1]} : vector<2x128xf32> to vector<2x32xf32>
    %423 = arith.negf %422 : vector<2x32xf32>
    %424 = math.exp %423 : vector<2x32xf32>
    %cst_231 = arith.constant 1.000000e+00 : f32
    %425 = vector.broadcast %cst_231 : f32 to vector<2x32xf32>
    %426 = arith.addf %425, %424 : vector<2x32xf32>
    %427 = arith.divf %425, %426 : vector<2x32xf32>
    %428 = arith.mulf %419, %407 : vector<2x32xf32>
    %429 = arith.mulf %413, %421 : vector<2x32xf32>
    %430 = arith.addf %428, %429 : vector<2x32xf32>
    %431 = math.tanh %430 : vector<2x32xf32>
    %432 = arith.mulf %427, %431 : vector<2x32xf32>
    %c0_232 = arith.constant 0 : index
    %c0_233 = arith.constant 0 : index
    %433 = vector.load %arg10[%c0_232, %c0_233] : memref<2x32xf32, #tpu.memory_space<vmem>>, vector<2x32xf32>
    tpu.vector_store %arg10[%c0_232, %c0_233], %406 {strides = array<i32>} : memref<2x32xf32, #tpu.memory_space<vmem>>, vector<2x32xf32>,
    %c0_234 = arith.constant 0 : index
    %c0_235 = arith.constant 0 : index
    %434 = vector.load %arg11[%c0_234, %c0_235] : memref<2x32xf32, #tpu.memory_space<vmem>>, vector<2x32xf32>
    tpu.vector_store %arg11[%c0_234, %c0_235], %432 {strides = array<i32>} : memref<2x32xf32, #tpu.memory_space<vmem>>, vector<2x32xf32>,
    %c0_236 = arith.constant 0 : index
    %c0_237 = arith.constant 0 : index
    %435 = vector.load %arg12[%c0_236, %c0_237] : memref<2x32xf32, #tpu.memory_space<vmem>>, vector<2x32xf32>
    tpu.vector_store %arg12[%c0_236, %c0_237], %404 {strides = array<i32>} : memref<2x32xf32, #tpu.memory_space<vmem>>, vector<2x32xf32>,
    %c0_238 = arith.constant 0 : index
    %c0_239 = arith.constant 0 : index
    %436 = vector.load %arg13[%c0_238, %c0_239] : memref<2x32xf32, #tpu.memory_space<vmem>>, vector<2x32xf32>
    tpu.vector_store %arg13[%c0_238, %c0_239], %430 {strides = array<i32>} : memref<2x32xf32, #tpu.memory_space<vmem>>, vector<2x32xf32>,
    %437 = vector.shape_cast %406 : vector<2x32xf32> to vector<1x2x32xf32>
    %438 = arith.index_cast %c4_i32 : i32 to index
    %c0_240 = arith.constant 0 : index
    %c0_241 = arith.constant 0 : index
    %439 = vector.load %arg8[%438, %c0_240, %c0_241] : memref<8x2x32xf32, #tpu.memory_space<vmem>>, vector<1x2x32xf32>
    tpu.vector_store %arg8[%438, %c0_240, %c0_241], %437 {strides = array<i32>} : memref<8x2x32xf32, #tpu.memory_space<vmem>>, vector<1x2x32xf32>,
    %440 = vector.shape_cast %432 : vector<2x32xf32> to vector<1x2x32xf32>
    %441 = arith.index_cast %356 : i32 to index
    %c0_242 = arith.constant 0 : index
    %c0_243 = arith.constant 0 : index
    %442 = vector.load %arg9[%441, %c0_242, %c0_243] : memref<8x2x32xf32, #tpu.memory_space<vmem>>, vector<1x2x32xf32>
    tpu.vector_store %arg9[%441, %c0_242, %c0_243], %440 {strides = array<i32>} : memref<8x2x32xf32, #tpu.memory_space<vmem>>, vector<1x2x32xf32>,
    %c5_i32 = arith.constant 5 : i32
    %c7_i32_244 = arith.constant 7 : i32
    %443 = arith.subi %c7_i32_244, %c5_i32 : i32
    %444 = arith.index_cast %c5_i32 : i32 to index
    %c0_245 = arith.constant 0 : index
    %c0_246 = arith.constant 0 : index
    %445 = vector.load %arg1[%444, %c0_245, %c0_246] : memref<8x2x16xf32, #tpu.memory_space<vmem>>, vector<1x2x16xf32>
    %446 = vector.shape_cast %445 : vector<1x2x16xf32> to vector<2x16xf32>
    %447 = arith.index_cast %443 : i32 to index
    %c0_247 = arith.constant 0 : index
    %c0_248 = arith.constant 0 : index
    %448 = vector.load %arg1[%447, %c0_247, %c0_248] : memref<8x2x16xf32, #tpu.memory_space<vmem>>, vector<1x2x16xf32>
    %449 = vector.shape_cast %448 : vector<1x2x16xf32> to vector<2x16xf32>
    %c0_249 = arith.constant 0 : index
    %c0_250 = arith.constant 0 : index
    %450 = vector.load %arg2[%c0_249, %c0_250] : memref<16x128xf32, #tpu.memory_space<vmem>>, vector<16x128xf32>
    %cst_251 = arith.constant dense<0.000000e+00> : vector<2x128xf32>
    %451 = tpu.matmul %446, %450, %cst_251 {dimension_numbers = #tpu.dot_dimension_numbers<[1], [0], [0], [1], [0, 0, 1, 1], [], []>} : vector<2x16xf32>, vector<16x128xf32>, vector<2x128xf32> -> vector<2x128xf32>
    %c0_252 = arith.constant 0 : index
    %c0_253 = arith.constant 0 : index
    %452 = vector.load %arg10[%c0_252, %c0_253] : memref<2x32xf32, #tpu.memory_space<vmem>>, vector<2x32xf32>
    %c0_254 = arith.constant 0 : index
    %c0_255 = arith.constant 0 : index
    %453 = vector.load %arg4[%c0_254, %c0_255] : memref<32x128xf32, #tpu.memory_space<vmem>>, vector<32x128xf32>
    %cst_256 = arith.constant dense<0.000000e+00> : vector<2x128xf32>
    %454 = tpu.matmul %452, %453, %cst_256 {dimension_numbers = #tpu.dot_dimension_numbers<[1], [0], [0], [1], [0, 0, 1, 1], [], []>} : vector<2x32xf32>, vector<32x128xf32>, vector<2x128xf32> -> vector<2x128xf32>
    %455 = arith.addf %451, %454 : vector<2x128xf32>
    %c0_257 = arith.constant 0 : index
    %c0_258 = arith.constant 0 : index
    %456 = vector.load %arg6[%c0_257, %c0_258] : memref<1x128xf32, #tpu.memory_space<vmem>>, vector<1x128xf32>
    %457 = vector.broadcast %456 : vector<1x128xf32> to vector<2x128xf32>
    %458 = arith.addf %455, %457 : vector<2x128xf32>
    %c0_259 = arith.constant 0 : index
    %c0_260 = arith.constant 0 : index
    %459 = vector.load %arg3[%c0_259, %c0_260] : memref<16x128xf32, #tpu.memory_space<vmem>>, vector<16x128xf32>
    %cst_261 = arith.constant dense<0.000000e+00> : vector<2x128xf32>
    %460 = tpu.matmul %449, %459, %cst_261 {dimension_numbers = #tpu.dot_dimension_numbers<[1], [0], [0], [1], [0, 0, 1, 1], [], []>} : vector<2x16xf32>, vector<16x128xf32>, vector<2x128xf32> -> vector<2x128xf32>
    %c0_262 = arith.constant 0 : index
    %c0_263 = arith.constant 0 : index
    %461 = vector.load %arg11[%c0_262, %c0_263] : memref<2x32xf32, #tpu.memory_space<vmem>>, vector<2x32xf32>
    %c0_264 = arith.constant 0 : index
    %c0_265 = arith.constant 0 : index
    %462 = vector.load %arg5[%c0_264, %c0_265] : memref<32x128xf32, #tpu.memory_space<vmem>>, vector<32x128xf32>
    %cst_266 = arith.constant dense<0.000000e+00> : vector<2x128xf32>
    %463 = tpu.matmul %461, %462, %cst_266 {dimension_numbers = #tpu.dot_dimension_numbers<[1], [0], [0], [1], [0, 0, 1, 1], [], []>} : vector<2x32xf32>, vector<32x128xf32>, vector<2x128xf32> -> vector<2x128xf32>
    %464 = arith.addf %460, %463 : vector<2x128xf32>
    %c0_267 = arith.constant 0 : index
    %c0_268 = arith.constant 0 : index
    %465 = vector.load %arg7[%c0_267, %c0_268] : memref<1x128xf32, #tpu.memory_space<vmem>>, vector<1x128xf32>
    %466 = vector.broadcast %465 : vector<1x128xf32> to vector<2x128xf32>
    %467 = arith.addf %464, %466 : vector<2x128xf32>
    %c0_269 = arith.constant 0 : index
    %c0_270 = arith.constant 0 : index
    %468 = vector.load %arg12[%c0_269, %c0_270] : memref<2x32xf32, #tpu.memory_space<vmem>>, vector<2x32xf32>
    %469 = vector.extract_strided_slice %458 {offsets = [0, 0], sizes = [2, 32], strides = [1, 1]} : vector<2x128xf32> to vector<2x32xf32>
    %470 = arith.negf %469 : vector<2x32xf32>
    %471 = math.exp %470 : vector<2x32xf32>
    %cst_271 = arith.constant 1.000000e+00 : f32
    %472 = vector.broadcast %cst_271 : f32 to vector<2x32xf32>
    %473 = arith.addf %472, %471 : vector<2x32xf32>
    %474 = arith.divf %472, %473 : vector<2x32xf32>
    %475 = vector.extract_strided_slice %458 {offsets = [0, 32], sizes = [2, 32], strides = [1, 1]} : vector<2x128xf32> to vector<2x32xf32>
    %476 = arith.negf %475 : vector<2x32xf32>
    %477 = math.exp %476 : vector<2x32xf32>
    %cst_272 = arith.constant 1.000000e+00 : f32
    %478 = vector.broadcast %cst_272 : f32 to vector<2x32xf32>
    %479 = arith.addf %478, %477 : vector<2x32xf32>
    %480 = arith.divf %478, %479 : vector<2x32xf32>
    %481 = vector.extract_strided_slice %458 {offsets = [0, 64], sizes = [2, 32], strides = [1, 1]} : vector<2x128xf32> to vector<2x32xf32>
    %482 = math.tanh %481 : vector<2x32xf32>
    %483 = vector.extract_strided_slice %458 {offsets = [0, 96], sizes = [2, 32], strides = [1, 1]} : vector<2x128xf32> to vector<2x32xf32>
    %484 = arith.negf %483 : vector<2x32xf32>
    %485 = math.exp %484 : vector<2x32xf32>
    %cst_273 = arith.constant 1.000000e+00 : f32
    %486 = vector.broadcast %cst_273 : f32 to vector<2x32xf32>
    %487 = arith.addf %486, %485 : vector<2x32xf32>
    %488 = arith.divf %486, %487 : vector<2x32xf32>
    %489 = arith.mulf %480, %468 : vector<2x32xf32>
    %490 = arith.mulf %474, %482 : vector<2x32xf32>
    %491 = arith.addf %489, %490 : vector<2x32xf32>
    %492 = math.tanh %491 : vector<2x32xf32>
    %493 = arith.mulf %488, %492 : vector<2x32xf32>
    %c0_274 = arith.constant 0 : index
    %c0_275 = arith.constant 0 : index
    %494 = vector.load %arg13[%c0_274, %c0_275] : memref<2x32xf32, #tpu.memory_space<vmem>>, vector<2x32xf32>
    %495 = vector.extract_strided_slice %467 {offsets = [0, 0], sizes = [2, 32], strides = [1, 1]} : vector<2x128xf32> to vector<2x32xf32>
    %496 = arith.negf %495 : vector<2x32xf32>
    %497 = math.exp %496 : vector<2x32xf32>
    %cst_276 = arith.constant 1.000000e+00 : f32
    %498 = vector.broadcast %cst_276 : f32 to vector<2x32xf32>
    %499 = arith.addf %498, %497 : vector<2x32xf32>
    %500 = arith.divf %498, %499 : vector<2x32xf32>
    %501 = vector.extract_strided_slice %467 {offsets = [0, 32], sizes = [2, 32], strides = [1, 1]} : vector<2x128xf32> to vector<2x32xf32>
    %502 = arith.negf %501 : vector<2x32xf32>
    %503 = math.exp %502 : vector<2x32xf32>
    %cst_277 = arith.constant 1.000000e+00 : f32
    %504 = vector.broadcast %cst_277 : f32 to vector<2x32xf32>
    %505 = arith.addf %504, %503 : vector<2x32xf32>
    %506 = arith.divf %504, %505 : vector<2x32xf32>
    %507 = vector.extract_strided_slice %467 {offsets = [0, 64], sizes = [2, 32], strides = [1, 1]} : vector<2x128xf32> to vector<2x32xf32>
    %508 = math.tanh %507 : vector<2x32xf32>
    %509 = vector.extract_strided_slice %467 {offsets = [0, 96], sizes = [2, 32], strides = [1, 1]} : vector<2x128xf32> to vector<2x32xf32>
    %510 = arith.negf %509 : vector<2x32xf32>
    %511 = math.exp %510 : vector<2x32xf32>
    %cst_278 = arith.constant 1.000000e+00 : f32
    %512 = vector.broadcast %cst_278 : f32 to vector<2x32xf32>
    %513 = arith.addf %512, %511 : vector<2x32xf32>
    %514 = arith.divf %512, %513 : vector<2x32xf32>
    %515 = arith.mulf %506, %494 : vector<2x32xf32>
    %516 = arith.mulf %500, %508 : vector<2x32xf32>
    %517 = arith.addf %515, %516 : vector<2x32xf32>
    %518 = math.tanh %517 : vector<2x32xf32>
    %519 = arith.mulf %514, %518 : vector<2x32xf32>
    %c0_279 = arith.constant 0 : index
    %c0_280 = arith.constant 0 : index
    %520 = vector.load %arg10[%c0_279, %c0_280] : memref<2x32xf32, #tpu.memory_space<vmem>>, vector<2x32xf32>
    tpu.vector_store %arg10[%c0_279, %c0_280], %493 {strides = array<i32>} : memref<2x32xf32, #tpu.memory_space<vmem>>, vector<2x32xf32>,
    %c0_281 = arith.constant 0 : index
    %c0_282 = arith.constant 0 : index
    %521 = vector.load %arg11[%c0_281, %c0_282] : memref<2x32xf32, #tpu.memory_space<vmem>>, vector<2x32xf32>
    tpu.vector_store %arg11[%c0_281, %c0_282], %519 {strides = array<i32>} : memref<2x32xf32, #tpu.memory_space<vmem>>, vector<2x32xf32>,
    %c0_283 = arith.constant 0 : index
    %c0_284 = arith.constant 0 : index
    %522 = vector.load %arg12[%c0_283, %c0_284] : memref<2x32xf32, #tpu.memory_space<vmem>>, vector<2x32xf32>
    tpu.vector_store %arg12[%c0_283, %c0_284], %491 {strides = array<i32>} : memref<2x32xf32, #tpu.memory_space<vmem>>, vector<2x32xf32>,
    %c0_285 = arith.constant 0 : index
    %c0_286 = arith.constant 0 : index
    %523 = vector.load %arg13[%c0_285, %c0_286] : memref<2x32xf32, #tpu.memory_space<vmem>>, vector<2x32xf32>
    tpu.vector_store %arg13[%c0_285, %c0_286], %517 {strides = array<i32>} : memref<2x32xf32, #tpu.memory_space<vmem>>, vector<2x32xf32>,
    %524 = vector.shape_cast %493 : vector<2x32xf32> to vector<1x2x32xf32>
    %525 = arith.index_cast %c5_i32 : i32 to index
    %c0_287 = arith.constant 0 : index
    %c0_288 = arith.constant 0 : index
    %526 = vector.load %arg8[%525, %c0_287, %c0_288] : memref<8x2x32xf32, #tpu.memory_space<vmem>>, vector<1x2x32xf32>
    tpu.vector_store %arg8[%525, %c0_287, %c0_288], %524 {strides = array<i32>} : memref<8x2x32xf32, #tpu.memory_space<vmem>>, vector<1x2x32xf32>,
    %527 = vector.shape_cast %519 : vector<2x32xf32> to vector<1x2x32xf32>
    %528 = arith.index_cast %443 : i32 to index
    %c0_289 = arith.constant 0 : index
    %c0_290 = arith.constant 0 : index
    %529 = vector.load %arg9[%528, %c0_289, %c0_290] : memref<8x2x32xf32, #tpu.memory_space<vmem>>, vector<1x2x32xf32>
    tpu.vector_store %arg9[%528, %c0_289, %c0_290], %527 {strides = array<i32>} : memref<8x2x32xf32, #tpu.memory_space<vmem>>, vector<1x2x32xf32>,
    %c6_i32 = arith.constant 6 : i32
    %c7_i32_291 = arith.constant 7 : i32
    %530 = arith.subi %c7_i32_291, %c6_i32 : i32
    %531 = arith.index_cast %c6_i32 : i32 to index
    %c0_292 = arith.constant 0 : index
    %c0_293 = arith.constant 0 : index
    %532 = vector.load %arg1[%531, %c0_292, %c0_293] : memref<8x2x16xf32, #tpu.memory_space<vmem>>, vector<1x2x16xf32>
    %533 = vector.shape_cast %532 : vector<1x2x16xf32> to vector<2x16xf32>
    %534 = arith.index_cast %530 : i32 to index
    %c0_294 = arith.constant 0 : index
    %c0_295 = arith.constant 0 : index
    %535 = vector.load %arg1[%534, %c0_294, %c0_295] : memref<8x2x16xf32, #tpu.memory_space<vmem>>, vector<1x2x16xf32>
    %536 = vector.shape_cast %535 : vector<1x2x16xf32> to vector<2x16xf32>
    %c0_296 = arith.constant 0 : index
    %c0_297 = arith.constant 0 : index
    %537 = vector.load %arg2[%c0_296, %c0_297] : memref<16x128xf32, #tpu.memory_space<vmem>>, vector<16x128xf32>
    %cst_298 = arith.constant dense<0.000000e+00> : vector<2x128xf32>
    %538 = tpu.matmul %533, %537, %cst_298 {dimension_numbers = #tpu.dot_dimension_numbers<[1], [0], [0], [1], [0, 0, 1, 1], [], []>} : vector<2x16xf32>, vector<16x128xf32>, vector<2x128xf32> -> vector<2x128xf32>
    %c0_299 = arith.constant 0 : index
    %c0_300 = arith.constant 0 : index
    %539 = vector.load %arg10[%c0_299, %c0_300] : memref<2x32xf32, #tpu.memory_space<vmem>>, vector<2x32xf32>
    %c0_301 = arith.constant 0 : index
    %c0_302 = arith.constant 0 : index
    %540 = vector.load %arg4[%c0_301, %c0_302] : memref<32x128xf32, #tpu.memory_space<vmem>>, vector<32x128xf32>
    %cst_303 = arith.constant dense<0.000000e+00> : vector<2x128xf32>
    %541 = tpu.matmul %539, %540, %cst_303 {dimension_numbers = #tpu.dot_dimension_numbers<[1], [0], [0], [1], [0, 0, 1, 1], [], []>} : vector<2x32xf32>, vector<32x128xf32>, vector<2x128xf32> -> vector<2x128xf32>
    %542 = arith.addf %538, %541 : vector<2x128xf32>
    %c0_304 = arith.constant 0 : index
    %c0_305 = arith.constant 0 : index
    %543 = vector.load %arg6[%c0_304, %c0_305] : memref<1x128xf32, #tpu.memory_space<vmem>>, vector<1x128xf32>
    %544 = vector.broadcast %543 : vector<1x128xf32> to vector<2x128xf32>
    %545 = arith.addf %542, %544 : vector<2x128xf32>
    %c0_306 = arith.constant 0 : index
    %c0_307 = arith.constant 0 : index
    %546 = vector.load %arg3[%c0_306, %c0_307] : memref<16x128xf32, #tpu.memory_space<vmem>>, vector<16x128xf32>
    %cst_308 = arith.constant dense<0.000000e+00> : vector<2x128xf32>
    %547 = tpu.matmul %536, %546, %cst_308 {dimension_numbers = #tpu.dot_dimension_numbers<[1], [0], [0], [1], [0, 0, 1, 1], [], []>} : vector<2x16xf32>, vector<16x128xf32>, vector<2x128xf32> -> vector<2x128xf32>
    %c0_309 = arith.constant 0 : index
    %c0_310 = arith.constant 0 : index
    %548 = vector.load %arg11[%c0_309, %c0_310] : memref<2x32xf32, #tpu.memory_space<vmem>>, vector<2x32xf32>
    %c0_311 = arith.constant 0 : index
    %c0_312 = arith.constant 0 : index
    %549 = vector.load %arg5[%c0_311, %c0_312] : memref<32x128xf32, #tpu.memory_space<vmem>>, vector<32x128xf32>
    %cst_313 = arith.constant dense<0.000000e+00> : vector<2x128xf32>
    %550 = tpu.matmul %548, %549, %cst_313 {dimension_numbers = #tpu.dot_dimension_numbers<[1], [0], [0], [1], [0, 0, 1, 1], [], []>} : vector<2x32xf32>, vector<32x128xf32>, vector<2x128xf32> -> vector<2x128xf32>
    %551 = arith.addf %547, %550 : vector<2x128xf32>
    %c0_314 = arith.constant 0 : index
    %c0_315 = arith.constant 0 : index
    %552 = vector.load %arg7[%c0_314, %c0_315] : memref<1x128xf32, #tpu.memory_space<vmem>>, vector<1x128xf32>
    %553 = vector.broadcast %552 : vector<1x128xf32> to vector<2x128xf32>
    %554 = arith.addf %551, %553 : vector<2x128xf32>
    %c0_316 = arith.constant 0 : index
    %c0_317 = arith.constant 0 : index
    %555 = vector.load %arg12[%c0_316, %c0_317] : memref<2x32xf32, #tpu.memory_space<vmem>>, vector<2x32xf32>
    %556 = vector.extract_strided_slice %545 {offsets = [0, 0], sizes = [2, 32], strides = [1, 1]} : vector<2x128xf32> to vector<2x32xf32>
    %557 = arith.negf %556 : vector<2x32xf32>
    %558 = math.exp %557 : vector<2x32xf32>
    %cst_318 = arith.constant 1.000000e+00 : f32
    %559 = vector.broadcast %cst_318 : f32 to vector<2x32xf32>
    %560 = arith.addf %559, %558 : vector<2x32xf32>
    %561 = arith.divf %559, %560 : vector<2x32xf32>
    %562 = vector.extract_strided_slice %545 {offsets = [0, 32], sizes = [2, 32], strides = [1, 1]} : vector<2x128xf32> to vector<2x32xf32>
    %563 = arith.negf %562 : vector<2x32xf32>
    %564 = math.exp %563 : vector<2x32xf32>
    %cst_319 = arith.constant 1.000000e+00 : f32
    %565 = vector.broadcast %cst_319 : f32 to vector<2x32xf32>
    %566 = arith.addf %565, %564 : vector<2x32xf32>
    %567 = arith.divf %565, %566 : vector<2x32xf32>
    %568 = vector.extract_strided_slice %545 {offsets = [0, 64], sizes = [2, 32], strides = [1, 1]} : vector<2x128xf32> to vector<2x32xf32>
    %569 = math.tanh %568 : vector<2x32xf32>
    %570 = vector.extract_strided_slice %545 {offsets = [0, 96], sizes = [2, 32], strides = [1, 1]} : vector<2x128xf32> to vector<2x32xf32>
    %571 = arith.negf %570 : vector<2x32xf32>
    %572 = math.exp %571 : vector<2x32xf32>
    %cst_320 = arith.constant 1.000000e+00 : f32
    %573 = vector.broadcast %cst_320 : f32 to vector<2x32xf32>
    %574 = arith.addf %573, %572 : vector<2x32xf32>
    %575 = arith.divf %573, %574 : vector<2x32xf32>
    %576 = arith.mulf %567, %555 : vector<2x32xf32>
    %577 = arith.mulf %561, %569 : vector<2x32xf32>
    %578 = arith.addf %576, %577 : vector<2x32xf32>
    %579 = math.tanh %578 : vector<2x32xf32>
    %580 = arith.mulf %575, %579 : vector<2x32xf32>
    %c0_321 = arith.constant 0 : index
    %c0_322 = arith.constant 0 : index
    %581 = vector.load %arg13[%c0_321, %c0_322] : memref<2x32xf32, #tpu.memory_space<vmem>>, vector<2x32xf32>
    %582 = vector.extract_strided_slice %554 {offsets = [0, 0], sizes = [2, 32], strides = [1, 1]} : vector<2x128xf32> to vector<2x32xf32>
    %583 = arith.negf %582 : vector<2x32xf32>
    %584 = math.exp %583 : vector<2x32xf32>
    %cst_323 = arith.constant 1.000000e+00 : f32
    %585 = vector.broadcast %cst_323 : f32 to vector<2x32xf32>
    %586 = arith.addf %585, %584 : vector<2x32xf32>
    %587 = arith.divf %585, %586 : vector<2x32xf32>
    %588 = vector.extract_strided_slice %554 {offsets = [0, 32], sizes = [2, 32], strides = [1, 1]} : vector<2x128xf32> to vector<2x32xf32>
    %589 = arith.negf %588 : vector<2x32xf32>
    %590 = math.exp %589 : vector<2x32xf32>
    %cst_324 = arith.constant 1.000000e+00 : f32
    %591 = vector.broadcast %cst_324 : f32 to vector<2x32xf32>
    %592 = arith.addf %591, %590 : vector<2x32xf32>
    %593 = arith.divf %591, %592 : vector<2x32xf32>
    %594 = vector.extract_strided_slice %554 {offsets = [0, 64], sizes = [2, 32], strides = [1, 1]} : vector<2x128xf32> to vector<2x32xf32>
    %595 = math.tanh %594 : vector<2x32xf32>
    %596 = vector.extract_strided_slice %554 {offsets = [0, 96], sizes = [2, 32], strides = [1, 1]} : vector<2x128xf32> to vector<2x32xf32>
    %597 = arith.negf %596 : vector<2x32xf32>
    %598 = math.exp %597 : vector<2x32xf32>
    %cst_325 = arith.constant 1.000000e+00 : f32
    %599 = vector.broadcast %cst_325 : f32 to vector<2x32xf32>
    %600 = arith.addf %599, %598 : vector<2x32xf32>
    %601 = arith.divf %599, %600 : vector<2x32xf32>
    %602 = arith.mulf %593, %581 : vector<2x32xf32>
    %603 = arith.mulf %587, %595 : vector<2x32xf32>
    %604 = arith.addf %602, %603 : vector<2x32xf32>
    %605 = math.tanh %604 : vector<2x32xf32>
    %606 = arith.mulf %601, %605 : vector<2x32xf32>
    %c0_326 = arith.constant 0 : index
    %c0_327 = arith.constant 0 : index
    %607 = vector.load %arg10[%c0_326, %c0_327] : memref<2x32xf32, #tpu.memory_space<vmem>>, vector<2x32xf32>
    tpu.vector_store %arg10[%c0_326, %c0_327], %580 {strides = array<i32>} : memref<2x32xf32, #tpu.memory_space<vmem>>, vector<2x32xf32>,
    %c0_328 = arith.constant 0 : index
    %c0_329 = arith.constant 0 : index
    %608 = vector.load %arg11[%c0_328, %c0_329] : memref<2x32xf32, #tpu.memory_space<vmem>>, vector<2x32xf32>
    tpu.vector_store %arg11[%c0_328, %c0_329], %606 {strides = array<i32>} : memref<2x32xf32, #tpu.memory_space<vmem>>, vector<2x32xf32>,
    %c0_330 = arith.constant 0 : index
    %c0_331 = arith.constant 0 : index
    %609 = vector.load %arg12[%c0_330, %c0_331] : memref<2x32xf32, #tpu.memory_space<vmem>>, vector<2x32xf32>
    tpu.vector_store %arg12[%c0_330, %c0_331], %578 {strides = array<i32>} : memref<2x32xf32, #tpu.memory_space<vmem>>, vector<2x32xf32>,
    %c0_332 = arith.constant 0 : index
    %c0_333 = arith.constant 0 : index
    %610 = vector.load %arg13[%c0_332, %c0_333] : memref<2x32xf32, #tpu.memory_space<vmem>>, vector<2x32xf32>
    tpu.vector_store %arg13[%c0_332, %c0_333], %604 {strides = array<i32>} : memref<2x32xf32, #tpu.memory_space<vmem>>, vector<2x32xf32>,
    %611 = vector.shape_cast %580 : vector<2x32xf32> to vector<1x2x32xf32>
    %612 = arith.index_cast %c6_i32 : i32 to index
    %c0_334 = arith.constant 0 : index
    %c0_335 = arith.constant 0 : index
    %613 = vector.load %arg8[%612, %c0_334, %c0_335] : memref<8x2x32xf32, #tpu.memory_space<vmem>>, vector<1x2x32xf32>
    tpu.vector_store %arg8[%612, %c0_334, %c0_335], %611 {strides = array<i32>} : memref<8x2x32xf32, #tpu.memory_space<vmem>>, vector<1x2x32xf32>,
    %614 = vector.shape_cast %606 : vector<2x32xf32> to vector<1x2x32xf32>
    %615 = arith.index_cast %530 : i32 to index
    %c0_336 = arith.constant 0 : index
    %c0_337 = arith.constant 0 : index
    %616 = vector.load %arg9[%615, %c0_336, %c0_337] : memref<8x2x32xf32, #tpu.memory_space<vmem>>, vector<1x2x32xf32>
    tpu.vector_store %arg9[%615, %c0_336, %c0_337], %614 {strides = array<i32>} : memref<8x2x32xf32, #tpu.memory_space<vmem>>, vector<1x2x32xf32>,
    %c7_i32_338 = arith.constant 7 : i32
    %c7_i32_339 = arith.constant 7 : i32
    %617 = arith.subi %c7_i32_339, %c7_i32_338 : i32
    %618 = arith.index_cast %c7_i32_338 : i32 to index
    %c0_340 = arith.constant 0 : index
    %c0_341 = arith.constant 0 : index
    %619 = vector.load %arg1[%618, %c0_340, %c0_341] : memref<8x2x16xf32, #tpu.memory_space<vmem>>, vector<1x2x16xf32>
    %620 = vector.shape_cast %619 : vector<1x2x16xf32> to vector<2x16xf32>
    %621 = arith.index_cast %617 : i32 to index
    %c0_342 = arith.constant 0 : index
    %c0_343 = arith.constant 0 : index
    %622 = vector.load %arg1[%621, %c0_342, %c0_343] : memref<8x2x16xf32, #tpu.memory_space<vmem>>, vector<1x2x16xf32>
    %623 = vector.shape_cast %622 : vector<1x2x16xf32> to vector<2x16xf32>
    %c0_344 = arith.constant 0 : index
    %c0_345 = arith.constant 0 : index
    %624 = vector.load %arg2[%c0_344, %c0_345] : memref<16x128xf32, #tpu.memory_space<vmem>>, vector<16x128xf32>
    %cst_346 = arith.constant dense<0.000000e+00> : vector<2x128xf32>
    %625 = tpu.matmul %620, %624, %cst_346 {dimension_numbers = #tpu.dot_dimension_numbers<[1], [0], [0], [1], [0, 0, 1, 1], [], []>} : vector<2x16xf32>, vector<16x128xf32>, vector<2x128xf32> -> vector<2x128xf32>
    %c0_347 = arith.constant 0 : index
    %c0_348 = arith.constant 0 : index
    %626 = vector.load %arg10[%c0_347, %c0_348] : memref<2x32xf32, #tpu.memory_space<vmem>>, vector<2x32xf32>
    %c0_349 = arith.constant 0 : index
    %c0_350 = arith.constant 0 : index
    %627 = vector.load %arg4[%c0_349, %c0_350] : memref<32x128xf32, #tpu.memory_space<vmem>>, vector<32x128xf32>
    %cst_351 = arith.constant dense<0.000000e+00> : vector<2x128xf32>
    %628 = tpu.matmul %626, %627, %cst_351 {dimension_numbers = #tpu.dot_dimension_numbers<[1], [0], [0], [1], [0, 0, 1, 1], [], []>} : vector<2x32xf32>, vector<32x128xf32>, vector<2x128xf32> -> vector<2x128xf32>
    %629 = arith.addf %625, %628 : vector<2x128xf32>
    %c0_352 = arith.constant 0 : index
    %c0_353 = arith.constant 0 : index
    %630 = vector.load %arg6[%c0_352, %c0_353] : memref<1x128xf32, #tpu.memory_space<vmem>>, vector<1x128xf32>
    %631 = vector.broadcast %630 : vector<1x128xf32> to vector<2x128xf32>
    %632 = arith.addf %629, %631 : vector<2x128xf32>
    %c0_354 = arith.constant 0 : index
    %c0_355 = arith.constant 0 : index
    %633 = vector.load %arg3[%c0_354, %c0_355] : memref<16x128xf32, #tpu.memory_space<vmem>>, vector<16x128xf32>
    %cst_356 = arith.constant dense<0.000000e+00> : vector<2x128xf32>
    %634 = tpu.matmul %623, %633, %cst_356 {dimension_numbers = #tpu.dot_dimension_numbers<[1], [0], [0], [1], [0, 0, 1, 1], [], []>} : vector<2x16xf32>, vector<16x128xf32>, vector<2x128xf32> -> vector<2x128xf32>
    %c0_357 = arith.constant 0 : index
    %c0_358 = arith.constant 0 : index
    %635 = vector.load %arg11[%c0_357, %c0_358] : memref<2x32xf32, #tpu.memory_space<vmem>>, vector<2x32xf32>
    %c0_359 = arith.constant 0 : index
    %c0_360 = arith.constant 0 : index
    %636 = vector.load %arg5[%c0_359, %c0_360] : memref<32x128xf32, #tpu.memory_space<vmem>>, vector<32x128xf32>
    %cst_361 = arith.constant dense<0.000000e+00> : vector<2x128xf32>
    %637 = tpu.matmul %635, %636, %cst_361 {dimension_numbers = #tpu.dot_dimension_numbers<[1], [0], [0], [1], [0, 0, 1, 1], [], []>} : vector<2x32xf32>, vector<32x128xf32>, vector<2x128xf32> -> vector<2x128xf32>
    %638 = arith.addf %634, %637 : vector<2x128xf32>
    %c0_362 = arith.constant 0 : index
    %c0_363 = arith.constant 0 : index
    %639 = vector.load %arg7[%c0_362, %c0_363] : memref<1x128xf32, #tpu.memory_space<vmem>>, vector<1x128xf32>
    %640 = vector.broadcast %639 : vector<1x128xf32> to vector<2x128xf32>
    %641 = arith.addf %638, %640 : vector<2x128xf32>
    %c0_364 = arith.constant 0 : index
    %c0_365 = arith.constant 0 : index
    %642 = vector.load %arg12[%c0_364, %c0_365] : memref<2x32xf32, #tpu.memory_space<vmem>>, vector<2x32xf32>
    %643 = vector.extract_strided_slice %632 {offsets = [0, 0], sizes = [2, 32], strides = [1, 1]} : vector<2x128xf32> to vector<2x32xf32>
    %644 = arith.negf %643 : vector<2x32xf32>
    %645 = math.exp %644 : vector<2x32xf32>
    %cst_366 = arith.constant 1.000000e+00 : f32
    %646 = vector.broadcast %cst_366 : f32 to vector<2x32xf32>
    %647 = arith.addf %646, %645 : vector<2x32xf32>
    %648 = arith.divf %646, %647 : vector<2x32xf32>
    %649 = vector.extract_strided_slice %632 {offsets = [0, 32], sizes = [2, 32], strides = [1, 1]} : vector<2x128xf32> to vector<2x32xf32>
    %650 = arith.negf %649 : vector<2x32xf32>
    %651 = math.exp %650 : vector<2x32xf32>
    %cst_367 = arith.constant 1.000000e+00 : f32
    %652 = vector.broadcast %cst_367 : f32 to vector<2x32xf32>
    %653 = arith.addf %652, %651 : vector<2x32xf32>
    %654 = arith.divf %652, %653 : vector<2x32xf32>
    %655 = vector.extract_strided_slice %632 {offsets = [0, 64], sizes = [2, 32], strides = [1, 1]} : vector<2x128xf32> to vector<2x32xf32>
    %656 = math.tanh %655 : vector<2x32xf32>
    %657 = vector.extract_strided_slice %632 {offsets = [0, 96], sizes = [2, 32], strides = [1, 1]} : vector<2x128xf32> to vector<2x32xf32>
    %658 = arith.negf %657 : vector<2x32xf32>
    %659 = math.exp %658 : vector<2x32xf32>
    %cst_368 = arith.constant 1.000000e+00 : f32
    %660 = vector.broadcast %cst_368 : f32 to vector<2x32xf32>
    %661 = arith.addf %660, %659 : vector<2x32xf32>
    %662 = arith.divf %660, %661 : vector<2x32xf32>
    %663 = arith.mulf %654, %642 : vector<2x32xf32>
    %664 = arith.mulf %648, %656 : vector<2x32xf32>
    %665 = arith.addf %663, %664 : vector<2x32xf32>
    %666 = math.tanh %665 : vector<2x32xf32>
    %667 = arith.mulf %662, %666 : vector<2x32xf32>
    %c0_369 = arith.constant 0 : index
    %c0_370 = arith.constant 0 : index
    %668 = vector.load %arg13[%c0_369, %c0_370] : memref<2x32xf32, #tpu.memory_space<vmem>>, vector<2x32xf32>
    %669 = vector.extract_strided_slice %641 {offsets = [0, 0], sizes = [2, 32], strides = [1, 1]} : vector<2x128xf32> to vector<2x32xf32>
    %670 = arith.negf %669 : vector<2x32xf32>
    %671 = math.exp %670 : vector<2x32xf32>
    %cst_371 = arith.constant 1.000000e+00 : f32
    %672 = vector.broadcast %cst_371 : f32 to vector<2x32xf32>
    %673 = arith.addf %672, %671 : vector<2x32xf32>
    %674 = arith.divf %672, %673 : vector<2x32xf32>
    %675 = vector.extract_strided_slice %641 {offsets = [0, 32], sizes = [2, 32], strides = [1, 1]} : vector<2x128xf32> to vector<2x32xf32>
    %676 = arith.negf %675 : vector<2x32xf32>
    %677 = math.exp %676 : vector<2x32xf32>
    %cst_372 = arith.constant 1.000000e+00 : f32
    %678 = vector.broadcast %cst_372 : f32 to vector<2x32xf32>
    %679 = arith.addf %678, %677 : vector<2x32xf32>
    %680 = arith.divf %678, %679 : vector<2x32xf32>
    %681 = vector.extract_strided_slice %641 {offsets = [0, 64], sizes = [2, 32], strides = [1, 1]} : vector<2x128xf32> to vector<2x32xf32>
    %682 = math.tanh %681 : vector<2x32xf32>
    %683 = vector.extract_strided_slice %641 {offsets = [0, 96], sizes = [2, 32], strides = [1, 1]} : vector<2x128xf32> to vector<2x32xf32>
    %684 = arith.negf %683 : vector<2x32xf32>
    %685 = math.exp %684 : vector<2x32xf32>
    %cst_373 = arith.constant 1.000000e+00 : f32
    %686 = vector.broadcast %cst_373 : f32 to vector<2x32xf32>
    %687 = arith.addf %686, %685 : vector<2x32xf32>
    %688 = arith.divf %686, %687 : vector<2x32xf32>
    %689 = arith.mulf %680, %668 : vector<2x32xf32>
    %690 = arith.mulf %674, %682 : vector<2x32xf32>
    %691 = arith.addf %689, %690 : vector<2x32xf32>
    %692 = math.tanh %691 : vector<2x32xf32>
    %693 = arith.mulf %688, %692 : vector<2x32xf32>
    %c0_374 = arith.constant 0 : index
    %c0_375 = arith.constant 0 : index
    %694 = vector.load %arg10[%c0_374, %c0_375] : memref<2x32xf32, #tpu.memory_space<vmem>>, vector<2x32xf32>
    tpu.vector_store %arg10[%c0_374, %c0_375], %667 {strides = array<i32>} : memref<2x32xf32, #tpu.memory_space<vmem>>, vector<2x32xf32>,
    %c0_376 = arith.constant 0 : index
    %c0_377 = arith.constant 0 : index
    %695 = vector.load %arg11[%c0_376, %c0_377] : memref<2x32xf32, #tpu.memory_space<vmem>>, vector<2x32xf32>
    tpu.vector_store %arg11[%c0_376, %c0_377], %693 {strides = array<i32>} : memref<2x32xf32, #tpu.memory_space<vmem>>, vector<2x32xf32>,
    %c0_378 = arith.constant 0 : index
    %c0_379 = arith.constant 0 : index
    %696 = vector.load %arg12[%c0_378, %c0_379] : memref<2x32xf32, #tpu.memory_space<vmem>>, vector<2x32xf32>
    tpu.vector_store %arg12[%c0_378, %c0_379], %665 {strides = array<i32>} : memref<2x32xf32, #tpu.memory_space<vmem>>, vector<2x32xf32>,
    %c0_380 = arith.constant 0 : index
    %c0_381 = arith.constant 0 : index
    %697 = vector.load %arg13[%c0_380, %c0_381] : memref<2x32xf32, #tpu.memory_space<vmem>>, vector<2x32xf32>
    tpu.vector_store %arg13[%c0_380, %c0_381], %691 {strides = array<i32>} : memref<2x32xf32, #tpu.memory_space<vmem>>, vector<2x32xf32>,
    %698 = vector.shape_cast %667 : vector<2x32xf32> to vector<1x2x32xf32>
    %699 = arith.index_cast %c7_i32_338 : i32 to index
    %c0_382 = arith.constant 0 : index
    %c0_383 = arith.constant 0 : index
    %700 = vector.load %arg8[%699, %c0_382, %c0_383] : memref<8x2x32xf32, #tpu.memory_space<vmem>>, vector<1x2x32xf32>
    tpu.vector_store %arg8[%699, %c0_382, %c0_383], %698 {strides = array<i32>} : memref<8x2x32xf32, #tpu.memory_space<vmem>>, vector<1x2x32xf32>,
    %701 = vector.shape_cast %693 : vector<2x32xf32> to vector<1x2x32xf32>
    %702 = arith.index_cast %617 : i32 to index
    %c0_384 = arith.constant 0 : index
    %c0_385 = arith.constant 0 : index
    %703 = vector.load %arg9[%702, %c0_384, %c0_385] : memref<8x2x32xf32, #tpu.memory_space<vmem>>, vector<1x2x32xf32>
    tpu.vector_store %arg9[%702, %c0_384, %c0_385], %701 {strides = array<i32>} : memref<8x2x32xf32, #tpu.memory_space<vmem>>, vector<1x2x32xf32>,
    %c8_i32 = arith.constant 8 : i32
    return
  }
  func.func @transform_0(%arg0: i32) -> (i32, i32, i32) {
    %c0_i32 = arith.constant 0 : i32
    %c0_i32_0 = arith.constant 0 : i32
    %c0_i32_1 = arith.constant 0 : i32
    return %c0_i32, %arg0, %c0_i32_0 : i32, i32, i32
  }
  func.func @transform_1(%arg0: i32) -> (i32, i32) {
    %c0_i32 = arith.constant 0 : i32
    %c0_i32_0 = arith.constant 0 : i32
    %c0_i32_1 = arith.constant 0 : i32
    return %c0_i32, %c0_i32_0 : i32, i32
  }
  func.func @transform_2(%arg0: i32) -> (i32, i32) {
    %c0_i32 = arith.constant 0 : i32
    %c0_i32_0 = arith.constant 0 : i32
    %c0_i32_1 = arith.constant 0 : i32
    return %c0_i32, %c0_i32_0 : i32, i32
  }
  func.func @transform_3(%arg0: i32) -> (i32, i32) {
    %c0_i32 = arith.constant 0 : i32
    %c0_i32_0 = arith.constant 0 : i32
    %c0_i32_1 = arith.constant 0 : i32
    return %c0_i32, %c0_i32_0 : i32, i32
  }
  func.func @transform_4(%arg0: i32) -> (i32, i32) {
    %c0_i32 = arith.constant 0 : i32
    %c0_i32_0 = arith.constant 0 : i32
    %c0_i32_1 = arith.constant 0 : i32
    return %c0_i32, %c0_i32_0 : i32, i32
  }
  func.func @transform_5(%arg0: i32) -> (i32, i32) {
    %c0_i32 = arith.constant 0 : i32
    %c0_i32_0 = arith.constant 0 : i32
    %c0_i32_1 = arith.constant 0 : i32
    return %c0_i32, %c0_i32_0 : i32, i32
  }
  func.func @transform_6(%arg0: i32) -> (i32, i32) {
    %c0_i32 = arith.constant 0 : i32
    %c0_i32_0 = arith.constant 0 : i32
    %c0_i32_1 = arith.constant 0 : i32
    return %c0_i32, %c0_i32_0 : i32, i32
  }
  func.func @transform_7(%arg0: i32) -> (i32, i32, i32) {
    %c0_i32 = arith.constant 0 : i32
    %c0_i32_0 = arith.constant 0 : i32
    %c0_i32_1 = arith.constant 0 : i32
    return %c0_i32, %arg0, %c0_i32_0 : i32, i32, i32
  }
  func.func @transform_8(%arg0: i32) -> (i32, i32, i32) {
    %c0_i32 = arith.constant 0 : i32
    %c0_i32_0 = arith.constant 0 : i32
    %c0_i32_1 = arith.constant 0 : i32
    return %c0_i32, %arg0, %c0_i32_0 : i32, i32, i32
  }
}

</mosaic_0001>

<llo_original>
// kernel: _lambda_.3
$region0: #{_lambda_.3}
  #allocation0 [shape = 'u32[]', space=smem, size = 0x4, offset = 0x4, fixed_abs, tag = 'smem constant byte address 0x4 - core index']
  #allocation1 [shape = 'u32[72,128]{1,0:T(1,128)}', space=vmem, size = 0x9000, scoped, tag = 'internal scratch']
  %s0 = inlined_call_operand.vmem [shape: f32[16,32], index: 0, kind: input, shape index: {}]
  %s1 = inlined_call_operand.vmem [shape: f32[16,32], index: 1, kind: input, shape index: {}]
  %s2 = inlined_call_operand.hbm [shape: f32[32,128], index: 2, kind: input, shape index: {}]
  %s3 = inlined_call_operand.hbm [shape: f32[32,128], index: 3, kind: input, shape index: {}]
  %s4 = inlined_call_operand.vmem [shape: f32[1,128], index: 4, kind: input, shape index: {}]
  %s5 = inlined_call_operand.hbm [shape: f32[16,128], index: 5, kind: output, shape index: {}]
  %s6 = sld [smem:[#allocation0]]
  $region38: #{_lambda_.3} parent=0
    _
  %s8 = ssub.s32 1, %s6
  %s9 = scalar_select 0, %s8, %s6
  $region1: #{_lambda_.3} parent=0
    #allocation2 [shape = 'u8[16384]{0}', space=vmem, size = 0x4000, scoped, tag = 'input window, operand 2, single buffered']
    #allocation3 [shape = 's32[1]{0}', space=sflag, size = 0x4, scoped, tag = 'scoped memory for _lambda_.3']
    #allocation4 [shape = 's32[1]{0}', space=sflag, size = 0x4, scoped, tag = 'scoped memory for _lambda_.3']
    #allocation5 [shape = 'u8[16384]{0}', space=vmem, size = 0x4000, scoped, tag = 'input window, operand 3, single buffered']
    #allocation6 [shape = 's32[1]{0}', space=sflag, size = 0x4, scoped, tag = 'scoped memory for _lambda_.3']
    #allocation7 [shape = 'u8[8192]{0}', space=vmem, size = 0x2000, scoped, tag = 'output window, operand 0, single buffered']
    %10 = vsyncpa [#allocation3], 0
    %11 = vsyncpa [#allocation6], 0
    %12 = vsyncpa [#allocation4], 0
    // Predicated region
    $region2: #{_lambda_.3} parent=1 // pred_check
      _
    $region3: #{_lambda_.3} parent=1 // pred_check_branch
      %14 = sbr.rel (0) target = $region5
    $region4: #{_lambda_.3} parent=1 // pred_region
      _
    $region5: #{_lambda_.3} parent=1 // pred_fallthru
      _
    // Predicated region
    $region6: #{_lambda_.3} parent=1 // pred_check
      _
    $region7: #{_lambda_.3} parent=1 // pred_check_branch
      %16 = sbr.rel (0) target = $region9
    $region8: #{_lambda_.3} parent=1 // pred_region
      _
    $region9: #{_lambda_.3} parent=1 // pred_fallthru
      _
    // Predicated region
    $region10: #{_lambda_.3} parent=1 // pred_check
      _
    $region11: #{_lambda_.3} parent=1 // pred_check_branch
      %18 = sbr.rel (0) target = $region13
    $region12: #{_lambda_.3} parent=1 // pred_region
      %20 = vsyncadd [#allocation3], 0
      %s21 = sshll.u32 %s2, 4
      %s22 = int_to_ptr.hbm [resolvable:$true] %s21
      %s23 = sshll.u32 [#allocation2], 4
      %s24 = int_to_ptr.vmem [resolvable:$true] %s23
      %29 = dma.hbm_to_vmem [thread:$0]  %s22, 512, %s24, [#allocation3], 128, 128, 8
    $region13: #{_lambda_.3} parent=1 // pred_fallthru
      _
    // Predicated region
    $region14: #{_lambda_.3} parent=1 // pred_check
      _
    $region15: #{_lambda_.3} parent=1 // pred_check_branch
      %31 = sbr.rel (0) target = $region17
    $region16: #{_lambda_.3} parent=1 // pred_region
      %33 = vsyncadd [#allocation6], 0
      %s34 = sshll.u32 %s3, 4
      %s35 = int_to_ptr.hbm [resolvable:$true] %s34
      %s36 = sshll.u32 [#allocation5], 4
      %s37 = int_to_ptr.vmem [resolvable:$true] %s36
      %42 = dma.hbm_to_vmem [thread:$0]  %s35, 512, %s37, [#allocation6], 128, 128, 8
    $region17: #{_lambda_.3} parent=1 // pred_fallthru
      _
    // Predicated region
    $region18: #{_lambda_.3} parent=1 // pred_check
      _
    $region19: #{_lambda_.3} parent=1 // pred_check_branch
      %44 = sbr.rel (0) target = $region21
    $region20: #{_lambda_.3} parent=1 // pred_region
      _
    $region21: #{_lambda_.3} parent=1 // pred_fallthru
      _
    // Predicated region
    $region22: #{_lambda_.3} parent=1 // pred_check
      _
    $region23: #{_lambda_.3} parent=1 // pred_check_branch
      %46 = sbr.rel (0) target = $region25
    $region24: #{_lambda_.3} parent=1 // pred_region
      %48 = dma.done [#allocation3], 512
    $region25: #{_lambda_.3} parent=1 // pred_fallthru
      _
    // Predicated region
    $region26: #{_lambda_.3} parent=1 // pred_check
      _
    $region27: #{_lambda_.3} parent=1 // pred_check_branch
      %50 = sbr.rel (0) target = $region29
    $region28: #{_lambda_.3} parent=1 // pred_region
      %52 = dma.done [#allocation6], 512
    $region29: #{_lambda_.3} parent=1 // pred_fallthru
      _
    %v53 = vld [vmem:[%s0] sm:$0xff]
    %v54 = vld [vmem:[%s0 + $0x8] sm:$0xff]
    %v55 = vld [vmem:[#allocation2] sm:$0xff]
    %v56 = vld [vmem:[#allocation2 + $0x8] sm:$0xff]
    %v57 = vld [vmem:[#allocation2 + $0x10] sm:$0xff]
    %v58 = vld [vmem:[#allocation2 + $0x18] sm:$0xff]
    %v59 = vld [vmem:[%s1] sm:$0xff]
    %v60 = vld [vmem:[%s1 + $0x8] sm:$0xff]
    %v61 = vld [vmem:[#allocation5] sm:$0xff]
    %v62 = vld [vmem:[#allocation5 + $0x8] sm:$0xff]
    %v63 = vld [vmem:[#allocation5 + $0x10] sm:$0xff]
    %v64 = vld [vmem:[#allocation5 + $0x18] sm:$0xff]
    %vm65 = vcmask 261120
    %v67 = vsel %vm65, %v59, 0
    %v70 = vsel %vm65, %v60, 0
    %72 = vmatpush.msra.mxu0 0.0
    %73 = vmatpush.msra.mxu0 0.0
    %74 = vmatpush.msra.mxu0 0.0
    %75 = vmatpush.msra.mxu0 0.0
    %76 = vmatpush.msra.mxu0 0.0
    %77 = vmatpush.msra.mxu0 0.0
    %78 = vmatpush.msra.mxu0 0.0
    %79 = vmatpush.msra.mxu0 0.0
    %80 = vmatpush.msra.mxu0 0.0
    %81 = vmatpush.msra.mxu0 0.0
    %82 = vmatpush.msra.mxu0 0.0
    %83 = vmatpush.msra.mxu0 0.0
    %84 = vmatpush.msra.mxu0 %v64
    %85 = vmatpush.msra.mxu0 %v63
    %86 = vmatpush.msra.mxu0 %v62
    %87 = vmatpush.msra.mxu0 %v61
    %88 = vmatmul.f32.gmra.mxu0 %v67
    %v89 = vpop.f32.mrf.mxu0
    %v90 = vadd.f32 0.0, %v89
    %91 = vmatmul.f32.gmra.mxu0 %v70
    %v92 = vpop.f32.mrf.mxu0
    %v93 = vadd.f32 0.0, %v92
    %94 = vdwg.mxu0
    %v96 = vsel %vm65, %v53, 0
    %v99 = vsel %vm65, %v54, 0
    %101 = vmatpush.msra.mxu0 0.0
    %102 = vmatpush.msra.mxu0 0.0
    %103 = vmatpush.msra.mxu0 0.0
    %104 = vmatpush.msra.mxu0 0.0
    %105 = vmatpush.msra.mxu0 0.0
    %106 = vmatpush.msra.mxu0 0.0
    %107 = vmatpush.msra.mxu0 0.0
    %108 = vmatpush.msra.mxu0 0.0
    %109 = vmatpush.msra.mxu0 0.0
    %110 = vmatpush.msra.mxu0 0.0
    %111 = vmatpush.msra.mxu0 0.0
    %112 = vmatpush.msra.mxu0 0.0
    %113 = vmatpush.msra.mxu0 %v58
    %114 = vmatpush.msra.mxu0 %v57
    %115 = vmatpush.msra.mxu0 %v56
    %116 = vmatpush.msra.mxu0 %v55
    %117 = vmatmul.f32.gmra.mxu0 %v96
    %v118 = vpop.f32.mrf.mxu0
    %v119 = vadd.f32 %v90, %v118
    %120 = vmatmul.f32.gmra.mxu0 %v99
    %v121 = vpop.f32.mrf.mxu0
    %v122 = vadd.f32 %v93, %v121
    %123 = vdwg.mxu0
    %v124 = vld [vmem:[%s4] sm:$0x1]
    %v126 = vperm.slane %v124, 0
    %v128 = vadd.f32 %v119, %v126
    %v129 = vadd.f32 %v122, %v126
    %130 = vst [vmem:[#allocation7] sm:$0xff] %v128
    %131 = vst [vmem:[#allocation7 + $0x8] sm:$0xff] %v129
    // Predicated region
    $region30: #{_lambda_.3} parent=1 // pred_check
      _
    $region31: #{_lambda_.3} parent=1 // pred_check_branch
      %133 = sbr.rel (0) target = $region33
    $region32: #{_lambda_.3} parent=1 // pred_region
      %135 = vsyncadd [#allocation4], 0
      %s136 = sshll.u32 [#allocation7], 4
      %s137 = int_to_ptr.vmem [resolvable:$true] %s136
      %s138 = sshll.u32 %s5, 4
      %s139 = int_to_ptr.hbm [resolvable:$true] %s138
      %144 = dma.vmem_to_hbm [thread:$0]  %s137, 256, %s139, [#allocation4], 128, 128, 8
    $region33: #{_lambda_.3} parent=1 // pred_fallthru
      _
    // Predicated region
    $region34: #{_lambda_.3} parent=1 // pred_check
      _
    $region35: #{_lambda_.3} parent=1 // pred_check_branch
      %146 = sbr.rel (0) target = $region37
    $region36: #{_lambda_.3} parent=1 // pred_region
      %148 = dma.done [#allocation4], 256
    $region37: #{_lambda_.3} parent=1 // pred_fallthru
      _
    %149 = vsyncpa [#allocation3], 1
    %150 = vsyncpa [#allocation6], 1
    %151 = vsyncpa [#allocation4], 1

// kernel: _lambda_.2
$region0: #{_lambda_.2}
  #allocation0 [shape = 'u32[]', space=smem, size = 0x4, offset = 0x4, fixed_abs, tag = 'smem constant byte address 0x4 - core index']
  #allocation1 [shape = 'u32[72,128]{1,0:T(1,128)}', space=vmem, size = 0x9000, scoped, tag = 'internal scratch']
  #allocation2 [shape = 'f32[2,32]{1,0:T(2,128)}', space=vmem, size = 0x400, scoped, tag = 'scratch operand']
  #allocation3 [shape = 'f32[2,32]{1,0:T(2,128)}', space=vmem, size = 0x400, scoped, tag = 'scratch operand']
  #allocation4 [shape = 'f32[2,32]{1,0:T(2,128)}', space=vmem, size = 0x400, scoped, tag = 'scratch operand']
  #allocation5 [shape = 'f32[2,32]{1,0:T(2,128)}', space=vmem, size = 0x400, scoped, tag = 'scratch operand']
  %s0 = inlined_call_operand.hbm [shape: f32[8,2,16], index: 0, kind: input, shape index: {}]
  %s1 = inlined_call_operand.hbm [shape: f32[16,128], index: 1, kind: input, shape index: {}]
  %s2 = inlined_call_operand.hbm [shape: f32[16,128], index: 2, kind: input, shape index: {}]
  %s3 = inlined_call_operand.hbm [shape: f32[32,128], index: 3, kind: input, shape index: {}]
  %s4 = inlined_call_operand.hbm [shape: f32[32,128], index: 4, kind: input, shape index: {}]
  %s5 = inlined_call_operand.vmem [shape: f32[1,128], index: 5, kind: input, shape index: {}]
  %s6 = inlined_call_operand.hbm [shape: f32[1,128], index: 6, kind: input, shape index: {}]
  %s7 = inlined_call_operand.vmem [shape: f32[8,2,32], index: 7, kind: output, shape index: {0}]
  %s8 = inlined_call_operand.vmem [shape: f32[8,2,32], index: 8, kind: output, shape index: {1}]
  %9 = xla_tuple %s7, %s8
  %s10 = sld [smem:[#allocation0]]
  $region70: #{_lambda_.2} parent=0
    _
  %s12 = ssub.s32 1, %s10
  %s13 = scalar_select 0, %s12, %s10
  $region1: #{_lambda_.2} parent=0
    #allocation6 [shape = 'u8[8192]{0}', space=vmem, size = 0x2000, scoped, tag = 'input window, operand 0, single buffered']
    #allocation7 [shape = 's32[1]{0}', space=sflag, size = 0x4, scoped, tag = 'scoped memory for _lambda_.2']
    #allocation8 [shape = 'u8[8192]{0}', space=vmem, size = 0x2000, scoped, tag = 'input window, operand 1, single buffered']
    #allocation9 [shape = 's32[1]{0}', space=sflag, size = 0x4, scoped, tag = 'scoped memory for _lambda_.2']
    #allocation10 [shape = 'u8[8192]{0}', space=vmem, size = 0x2000, scoped, tag = 'input window, operand 2, single buffered']
    #allocation11 [shape = 'u8[16384]{0}', space=vmem, size = 0x4000, scoped, tag = 'input window, operand 3, single buffered']
    #allocation12 [shape = 's32[1]{0}', space=sflag, size = 0x4, scoped, tag = 'scoped memory for _lambda_.2']
    #allocation13 [shape = 'u8[16384]{0}', space=vmem, size = 0x4000, scoped, tag = 'input window, operand 4, single buffered']
    #allocation14 [shape = 'u8[512]{0}', space=vmem, size = 0x400, scoped, tag = 'input window, operand 6, single buffered']
    #allocation15 [shape = 's32[1]{0}', space=sflag, size = 0x4, scoped, tag = 'scoped memory for _lambda_.2']
    %14 = vsyncpa [#allocation7], 0
    %15 = vsyncpa [#allocation9], 0
    %16 = vsyncpa [#allocation12], 0
    %17 = vsyncpa [#allocation15], 0
    // Predicated region
    $region2: #{_lambda_.2} parent=1 // pred_check
      _
    $region3: #{_lambda_.2} parent=1 // pred_check_branch
      %19 = sbr.rel (0) target = $region5
    $region4: #{_lambda_.2} parent=1 // pred_region
      %21 = vsyncadd [#allocation7], 0
      %s22 = sshll.u32 %s0, 4
      %s23 = int_to_ptr.hbm [resolvable:$true] %s22
      %s24 = sshll.u32 [#allocation6], 4
      %s25 = int_to_ptr.vmem [resolvable:$true] %s24
      %30 = dma.hbm_to_vmem [thread:$0]  %s23, 256, %s25, [#allocation7], 32, 32, 2
    $region5: #{_lambda_.2} parent=1 // pred_fallthru
      _
    // Predicated region
    $region6: #{_lambda_.2} parent=1 // pred_check
      _
    $region7: #{_lambda_.2} parent=1 // pred_check_branch
      %32 = sbr.rel (0) target = $region9
    $region8: #{_lambda_.2} parent=1 // pred_region
      %34 = vsyncadd [#allocation9], 0
      %s35 = sshll.u32 %s1, 4
      %s36 = int_to_ptr.hbm [resolvable:$true] %s35
      %s37 = sshll.u32 [#allocation8], 4
      %s38 = int_to_ptr.vmem [resolvable:$true] %s37
      %43 = dma.hbm_to_vmem [thread:$0]  %s36, 256, %s38, [#allocation9], 128, 128, 8
    $region9: #{_lambda_.2} parent=1 // pred_fallthru
      _
    // Predicated region
    $region10: #{_lambda_.2} parent=1 // pred_check
      _
    $region11: #{_lambda_.2} parent=1 // pred_check_branch
      %45 = sbr.rel (0) target = $region13
    $region12: #{_lambda_.2} parent=1 // pred_region
      %47 = vsyncadd [#allocation9], 0
      %s48 = sshll.u32 %s2, 4
      %s49 = int_to_ptr.hbm [resolvable:$true] %s48
      %s50 = sshll.u32 [#allocation10], 4
      %s51 = int_to_ptr.vmem [resolvable:$true] %s50
      %56 = dma.hbm_to_vmem [thread:$0]  %s49, 256, %s51, [#allocation9], 128, 128, 8
    $region13: #{_lambda_.2} parent=1 // pred_fallthru
      _
    // Predicated region
    $region14: #{_lambda_.2} parent=1 // pred_check
      _
    $region15: #{_lambda_.2} parent=1 // pred_check_branch
      %58 = sbr.rel (0) target = $region17
    $region16: #{_lambda_.2} parent=1 // pred_region
      %60 = vsyncadd [#allocation12], 0
      %s61 = sshll.u32 %s3, 4
      %s62 = int_to_ptr.hbm [resolvable:$true] %s61
      %s63 = sshll.u32 [#allocation11], 4
      %s64 = int_to_ptr.vmem [resolvable:$true] %s63
      %69 = dma.hbm_to_vmem [thread:$0]  %s62, 512, %s64, [#allocation12], 128, 128, 8
    $region17: #{_lambda_.2} parent=1 // pred_fallthru
      _
    // Predicated region
    $region18: #{_lambda_.2} parent=1 // pred_check
      _
    $region19: #{_lambda_.2} parent=1 // pred_check_branch
      %71 = sbr.rel (0) target = $region21
    $region20: #{_lambda_.2} parent=1 // pred_region
      %73 = vsyncadd [#allocation12], 0
      %s74 = sshll.u32 %s4, 4
      %s75 = int_to_ptr.hbm [resolvable:$true] %s74
      %s76 = sshll.u32 [#allocation13], 4
      %s77 = int_to_ptr.vmem [resolvable:$true] %s76
      %82 = dma.hbm_to_vmem [thread:$0]  %s75, 512, %s77, [#allocation12], 128, 128, 8
    $region21: #{_lambda_.2} parent=1 // pred_fallthru
      _
    // Predicated region
    $region22: #{_lambda_.2} parent=1 // pred_check
      _
    $region23: #{_lambda_.2} parent=1 // pred_check_branch
      %84 = sbr.rel (0) target = $region25
    $region24: #{_lambda_.2} parent=1 // pred_region
      _
    $region25: #{_lambda_.2} parent=1 // pred_fallthru
      _
    // Predicated region
    $region26: #{_lambda_.2} parent=1 // pred_check
      _
    $region27: #{_lambda_.2} parent=1 // pred_check_branch
      %86 = sbr.rel (0) target = $region29
    $region28: #{_lambda_.2} parent=1 // pred_region
      %88 = vsyncadd [#allocation15], 0
      %s90 = sshll.u32 %s6, 4
      %s91 = int_to_ptr.hbm [resolvable:$true] %s90
      %s92 = sshll.u32 [#allocation14], 4
      %s93 = int_to_ptr.vmem [resolvable:$true] %s92
      %95 = dma.hbm_to_vmem [thread:$0]  %s91, 16, %s93, [#allocation15]
    $region29: #{_lambda_.2} parent=1 // pred_fallthru
      _
    // Predicated region
    $region30: #{_lambda_.2} parent=1 // pred_check
      _
    $region31: #{_lambda_.2} parent=1 // pred_check_branch
      %97 = sbr.rel (0) target = $region33
    $region32: #{_lambda_.2} parent=1 // pred_region
      %99 = dma.done [#allocation7], 256
    $region33: #{_lambda_.2} parent=1 // pred_fallthru
      _
    // Predicated region
    $region34: #{_lambda_.2} parent=1 // pred_check
      _
    $region35: #{_lambda_.2} parent=1 // pred_check_branch
      %101 = sbr.rel (0) target = $region37
    $region36: #{_lambda_.2} parent=1 // pred_region
      %103 = dma.done [#allocation9], 256
    $region37: #{_lambda_.2} parent=1 // pred_fallthru
      _
    // Predicated region
    $region38: #{_lambda_.2} parent=1 // pred_check
      _
    $region39: #{_lambda_.2} parent=1 // pred_check_branch
      %105 = sbr.rel (0) target = $region41
    $region40: #{_lambda_.2} parent=1 // pred_region
      %107 = dma.done [#allocation9], 256
    $region41: #{_lambda_.2} parent=1 // pred_fallthru
      _
    // Predicated region
    $region42: #{_lambda_.2} parent=1 // pred_check
      _
    $region43: #{_lambda_.2} parent=1 // pred_check_branch
      %109 = sbr.rel (0) target = $region45
    $region44: #{_lambda_.2} parent=1 // pred_region
      %111 = dma.done [#allocation12], 512
    $region45: #{_lambda_.2} parent=1 // pred_fallthru
      _
    // Predicated region
    $region46: #{_lambda_.2} parent=1 // pred_check
      _
    $region47: #{_lambda_.2} parent=1 // pred_check_branch
      %113 = sbr.rel (0) target = $region49
    $region48: #{_lambda_.2} parent=1 // pred_region
      %115 = dma.done [#allocation12], 512
    $region49: #{_lambda_.2} parent=1 // pred_fallthru
      _
    // Predicated region
    $region50: #{_lambda_.2} parent=1 // pred_check
      _
    $region51: #{_lambda_.2} parent=1 // pred_check_branch
      %117 = sbr.rel (0) target = $region53
    $region52: #{_lambda_.2} parent=1 // pred_region
      %119 = dma.done [#allocation15], 16
    $region53: #{_lambda_.2} parent=1 // pred_fallthru
      _
    %vm120 = vcmask 254976
    %121 = vst.msk [vmem:[#allocation2] sm:$0x3] %vm120, 0.0
    %122 = vst.msk [vmem:[#allocation3] sm:$0x3] %vm120, 0.0
    %123 = vst.msk [vmem:[#allocation4] sm:$0x3] %vm120, 0.0
    %124 = vst.msk [vmem:[#allocation5] sm:$0x3] %vm120, 0.0
    %v125 = vld [vmem:[#allocation6] sm:$0x3]
    %s126 = scalar_lea.vmem [#allocation6], 14
    %v127 = vld [vmem:[%s126] sm:$0x3]
    %v128 = vld [vmem:[#allocation8] sm:$0xff]
    %v129 = vld [vmem:[#allocation8 + $0x8] sm:$0xff]
    %v130 = vld [vmem:[#allocation2] sm:$0x3]
    %v131 = vld [vmem:[#allocation11] sm:$0xff]
    %v132 = vld [vmem:[#allocation11 + $0x8] sm:$0xff]
    %v133 = vld [vmem:[#allocation11 + $0x10] sm:$0xff]
    %v134 = vld [vmem:[#allocation11 + $0x18] sm:$0xff]
    %vm135 = vcmask 261120
    %v137 = vsel %vm135, %v130, 0
    %139 = vmatpush.msra.mxu0 0.0
    %140 = vmatpush.msra.mxu0 0.0
    %141 = vmatpush.msra.mxu0 0.0
    %142 = vmatpush.msra.mxu0 0.0
    %143 = vmatpush.msra.mxu0 0.0
    %144 = vmatpush.msra.mxu0 0.0
    %145 = vmatpush.msra.mxu0 0.0
    %146 = vmatpush.msra.mxu0 0.0
    %147 = vmatpush.msra.mxu0 0.0
    %148 = vmatpush.msra.mxu0 0.0
    %149 = vmatpush.msra.mxu0 0.0
    %150 = vmatpush.msra.mxu0 0.0
    %151 = vmatpush.msra.mxu0 %v134
    %152 = vmatpush.msra.mxu0 %v133
    %153 = vmatpush.msra.mxu0 %v132
    %154 = vmatpush.msra.mxu0 %v131
    %155 = vmatmul.f32.gmra.mxu0 %v137
    %v156 = vpop.f32.mrf.mxu0
    %v157 = vadd.f32 0.0, %v156
    %158 = vdwg.mxu0
    %vm159 = vcmask 130048
    %v161 = vsel %vm159, %v125, 0
    %163 = vmatpush.msra.mxu0 0.0
    %164 = vmatpush.msra.mxu0 0.0
    %165 = vmatpush.msra.mxu0 0.0
    %166 = vmatpush.msra.mxu0 0.0
    %167 = vmatpush.msra.mxu0 0.0
    %168 = vmatpush.msra.mxu0 0.0
    %169 = vmatpush.msra.mxu0 0.0
    %170 = vmatpush.msra.mxu0 0.0
    %171 = vmatpush.msra.mxu0 0.0
    %172 = vmatpush.msra.mxu0 0.0
    %173 = vmatpush.msra.mxu0 0.0
    %174 = vmatpush.msra.mxu0 0.0
    %175 = vmatpush.msra.mxu0 0.0
    %176 = vmatpush.msra.mxu0 0.0
    %177 = vmatpush.msra.mxu0 %v129
    %178 = vmatpush.msra.mxu0 %v128
    %179 = vmatmul.f32.gmra.mxu0 %v161
    %v180 = vpop.f32.mrf.mxu0
    %v181 = vadd.f32 %v157, %v180
    %182 = vdwg.mxu0
    %v183 = vld [vmem:[%s5] sm:$0x1]
    %v185 = vperm.slane %v183, 0
    %v187 = vadd.f32 %v181, %v185
    %v188 = vld [vmem:[#allocation10] sm:$0xff]
    %v189 = vld [vmem:[#allocation10 + $0x8] sm:$0xff]
    %v190 = vld [vmem:[#allocation3] sm:$0x3]
    %v191 = vld [vmem:[#allocation13] sm:$0xff]
    %v192 = vld [vmem:[#allocation13 + $0x8] sm:$0xff]
    %v193 = vld [vmem:[#allocation13 + $0x10] sm:$0xff]
    %v194 = vld [vmem:[#allocation13 + $0x18] sm:$0xff]
    %v196 = vsel %vm135, %v190, 0
    %198 = vmatpush.msra.mxu0 0.0
    %199 = vmatpush.msra.mxu0 0.0
    %200 = vmatpush.msra.mxu0 0.0
    %201 = vmatpush.msra.mxu0 0.0
    %202 = vmatpush.msra.mxu0 0.0
    %203 = vmatpush.msra.mxu0 0.0
    %204 = vmatpush.msra.mxu0 0.0
    %205 = vmatpush.msra.mxu0 0.0
    %206 = vmatpush.msra.mxu0 0.0
    %207 = vmatpush.msra.mxu0 0.0
    %208 = vmatpush.msra.mxu0 0.0
    %209 = vmatpush.msra.mxu0 0.0
    %210 = vmatpush.msra.mxu0 %v194
    %211 = vmatpush.msra.mxu0 %v193
    %212 = vmatpush.msra.mxu0 %v192
    %213 = vmatpush.msra.mxu0 %v191
    %214 = vmatmul.f32.gmra.mxu0 %v196
    %v215 = vpop.f32.mrf.mxu0
    %v216 = vadd.f32 0.0, %v215
    %217 = vdwg.mxu0
    %v219 = vsel %vm159, %v127, 0
    %221 = vmatpush.msra.mxu0 0.0
    %222 = vmatpush.msra.mxu0 0.0
    %223 = vmatpush.msra.mxu0 0.0
    %224 = vmatpush.msra.mxu0 0.0
    %225 = vmatpush.msra.mxu0 0.0
    %226 = vmatpush.msra.mxu0 0.0
    %227 = vmatpush.msra.mxu0 0.0
    %228 = vmatpush.msra.mxu0 0.0
    %229 = vmatpush.msra.mxu0 0.0
    %230 = vmatpush.msra.mxu0 0.0
    %231 = vmatpush.msra.mxu0 0.0
    %232 = vmatpush.msra.mxu0 0.0
    %233 = vmatpush.msra.mxu0 0.0
    %234 = vmatpush.msra.mxu0 0.0
    %235 = vmatpush.msra.mxu0 %v189
    %236 = vmatpush.msra.mxu0 %v188
    %237 = vmatmul.f32.gmra.mxu0 %v219
    %v238 = vpop.f32.mrf.mxu0
    %v239 = vadd.f32 %v216, %v238
    %240 = vdwg.mxu0
    %v241 = vld [vmem:[#allocation14] sm:$0x1]
    %v243 = vperm.slane %v241, 0
    %v245 = vadd.f32 %v239, %v243
    %v246 = vld [vmem:[#allocation4] sm:$0x3]
    %v247 = vxor.u32 %v187, 2147483648
    %v248 = vmul.f32 %v247, 1.442695
    %v249 = vpow.pop %v248
    %v250 = vadd.f32 %v249, 1.0
    %v251 = vrcp.pop %v250
    %v252 = vmul.f32 %v250, %v251
    %v253 = vsub.f32 1.0, %v252
    %v254 = vmul.f32 %v251, %v253
    %v255 = vadd.f32 %v251, %v254
    %vm256 = vweird.f32 %v250
    %vm257 = vweird.f32 %v251
    %vm258 = vmor %vm256, %vm257
    %v259 = vsel %vm258, %v251, %v255
    %v260 = vand.u32 2147483647, %v250
    %vm261 = vcmp.eq.f32.partialorder %v260, 8.507059e+37
    %v262 = vand.u32 %v250, 2147483648
    %v263 = vor.u32 1.1754944e-38, %v262
    %v264 = vsel %vm261, %v263, %v259
    %v265 = vmul.f32 1.0, %v264
    %v266 = vtanh.pop %v187
    %268 = vrot.lane.b32.xlu0 %v246, 32
    %v269 = vpop.permute.xlu0 %268
    %v271 = vmul.f32 %v265, %v269
    %273 = vrot.lane.b32.xlu0 %v266, 64
    %v274 = vpop.permute.xlu0 %273
    %v276 = vmul.f32 %v265, %v274
    %278 = vrot.lane.b32.xlu0 %v276, 32
    %v279 = vpop.permute.xlu0 %278
    %v281 = vadd.f32 %v271, %v279
    %v282 = vtanh.pop %v281
    %284 = vrot.lane.b32.xlu0 %v282, 64
    %v285 = vpop.permute.xlu0 %284
    %v287 = vmul.f32 %v265, %v285
    %v288 = vld [vmem:[#allocation5] sm:$0x3]
    %v289 = vxor.u32 %v245, 2147483648
    %v290 = vmul.f32 %v289, 1.442695
    %v291 = vpow.pop %v290
    %v292 = vadd.f32 %v291, 1.0
    %v293 = vrcp.pop %v292
    %v294 = vmul.f32 %v292, %v293
    %v295 = vsub.f32 1.0, %v294
    %v296 = vmul.f32 %v293, %v295
    %v297 = vadd.f32 %v293, %v296
    %vm298 = vweird.f32 %v292
    %vm299 = vweird.f32 %v293
    %vm300 = vmor %vm298, %vm299
    %v301 = vsel %vm300, %v293, %v297
    %v302 = vand.u32 2147483647, %v292
    %vm303 = vcmp.eq.f32.partialorder %v302, 8.507059e+37
    %v304 = vand.u32 %v292, 2147483648
    %v305 = vor.u32 1.1754944e-38, %v304
    %v306 = vsel %vm303, %v305, %v301
    %v307 = vmul.f32 1.0, %v306
    %v308 = vtanh.pop %v245
    %310 = vrot.lane.b32.xlu0 %v288, 32
    %v311 = vpop.permute.xlu0 %310
    %v313 = vmul.f32 %v307, %v311
    %315 = vrot.lane.b32.xlu0 %v308, 64
    %v316 = vpop.permute.xlu0 %315
    %v318 = vmul.f32 %v307, %v316
    %320 = vrot.lane.b32.xlu0 %v318, 32
    %v321 = vpop.permute.xlu0 %320
    %v323 = vadd.f32 %v313, %v321
    %v324 = vtanh.pop %v323
    %326 = vrot.lane.b32.xlu0 %v324, 64
    %v327 = vpop.permute.xlu0 %326
    %v329 = vmul.f32 %v307, %v327
    %331 = vrot.lane.b32.xlu0 %v287, 32
    %v332 = vpop.permute.xlu0 %331
    %334 = vst.msk [vmem:[#allocation2] sm:$0x3] %vm120, %v332
    %336 = vrot.lane.b32.xlu0 %v329, 32
    %v337 = vpop.permute.xlu0 %336
    %339 = vst.msk [vmem:[#allocation3] sm:$0x3] %vm120, %v337
    %341 = vrot.lane.b32.xlu0 %v281, 96
    %v342 = vpop.permute.xlu0 %341
    %344 = vst.msk [vmem:[#allocation4] sm:$0x3] %vm120, %v342
    %346 = vrot.lane.b32.xlu0 %v323, 96
    %v347 = vpop.permute.xlu0 %346
    %349 = vst.msk [vmem:[#allocation5] sm:$0x3] %vm120, %v347
    %350 = vst.msk [vmem:[%s7] sm:$0x3] %vm120, %v332
    %s351 = scalar_lea.vmem %s8, 14
    %352 = vst.msk [vmem:[%s351] sm:$0x3] %vm120, %v337
    %s353 = scalar_lea.vmem [#allocation6], 2
    %v354 = vld [vmem:[%s353] sm:$0x3]
    %s355 = scalar_lea.vmem [#allocation6], 12
    %v356 = vld [vmem:[%s355] sm:$0x3]
    %v357 = vld [vmem:[#allocation8] sm:$0xff]
    %v358 = vld [vmem:[#allocation8 + $0x8] sm:$0xff]
    %v359 = vld [vmem:[#allocation2] sm:$0x3]
    %v360 = vld [vmem:[#allocation11] sm:$0xff]
    %v361 = vld [vmem:[#allocation11 + $0x8] sm:$0xff]
    %v362 = vld [vmem:[#allocation11 + $0x10] sm:$0xff]
    %v363 = vld [vmem:[#allocation11 + $0x18] sm:$0xff]
    %v365 = vsel %vm135, %v359, 0
    %367 = vmatpush.msra.mxu0 0.0
    %368 = vmatpush.msra.mxu0 0.0
    %369 = vmatpush.msra.mxu0 0.0
    %370 = vmatpush.msra.mxu0 0.0
    %371 = vmatpush.msra.mxu0 0.0
    %372 = vmatpush.msra.mxu0 0.0
    %373 = vmatpush.msra.mxu0 0.0
    %374 = vmatpush.msra.mxu0 0.0
    %375 = vmatpush.msra.mxu0 0.0
    %376 = vmatpush.msra.mxu0 0.0
    %377 = vmatpush.msra.mxu0 0.0
    %378 = vmatpush.msra.mxu0 0.0
    %379 = vmatpush.msra.mxu0 %v363
    %380 = vmatpush.msra.mxu0 %v362
    %381 = vmatpush.msra.mxu0 %v361
    %382 = vmatpush.msra.mxu0 %v360
    %383 = vmatmul.f32.gmra.mxu0 %v365
    %v384 = vpop.f32.mrf.mxu0
    %v385 = vadd.f32 0.0, %v384
    %386 = vdwg.mxu0
    %v388 = vsel %vm159, %v354, 0
    %390 = vmatpush.msra.mxu0 0.0
    %391 = vmatpush.msra.mxu0 0.0
    %392 = vmatpush.msra.mxu0 0.0
    %393 = vmatpush.msra.mxu0 0.0
    %394 = vmatpush.msra.mxu0 0.0
    %395 = vmatpush.msra.mxu0 0.0
    %396 = vmatpush.msra.mxu0 0.0
    %397 = vmatpush.msra.mxu0 0.0
    %398 = vmatpush.msra.mxu0 0.0
    %399 = vmatpush.msra.mxu0 0.0
    %400 = vmatpush.msra.mxu0 0.0
    %401 = vmatpush.msra.mxu0 0.0
    %402 = vmatpush.msra.mxu0 0.0
    %403 = vmatpush.msra.mxu0 0.0
    %404 = vmatpush.msra.mxu0 %v358
    %405 = vmatpush.msra.mxu0 %v357
    %406 = vmatmul.f32.gmra.mxu0 %v388
    %v407 = vpop.f32.mrf.mxu0
    %v408 = vadd.f32 %v385, %v407
    %409 = vdwg.mxu0
    %v410 = vld [vmem:[%s5] sm:$0x1]
    %v412 = vperm.slane %v410, 0
    %v414 = vadd.f32 %v408, %v412
    %v415 = vld [vmem:[#allocation10] sm:$0xff]
    %v416 = vld [vmem:[#allocation10 + $0x8] sm:$0xff]
    %v417 = vld [vmem:[#allocation3] sm:$0x3]
    %v418 = vld [vmem:[#allocation13] sm:$0xff]
    %v419 = vld [vmem:[#allocation13 + $0x8] sm:$0xff]
    %v420 = vld [vmem:[#allocation13 + $0x10] sm:$0xff]
    %v421 = vld [vmem:[#allocation13 + $0x18] sm:$0xff]
    %v423 = vsel %vm135, %v417, 0
    %425 = vmatpush.msra.mxu0 0.0
    %426 = vmatpush.msra.mxu0 0.0
    %427 = vmatpush.msra.mxu0 0.0
    %428 = vmatpush.msra.mxu0 0.0
    %429 = vmatpush.msra.mxu0 0.0
    %430 = vmatpush.msra.mxu0 0.0
    %431 = vmatpush.msra.mxu0 0.0
    %432 = vmatpush.msra.mxu0 0.0
    %433 = vmatpush.msra.mxu0 0.0
    %434 = vmatpush.msra.mxu0 0.0
    %435 = vmatpush.msra.mxu0 0.0
    %436 = vmatpush.msra.mxu0 0.0
    %437 = vmatpush.msra.mxu0 %v421
    %438 = vmatpush.msra.mxu0 %v420
    %439 = vmatpush.msra.mxu0 %v419
    %440 = vmatpush.msra.mxu0 %v418
    %441 = vmatmul.f32.gmra.mxu0 %v423
    %v442 = vpop.f32.mrf.mxu0
    %v443 = vadd.f32 0.0, %v442
    %444 = vdwg.mxu0
    %v446 = vsel %vm159, %v356, 0
    %448 = vmatpush.msra.mxu0 0.0
    %449 = vmatpush.msra.mxu0 0.0
    %450 = vmatpush.msra.mxu0 0.0
    %451 = vmatpush.msra.mxu0 0.0
    %452 = vmatpush.msra.mxu0 0.0
    %453 = vmatpush.msra.mxu0 0.0
    %454 = vmatpush.msra.mxu0 0.0
    %455 = vmatpush.msra.mxu0 0.0
    %456 = vmatpush.msra.mxu0 0.0
    %457 = vmatpush.msra.mxu0 0.0
    %458 = vmatpush.msra.mxu0 0.0
    %459 = vmatpush.msra.mxu0 0.0
    %460 = vmatpush.msra.mxu0 0.0
    %461 = vmatpush.msra.mxu0 0.0
    %462 = vmatpush.msra.mxu0 %v416
    %463 = vmatpush.msra.mxu0 %v415
    %464 = vmatmul.f32.gmra.mxu0 %v446
    %v465 = vpop.f32.mrf.mxu0
    %v466 = vadd.f32 %v443, %v465
    %467 = vdwg.mxu0
    %v468 = vld [vmem:[#allocation14] sm:$0x1]
    %v470 = vperm.slane %v468, 0
    %v472 = vadd.f32 %v466, %v470
    %v473 = vld [vmem:[#allocation4] sm:$0x3]
    %v474 = vxor.u32 %v414, 2147483648
    %v475 = vmul.f32 %v474, 1.442695
    %v476 = vpow.pop %v475
    %v477 = vadd.f32 %v476, 1.0
    %v478 = vrcp.pop %v477
    %v479 = vmul.f32 %v477, %v478
    %v480 = vsub.f32 1.0, %v479
    %v481 = vmul.f32 %v478, %v480
    %v482 = vadd.f32 %v478, %v481
    %vm483 = vweird.f32 %v477
    %vm484 = vweird.f32 %v478
    %vm485 = vmor %vm483, %vm484
    %v486 = vsel %vm485, %v478, %v482
    %v487 = vand.u32 2147483647, %v477
    %vm488 = vcmp.eq.f32.partialorder %v487, 8.507059e+37
    %v489 = vand.u32 %v477, 2147483648
    %v490 = vor.u32 1.1754944e-38, %v489
    %v491 = vsel %vm488, %v490, %v486
    %v492 = vmul.f32 1.0, %v491
    %v493 = vtanh.pop %v414
    %495 = vrot.lane.b32.xlu0 %v473, 32
    %v496 = vpop.permute.xlu0 %495
    %v498 = vmul.f32 %v492, %v496
    %500 = vrot.lane.b32.xlu0 %v493, 64
    %v501 = vpop.permute.xlu0 %500
    %v503 = vmul.f32 %v492, %v501
    %505 = vrot.lane.b32.xlu0 %v503, 32
    %v506 = vpop.permute.xlu0 %505
    %v508 = vadd.f32 %v498, %v506
    %v509 = vtanh.pop %v508
    %511 = vrot.lane.b32.xlu0 %v509, 64
    %v512 = vpop.permute.xlu0 %511
    %v514 = vmul.f32 %v492, %v512
    %v515 = vld [vmem:[#allocation5] sm:$0x3]
    %v516 = vxor.u32 %v472, 2147483648
    %v517 = vmul.f32 %v516, 1.442695
    %v518 = vpow.pop %v517
    %v519 = vadd.f32 %v518, 1.0
    %v520 = vrcp.pop %v519
    %v521 = vmul.f32 %v519, %v520
    %v522 = vsub.f32 1.0, %v521
    %v523 = vmul.f32 %v520, %v522
    %v524 = vadd.f32 %v520, %v523
    %vm525 = vweird.f32 %v519
    %vm526 = vweird.f32 %v520
    %vm527 = vmor %vm525, %vm526
    %v528 = vsel %vm527, %v520, %v524
    %v529 = vand.u32 2147483647, %v519
    %vm530 = vcmp.eq.f32.partialorder %v529, 8.507059e+37
    %v531 = vand.u32 %v519, 2147483648
    %v532 = vor.u32 1.1754944e-38, %v531
    %v533 = vsel %vm530, %v532, %v528
    %v534 = vmul.f32 1.0, %v533
    %v535 = vtanh.pop %v472
    %537 = vrot.lane.b32.xlu0 %v515, 32
    %v538 = vpop.permute.xlu0 %537
    %v540 = vmul.f32 %v534, %v538
    %542 = vrot.lane.b32.xlu0 %v535, 64
    %v543 = vpop.permute.xlu0 %542
    %v545 = vmul.f32 %v534, %v543
    %547 = vrot.lane.b32.xlu0 %v545, 32
    %v548 = vpop.permute.xlu0 %547
    %v550 = vadd.f32 %v540, %v548
    %v551 = vtanh.pop %v550
    %553 = vrot.lane.b32.xlu0 %v551, 64
    %v554 = vpop.permute.xlu0 %553
    %v556 = vmul.f32 %v534, %v554
    %558 = vrot.lane.b32.xlu0 %v514, 32
    %v559 = vpop.permute.xlu0 %558
    %561 = vst.msk [vmem:[#allocation2] sm:$0x3] %vm120, %v559
    %563 = vrot.lane.b32.xlu0 %v556, 32
    %v564 = vpop.permute.xlu0 %563
    %566 = vst.msk [vmem:[#allocation3] sm:$0x3] %vm120, %v564
    %568 = vrot.lane.b32.xlu0 %v508, 96
    %v569 = vpop.permute.xlu0 %568
    %571 = vst.msk [vmem:[#allocation4] sm:$0x3] %vm120, %v569
    %573 = vrot.lane.b32.xlu0 %v550, 96
    %v574 = vpop.permute.xlu0 %573
    %576 = vst.msk [vmem:[#allocation5] sm:$0x3] %vm120, %v574
    %s577 = scalar_lea.vmem %s7, 2
    %578 = vst.msk [vmem:[%s577] sm:$0x3] %vm120, %v559
    %s579 = scalar_lea.vmem %s8, 12
    %580 = vst.msk [vmem:[%s579] sm:$0x3] %vm120, %v564
    %s581 = scalar_lea.vmem [#allocation6], 4
    %v582 = vld [vmem:[%s581] sm:$0x3]
    %s583 = scalar_lea.vmem [#allocation6], 10
    %v584 = vld [vmem:[%s583] sm:$0x3]
    %v585 = vld [vmem:[#allocation8] sm:$0xff]
    %v586 = vld [vmem:[#allocation8 + $0x8] sm:$0xff]
    %v587 = vld [vmem:[#allocation2] sm:$0x3]
    %v588 = vld [vmem:[#allocation11] sm:$0xff]
    %v589 = vld [vmem:[#allocation11 + $0x8] sm:$0xff]
    %v590 = vld [vmem:[#allocation11 + $0x10] sm:$0xff]
    %v591 = vld [vmem:[#allocation11 + $0x18] sm:$0xff]
    %v593 = vsel %vm135, %v587, 0
    %595 = vmatpush.msra.mxu0 0.0
    %596 = vmatpush.msra.mxu0 0.0
    %597 = vmatpush.msra.mxu0 0.0
    %598 = vmatpush.msra.mxu0 0.0
    %599 = vmatpush.msra.mxu0 0.0
    %600 = vmatpush.msra.mxu0 0.0
    %601 = vmatpush.msra.mxu0 0.0
    %602 = vmatpush.msra.mxu0 0.0
    %603 = vmatpush.msra.mxu0 0.0
    %604 = vmatpush.msra.mxu0 0.0
    %605 = vmatpush.msra.mxu0 0.0
    %606 = vmatpush.msra.mxu0 0.0
    %607 = vmatpush.msra.mxu0 %v591
    %608 = vmatpush.msra.mxu0 %v590
    %609 = vmatpush.msra.mxu0 %v589
    %610 = vmatpush.msra.mxu0 %v588
    %611 = vmatmul.f32.gmra.mxu0 %v593
    %v612 = vpop.f32.mrf.mxu0
    %v613 = vadd.f32 0.0, %v612
    %614 = vdwg.mxu0
    %v616 = vsel %vm159, %v582, 0
    %618 = vmatpush.msra.mxu0 0.0
    %619 = vmatpush.msra.mxu0 0.0
    %620 = vmatpush.msra.mxu0 0.0
    %621 = vmatpush.msra.mxu0 0.0
    %622 = vmatpush.msra.mxu0 0.0
    %623 = vmatpush.msra.mxu0 0.0
    %624 = vmatpush.msra.mxu0 0.0
    %625 = vmatpush.msra.mxu0 0.0
    %626 = vmatpush.msra.mxu0 0.0
    %627 = vmatpush.msra.mxu0 0.0
    %628 = vmatpush.msra.mxu0 0.0
    %629 = vmatpush.msra.mxu0 0.0
    %630 = vmatpush.msra.mxu0 0.0
    %631 = vmatpush.msra.mxu0 0.0
    %632 = vmatpush.msra.mxu0 %v586
    %633 = vmatpush.msra.mxu0 %v585
    %634 = vmatmul.f32.gmra.mxu0 %v616
    %v635 = vpop.f32.mrf.mxu0
    %v636 = vadd.f32 %v613, %v635
    %637 = vdwg.mxu0
    %v638 = vld [vmem:[%s5] sm:$0x1]
    %v640 = vperm.slane %v638, 0
    %v642 = vadd.f32 %v636, %v640
    %v643 = vld [vmem:[#allocation10] sm:$0xff]
    %v644 = vld [vmem:[#allocation10 + $0x8] sm:$0xff]
    %v645 = vld [vmem:[#allocation3] sm:$0x3]
    %v646 = vld [vmem:[#allocation13] sm:$0xff]
    %v647 = vld [vmem:[#allocation13 + $0x8] sm:$0xff]
    %v648 = vld [vmem:[#allocation13 + $0x10] sm:$0xff]
    %v649 = vld [vmem:[#allocation13 + $0x18] sm:$0xff]
    %v651 = vsel %vm135, %v645, 0
    %653 = vmatpush.msra.mxu0 0.0
    %654 = vmatpush.msra.mxu0 0.0
    %655 = vmatpush.msra.mxu0 0.0
    %656 = vmatpush.msra.mxu0 0.0
    %657 = vmatpush.msra.mxu0 0.0
    %658 = vmatpush.msra.mxu0 0.0
    %659 = vmatpush.msra.mxu0 0.0
    %660 = vmatpush.msra.mxu0 0.0
    %661 = vmatpush.msra.mxu0 0.0
    %662 = vmatpush.msra.mxu0 0.0
    %663 = vmatpush.msra.mxu0 0.0
    %664 = vmatpush.msra.mxu0 0.0
    %665 = vmatpush.msra.mxu0 %v649
    %666 = vmatpush.msra.mxu0 %v648
    %667 = vmatpush.msra.mxu0 %v647
    %668 = vmatpush.msra.mxu0 %v646
    %669 = vmatmul.f32.gmra.mxu0 %v651
    %v670 = vpop.f32.mrf.mxu0
    %v671 = vadd.f32 0.0, %v670
    %672 = vdwg.mxu0
    %v674 = vsel %vm159, %v584, 0
    %676 = vmatpush.msra.mxu0 0.0
    %677 = vmatpush.msra.mxu0 0.0
    %678 = vmatpush.msra.mxu0 0.0
    %679 = vmatpush.msra.mxu0 0.0
    %680 = vmatpush.msra.mxu0 0.0
    %681 = vmatpush.msra.mxu0 0.0
    %682 = vmatpush.msra.mxu0 0.0
    %683 = vmatpush.msra.mxu0 0.0
    %684 = vmatpush.msra.mxu0 0.0
    %685 = vmatpush.msra.mxu0 0.0
    %686 = vmatpush.msra.mxu0 0.0
    %687 = vmatpush.msra.mxu0 0.0
    %688 = vmatpush.msra.mxu0 0.0
    %689 = vmatpush.msra.mxu0 0.0
    %690 = vmatpush.msra.mxu0 %v644
    %691 = vmatpush.msra.mxu0 %v643
    %692 = vmatmul.f32.gmra.mxu0 %v674
    %v693 = vpop.f32.mrf.mxu0
    %v694 = vadd.f32 %v671, %v693
    %695 = vdwg.mxu0
    %v696 = vld [vmem:[#allocation14] sm:$0x1]
    %v698 = vperm.slane %v696, 0
    %v700 = vadd.f32 %v694, %v698
    %v701 = vld [vmem:[#allocation4] sm:$0x3]
    %v702 = vxor.u32 %v642, 2147483648
    %v703 = vmul.f32 %v702, 1.442695
    %v704 = vpow.pop %v703
    %v705 = vadd.f32 %v704, 1.0
    %v706 = vrcp.pop %v705
    %v707 = vmul.f32 %v705, %v706
    %v708 = vsub.f32 1.0, %v707
    %v709 = vmul.f32 %v706, %v708
    %v710 = vadd.f32 %v706, %v709
    %vm711 = vweird.f32 %v705
    %vm712 = vweird.f32 %v706
    %vm713 = vmor %vm711, %vm712
    %v714 = vsel %vm713, %v706, %v710
    %v715 = vand.u32 2147483647, %v705
    %vm716 = vcmp.eq.f32.partialorder %v715, 8.507059e+37
    %v717 = vand.u32 %v705, 2147483648
    %v718 = vor.u32 1.1754944e-38, %v717
    %v719 = vsel %vm716, %v718, %v714
    %v720 = vmul.f32 1.0, %v719
    %v721 = vtanh.pop %v642
    %723 = vrot.lane.b32.xlu0 %v701, 32
    %v724 = vpop.permute.xlu0 %723
    %v726 = vmul.f32 %v720, %v724
    %728 = vrot.lane.b32.xlu0 %v721, 64
    %v729 = vpop.permute.xlu0 %728
    %v731 = vmul.f32 %v720, %v729
    %733 = vrot.lane.b32.xlu0 %v731, 32
    %v734 = vpop.permute.xlu0 %733
    %v736 = vadd.f32 %v726, %v734
    %v737 = vtanh.pop %v736
    %739 = vrot.lane.b32.xlu0 %v737, 64
    %v740 = vpop.permute.xlu0 %739
    %v742 = vmul.f32 %v720, %v740
    %v743 = vld [vmem:[#allocation5] sm:$0x3]
    %v744 = vxor.u32 %v700, 2147483648
    %v745 = vmul.f32 %v744, 1.442695
    %v746 = vpow.pop %v745
    %v747 = vadd.f32 %v746, 1.0
    %v748 = vrcp.pop %v747
    %v749 = vmul.f32 %v747, %v748
    %v750 = vsub.f32 1.0, %v749
    %v751 = vmul.f32 %v748, %v750
    %v752 = vadd.f32 %v748, %v751
    %vm753 = vweird.f32 %v747
    %vm754 = vweird.f32 %v748
    %vm755 = vmor %vm753, %vm754
    %v756 = vsel %vm755, %v748, %v752
    %v757 = vand.u32 2147483647, %v747
    %vm758 = vcmp.eq.f32.partialorder %v757, 8.507059e+37
    %v759 = vand.u32 %v747, 2147483648
    %v760 = vor.u32 1.1754944e-38, %v759
    %v761 = vsel %vm758, %v760, %v756
    %v762 = vmul.f32 1.0, %v761
    %v763 = vtanh.pop %v700
    %765 = vrot.lane.b32.xlu0 %v743, 32
    %v766 = vpop.permute.xlu0 %765
    %v768 = vmul.f32 %v762, %v766
    %770 = vrot.lane.b32.xlu0 %v763, 64
    %v771 = vpop.permute.xlu0 %770
    %v773 = vmul.f32 %v762, %v771
    %775 = vrot.lane.b32.xlu0 %v773, 32
    %v776 = vpop.permute.xlu0 %775
    %v778 = vadd.f32 %v768, %v776
    %v779 = vtanh.pop %v778
    %781 = vrot.lane.b32.xlu0 %v779, 64
    %v782 = vpop.permute.xlu0 %781
    %v784 = vmul.f32 %v762, %v782
    %786 = vrot.lane.b32.xlu0 %v742, 32
    %v787 = vpop.permute.xlu0 %786
    %789 = vst.msk [vmem:[#allocation2] sm:$0x3] %vm120, %v787
    %791 = vrot.lane.b32.xlu0 %v784, 32
    %v792 = vpop.permute.xlu0 %791
    %794 = vst.msk [vmem:[#allocation3] sm:$0x3] %vm120, %v792
    %796 = vrot.lane.b32.xlu0 %v736, 96
    %v797 = vpop.permute.xlu0 %796
    %799 = vst.msk [vmem:[#allocation4] sm:$0x3] %vm120, %v797
    %801 = vrot.lane.b32.xlu0 %v778, 96
    %v802 = vpop.permute.xlu0 %801
    %804 = vst.msk [vmem:[#allocation5] sm:$0x3] %vm120, %v802
    %s805 = scalar_lea.vmem %s7, 4
    %806 = vst.msk [vmem:[%s805] sm:$0x3] %vm120, %v787
    %s807 = scalar_lea.vmem %s8, 10
    %808 = vst.msk [vmem:[%s807] sm:$0x3] %vm120, %v792
    %s809 = scalar_lea.vmem [#allocation6], 6
    %v810 = vld [vmem:[%s809] sm:$0x3]
    %s811 = scalar_lea.vmem [#allocation6], 8
    %v812 = vld [vmem:[%s811] sm:$0x3]
    %v813 = vld [vmem:[#allocation8] sm:$0xff]
    %v814 = vld [vmem:[#allocation8 + $0x8] sm:$0xff]
    %v815 = vld [vmem:[#allocation2] sm:$0x3]
    %v816 = vld [vmem:[#allocation11] sm:$0xff]
    %v817 = vld [vmem:[#allocation11 + $0x8] sm:$0xff]
    %v818 = vld [vmem:[#allocation11 + $0x10] sm:$0xff]
    %v819 = vld [vmem:[#allocation11 + $0x18] sm:$0xff]
    %v821 = vsel %vm135, %v815, 0
    %823 = vmatpush.msra.mxu0 0.0
    %824 = vmatpush.msra.mxu0 0.0
    %825 = vmatpush.msra.mxu0 0.0
    %826 = vmatpush.msra.mxu0 0.0
    %827 = vmatpush.msra.mxu0 0.0
    %828 = vmatpush.msra.mxu0 0.0
    %829 = vmatpush.msra.mxu0 0.0
    %830 = vmatpush.msra.mxu0 0.0
    %831 = vmatpush.msra.mxu0 0.0
    %832 = vmatpush.msra.mxu0 0.0
    %833 = vmatpush.msra.mxu0 0.0
    %834 = vmatpush.msra.mxu0 0.0
    %835 = vmatpush.msra.mxu0 %v819
    %836 = vmatpush.msra.mxu0 %v818
    %837 = vmatpush.msra.mxu0 %v817
    %838 = vmatpush.msra.mxu0 %v816
    %839 = vmatmul.f32.gmra.mxu0 %v821
    %v840 = vpop.f32.mrf.mxu0
    %v841 = vadd.f32 0.0, %v840
    %842 = vdwg.mxu0
    %v844 = vsel %vm159, %v810, 0
    %846 = vmatpush.msra.mxu0 0.0
    %847 = vmatpush.msra.mxu0 0.0
    %848 = vmatpush.msra.mxu0 0.0
    %849 = vmatpush.msra.mxu0 0.0
    %850 = vmatpush.msra.mxu0 0.0
    %851 = vmatpush.msra.mxu0 0.0
    %852 = vmatpush.msra.mxu0 0.0
    %853 = vmatpush.msra.mxu0 0.0
    %854 = vmatpush.msra.mxu0 0.0
    %855 = vmatpush.msra.mxu0 0.0
    %856 = vmatpush.msra.mxu0 0.0
    %857 = vmatpush.msra.mxu0 0.0
    %858 = vmatpush.msra.mxu0 0.0
    %859 = vmatpush.msra.mxu0 0.0
    %860 = vmatpush.msra.mxu0 %v814
    %861 = vmatpush.msra.mxu0 %v813
    %862 = vmatmul.f32.gmra.mxu0 %v844
    %v863 = vpop.f32.mrf.mxu0
    %v864 = vadd.f32 %v841, %v863
    %865 = vdwg.mxu0
    %v866 = vld [vmem:[%s5] sm:$0x1]
    %v868 = vperm.slane %v866, 0
    %v870 = vadd.f32 %v864, %v868
    %v871 = vld [vmem:[#allocation10] sm:$0xff]
    %v872 = vld [vmem:[#allocation10 + $0x8] sm:$0xff]
    %v873 = vld [vmem:[#allocation3] sm:$0x3]
    %v874 = vld [vmem:[#allocation13] sm:$0xff]
    %v875 = vld [vmem:[#allocation13 + $0x8] sm:$0xff]
    %v876 = vld [vmem:[#allocation13 + $0x10] sm:$0xff]
    %v877 = vld [vmem:[#allocation13 + $0x18] sm:$0xff]
    %v879 = vsel %vm135, %v873, 0
    %881 = vmatpush.msra.mxu0 0.0
    %882 = vmatpush.msra.mxu0 0.0
    %883 = vmatpush.msra.mxu0 0.0
    %884 = vmatpush.msra.mxu0 0.0
    %885 = vmatpush.msra.mxu0 0.0
    %886 = vmatpush.msra.mxu0 0.0
    %887 = vmatpush.msra.mxu0 0.0
    %888 = vmatpush.msra.mxu0 0.0
    %889 = vmatpush.msra.mxu0 0.0
    %890 = vmatpush.msra.mxu0 0.0
    %891 = vmatpush.msra.mxu0 0.0
    %892 = vmatpush.msra.mxu0 0.0
    %893 = vmatpush.msra.mxu0 %v877
    %894 = vmatpush.msra.mxu0 %v876
    %895 = vmatpush.msra.mxu0 %v875
    %896 = vmatpush.msra.mxu0 %v874
    %897 = vmatmul.f32.gmra.mxu0 %v879
    %v898 = vpop.f32.mrf.mxu0
    %v899 = vadd.f32 0.0, %v898
    %900 = vdwg.mxu0
    %v902 = vsel %vm159, %v812, 0
    %904 = vmatpush.msra.mxu0 0.0
    %905 = vmatpush.msra.mxu0 0.0
    %906 = vmatpush.msra.mxu0 0.0
    %907 = vmatpush.msra.mxu0 0.0
    %908 = vmatpush.msra.mxu0 0.0
    %909 = vmatpush.msra.mxu0 0.0
    %910 = vmatpush.msra.mxu0 0.0
    %911 = vmatpush.msra.mxu0 0.0
    %912 = vmatpush.msra.mxu0 0.0
    %913 = vmatpush.msra.mxu0 0.0
    %914 = vmatpush.msra.mxu0 0.0
    %915 = vmatpush.msra.mxu0 0.0
    %916 = vmatpush.msra.mxu0 0.0
    %917 = vmatpush.msra.mxu0 0.0
    %918 = vmatpush.msra.mxu0 %v872
    %919 = vmatpush.msra.mxu0 %v871
    %920 = vmatmul.f32.gmra.mxu0 %v902
    %v921 = vpop.f32.mrf.mxu0
    %v922 = vadd.f32 %v899, %v921
    %923 = vdwg.mxu0
    %v924 = vld [vmem:[#allocation14] sm:$0x1]
    %v926 = vperm.slane %v924, 0
    %v928 = vadd.f32 %v922, %v926
    %v929 = vld [vmem:[#allocation4] sm:$0x3]
    %v930 = vxor.u32 %v870, 2147483648
    %v931 = vmul.f32 %v930, 1.442695
    %v932 = vpow.pop %v931
    %v933 = vadd.f32 %v932, 1.0
    %v934 = vrcp.pop %v933
    %v935 = vmul.f32 %v933, %v934
    %v936 = vsub.f32 1.0, %v935
    %v937 = vmul.f32 %v934, %v936
    %v938 = vadd.f32 %v934, %v937
    %vm939 = vweird.f32 %v933
    %vm940 = vweird.f32 %v934
    %vm941 = vmor %vm939, %vm940
    %v942 = vsel %vm941, %v934, %v938
    %v943 = vand.u32 2147483647, %v933
    %vm944 = vcmp.eq.f32.partialorder %v943, 8.507059e+37
    %v945 = vand.u32 %v933, 2147483648
    %v946 = vor.u32 1.1754944e-38, %v945
    %v947 = vsel %vm944, %v946, %v942
    %v948 = vmul.f32 1.0, %v947
    %v949 = vtanh.pop %v870
    %951 = vrot.lane.b32.xlu0 %v929, 32
    %v952 = vpop.permute.xlu0 %951
    %v954 = vmul.f32 %v948, %v952
    %956 = vrot.lane.b32.xlu0 %v949, 64
    %v957 = vpop.permute.xlu0 %956
    %v959 = vmul.f32 %v948, %v957
    %961 = vrot.lane.b32.xlu0 %v959, 32
    %v962 = vpop.permute.xlu0 %961
    %v964 = vadd.f32 %v954, %v962
    %v965 = vtanh.pop %v964
    %967 = vrot.lane.b32.xlu0 %v965, 64
    %v968 = vpop.permute.xlu0 %967
    %v970 = vmul.f32 %v948, %v968
    %v971 = vld [vmem:[#allocation5] sm:$0x3]
    %v972 = vxor.u32 %v928, 2147483648
    %v973 = vmul.f32 %v972, 1.442695
    %v974 = vpow.pop %v973
    %v975 = vadd.f32 %v974, 1.0
    %v976 = vrcp.pop %v975
    %v977 = vmul.f32 %v975, %v976
    %v978 = vsub.f32 1.0, %v977
    %v979 = vmul.f32 %v976, %v978
    %v980 = vadd.f32 %v976, %v979
    %vm981 = vweird.f32 %v975
    %vm982 = vweird.f32 %v976
    %vm983 = vmor %vm981, %vm982
    %v984 = vsel %vm983, %v976, %v980
    %v985 = vand.u32 2147483647, %v975
    %vm986 = vcmp.eq.f32.partialorder %v985, 8.507059e+37
    %v987 = vand.u32 %v975, 2147483648
    %v988 = vor.u32 1.1754944e-38, %v987
    %v989 = vsel %vm986, %v988, %v984
    %v990 = vmul.f32 1.0, %v989
    %v991 = vtanh.pop %v928
    %993 = vrot.lane.b32.xlu0 %v971, 32
    %v994 = vpop.permute.xlu0 %993
    %v996 = vmul.f32 %v990, %v994
    %998 = vrot.lane.b32.xlu0 %v991, 64
    %v999 = vpop.permute.xlu0 %998
    %v1001 = vmul.f32 %v990, %v999
    %1003 = vrot.lane.b32.xlu0 %v1001, 32
    %v1004 = vpop.permute.xlu0 %1003
    %v1006 = vadd.f32 %v996, %v1004
    %v1007 = vtanh.pop %v1006
    %1009 = vrot.lane.b32.xlu0 %v1007, 64
    %v1010 = vpop.permute.xlu0 %1009
    %v1012 = vmul.f32 %v990, %v1010
    %1014 = vrot.lane.b32.xlu0 %v970, 32
    %v1015 = vpop.permute.xlu0 %1014
    %1017 = vst.msk [vmem:[#allocation2] sm:$0x3] %vm120, %v1015
    %1019 = vrot.lane.b32.xlu0 %v1012, 32
    %v1020 = vpop.permute.xlu0 %1019
    %1022 = vst.msk [vmem:[#allocation3] sm:$0x3] %vm120, %v1020
    %1024 = vrot.lane.b32.xlu0 %v964, 96
    %v1025 = vpop.permute.xlu0 %1024
    %1027 = vst.msk [vmem:[#allocation4] sm:$0x3] %vm120, %v1025
    %1029 = vrot.lane.b32.xlu0 %v1006, 96
    %v1030 = vpop.permute.xlu0 %1029
    %1032 = vst.msk [vmem:[#allocation5] sm:$0x3] %vm120, %v1030
    %s1033 = scalar_lea.vmem %s7, 6
    %1034 = vst.msk [vmem:[%s1033] sm:$0x3] %vm120, %v1015
    %s1035 = scalar_lea.vmem %s8, 8
    %1036 = vst.msk [vmem:[%s1035] sm:$0x3] %vm120, %v1020
    %v1037 = vld [vmem:[%s811] sm:$0x3]
    %v1038 = vld [vmem:[%s809] sm:$0x3]
    %v1039 = vld [vmem:[#allocation8] sm:$0xff]
    %v1040 = vld [vmem:[#allocation8 + $0x8] sm:$0xff]
    %v1041 = vld [vmem:[#allocation2] sm:$0x3]
    %v1042 = vld [vmem:[#allocation11] sm:$0xff]
    %v1043 = vld [vmem:[#allocation11 + $0x8] sm:$0xff]
    %v1044 = vld [vmem:[#allocation11 + $0x10] sm:$0xff]
    %v1045 = vld [vmem:[#allocation11 + $0x18] sm:$0xff]
    %v1047 = vsel %vm135, %v1041, 0
    %1049 = vmatpush.msra.mxu0 0.0
    %1050 = vmatpush.msra.mxu0 0.0
    %1051 = vmatpush.msra.mxu0 0.0
    %1052 = vmatpush.msra.mxu0 0.0
    %1053 = vmatpush.msra.mxu0 0.0
    %1054 = vmatpush.msra.mxu0 0.0
    %1055 = vmatpush.msra.mxu0 0.0
    %1056 = vmatpush.msra.mxu0 0.0
    %1057 = vmatpush.msra.mxu0 0.0
    %1058 = vmatpush.msra.mxu0 0.0
    %1059 = vmatpush.msra.mxu0 0.0
    %1060 = vmatpush.msra.mxu0 0.0
    %1061 = vmatpush.msra.mxu0 %v1045
    %1062 = vmatpush.msra.mxu0 %v1044
    %1063 = vmatpush.msra.mxu0 %v1043
    %1064 = vmatpush.msra.mxu0 %v1042
    %1065 = vmatmul.f32.gmra.mxu0 %v1047
    %v1066 = vpop.f32.mrf.mxu0
    %v1067 = vadd.f32 0.0, %v1066
    %1068 = vdwg.mxu0
    %v1070 = vsel %vm159, %v1037, 0
    %1072 = vmatpush.msra.mxu0 0.0
    %1073 = vmatpush.msra.mxu0 0.0
    %1074 = vmatpush.msra.mxu0 0.0
    %1075 = vmatpush.msra.mxu0 0.0
    %1076 = vmatpush.msra.mxu0 0.0
    %1077 = vmatpush.msra.mxu0 0.0
    %1078 = vmatpush.msra.mxu0 0.0
    %1079 = vmatpush.msra.mxu0 0.0
    %1080 = vmatpush.msra.mxu0 0.0
    %1081 = vmatpush.msra.mxu0 0.0
    %1082 = vmatpush.msra.mxu0 0.0
    %1083 = vmatpush.msra.mxu0 0.0
    %1084 = vmatpush.msra.mxu0 0.0
    %1085 = vmatpush.msra.mxu0 0.0
    %1086 = vmatpush.msra.mxu0 %v1040
    %1087 = vmatpush.msra.mxu0 %v1039
    %1088 = vmatmul.f32.gmra.mxu0 %v1070
    %v1089 = vpop.f32.mrf.mxu0
    %v1090 = vadd.f32 %v1067, %v1089
    %1091 = vdwg.mxu0
    %v1092 = vld [vmem:[%s5] sm:$0x1]
    %v1094 = vperm.slane %v1092, 0
    %v1096 = vadd.f32 %v1090, %v1094
    %v1097 = vld [vmem:[#allocation10] sm:$0xff]
    %v1098 = vld [vmem:[#allocation10 + $0x8] sm:$0xff]
    %v1099 = vld [vmem:[#allocation3] sm:$0x3]
    %v1100 = vld [vmem:[#allocation13] sm:$0xff]
    %v1101 = vld [vmem:[#allocation13 + $0x8] sm:$0xff]
    %v1102 = vld [vmem:[#allocation13 + $0x10] sm:$0xff]
    %v1103 = vld [vmem:[#allocation13 + $0x18] sm:$0xff]
    %v1105 = vsel %vm135, %v1099, 0
    %1107 = vmatpush.msra.mxu0 0.0
    %1108 = vmatpush.msra.mxu0 0.0
    %1109 = vmatpush.msra.mxu0 0.0
    %1110 = vmatpush.msra.mxu0 0.0
    %1111 = vmatpush.msra.mxu0 0.0
    %1112 = vmatpush.msra.mxu0 0.0
    %1113 = vmatpush.msra.mxu0 0.0
    %1114 = vmatpush.msra.mxu0 0.0
    %1115 = vmatpush.msra.mxu0 0.0
    %1116 = vmatpush.msra.mxu0 0.0
    %1117 = vmatpush.msra.mxu0 0.0
    %1118 = vmatpush.msra.mxu0 0.0
    %1119 = vmatpush.msra.mxu0 %v1103
    %1120 = vmatpush.msra.mxu0 %v1102
    %1121 = vmatpush.msra.mxu0 %v1101
    %1122 = vmatpush.msra.mxu0 %v1100
    %1123 = vmatmul.f32.gmra.mxu0 %v1105
    %v1124 = vpop.f32.mrf.mxu0
    %v1125 = vadd.f32 0.0, %v1124
    %1126 = vdwg.mxu0
    %v1128 = vsel %vm159, %v1038, 0
    %1130 = vmatpush.msra.mxu0 0.0
    %1131 = vmatpush.msra.mxu0 0.0
    %1132 = vmatpush.msra.mxu0 0.0
    %1133 = vmatpush.msra.mxu0 0.0
    %1134 = vmatpush.msra.mxu0 0.0
    %1135 = vmatpush.msra.mxu0 0.0
    %1136 = vmatpush.msra.mxu0 0.0
    %1137 = vmatpush.msra.mxu0 0.0
    %1138 = vmatpush.msra.mxu0 0.0
    %1139 = vmatpush.msra.mxu0 0.0
    %1140 = vmatpush.msra.mxu0 0.0
    %1141 = vmatpush.msra.mxu0 0.0
    %1142 = vmatpush.msra.mxu0 0.0
    %1143 = vmatpush.msra.mxu0 0.0
    %1144 = vmatpush.msra.mxu0 %v1098
    %1145 = vmatpush.msra.mxu0 %v1097
    %1146 = vmatmul.f32.gmra.mxu0 %v1128
    %v1147 = vpop.f32.mrf.mxu0
    %v1148 = vadd.f32 %v1125, %v1147
    %1149 = vdwg.mxu0
    %v1150 = vld [vmem:[#allocation14] sm:$0x1]
    %v1152 = vperm.slane %v1150, 0
    %v1154 = vadd.f32 %v1148, %v1152
    %v1155 = vld [vmem:[#allocation4] sm:$0x3]
    %v1156 = vxor.u32 %v1096, 2147483648
    %v1157 = vmul.f32 %v1156, 1.442695
    %v1158 = vpow.pop %v1157
    %v1159 = vadd.f32 %v1158, 1.0
    %v1160 = vrcp.pop %v1159
    %v1161 = vmul.f32 %v1159, %v1160
    %v1162 = vsub.f32 1.0, %v1161
    %v1163 = vmul.f32 %v1160, %v1162
    %v1164 = vadd.f32 %v1160, %v1163
    %vm1165 = vweird.f32 %v1159
    %vm1166 = vweird.f32 %v1160
    %vm1167 = vmor %vm1165, %vm1166
    %v1168 = vsel %vm1167, %v1160, %v1164
    %v1169 = vand.u32 2147483647, %v1159
    %vm1170 = vcmp.eq.f32.partialorder %v1169, 8.507059e+37
    %v1171 = vand.u32 %v1159, 2147483648
    %v1172 = vor.u32 1.1754944e-38, %v1171
    %v1173 = vsel %vm1170, %v1172, %v1168
    %v1174 = vmul.f32 1.0, %v1173
    %v1175 = vtanh.pop %v1096
    %1177 = vrot.lane.b32.xlu0 %v1155, 32
    %v1178 = vpop.permute.xlu0 %1177
    %v1180 = vmul.f32 %v1174, %v1178
    %1182 = vrot.lane.b32.xlu0 %v1175, 64
    %v1183 = vpop.permute.xlu0 %1182
    %v1185 = vmul.f32 %v1174, %v1183
    %1187 = vrot.lane.b32.xlu0 %v1185, 32
    %v1188 = vpop.permute.xlu0 %1187
    %v1190 = vadd.f32 %v1180, %v1188
    %v1191 = vtanh.pop %v1190
    %1193 = vrot.lane.b32.xlu0 %v1191, 64
    %v1194 = vpop.permute.xlu0 %1193
    %v1196 = vmul.f32 %v1174, %v1194
    %v1197 = vld [vmem:[#allocation5] sm:$0x3]
    %v1198 = vxor.u32 %v1154, 2147483648
    %v1199 = vmul.f32 %v1198, 1.442695
    %v1200 = vpow.pop %v1199
    %v1201 = vadd.f32 %v1200, 1.0
    %v1202 = vrcp.pop %v1201
    %v1203 = vmul.f32 %v1201, %v1202
    %v1204 = vsub.f32 1.0, %v1203
    %v1205 = vmul.f32 %v1202, %v1204
    %v1206 = vadd.f32 %v1202, %v1205
    %vm1207 = vweird.f32 %v1201
    %vm1208 = vweird.f32 %v1202
    %vm1209 = vmor %vm1207, %vm1208
    %v1210 = vsel %vm1209, %v1202, %v1206
    %v1211 = vand.u32 2147483647, %v1201
    %vm1212 = vcmp.eq.f32.partialorder %v1211, 8.507059e+37
    %v1213 = vand.u32 %v1201, 2147483648
    %v1214 = vor.u32 1.1754944e-38, %v1213
    %v1215 = vsel %vm1212, %v1214, %v1210
    %v1216 = vmul.f32 1.0, %v1215
    %v1217 = vtanh.pop %v1154
    %1219 = vrot.lane.b32.xlu0 %v1197, 32
    %v1220 = vpop.permute.xlu0 %1219
    %v1222 = vmul.f32 %v1216, %v1220
    %1224 = vrot.lane.b32.xlu0 %v1217, 64
    %v1225 = vpop.permute.xlu0 %1224
    %v1227 = vmul.f32 %v1216, %v1225
    %1229 = vrot.lane.b32.xlu0 %v1227, 32
    %v1230 = vpop.permute.xlu0 %1229
    %v1232 = vadd.f32 %v1222, %v1230
    %v1233 = vtanh.pop %v1232
    %1235 = vrot.lane.b32.xlu0 %v1233, 64
    %v1236 = vpop.permute.xlu0 %1235
    %v1238 = vmul.f32 %v1216, %v1236
    %1240 = vrot.lane.b32.xlu0 %v1196, 32
    %v1241 = vpop.permute.xlu0 %1240
    %1243 = vst.msk [vmem:[#allocation2] sm:$0x3] %vm120, %v1241
    %1245 = vrot.lane.b32.xlu0 %v1238, 32
    %v1246 = vpop.permute.xlu0 %1245
    %1248 = vst.msk [vmem:[#allocation3] sm:$0x3] %vm120, %v1246
    %1250 = vrot.lane.b32.xlu0 %v1190, 96
    %v1251 = vpop.permute.xlu0 %1250
    %1253 = vst.msk [vmem:[#allocation4] sm:$0x3] %vm120, %v1251
    %1255 = vrot.lane.b32.xlu0 %v1232, 96
    %v1256 = vpop.permute.xlu0 %1255
    %1258 = vst.msk [vmem:[#allocation5] sm:$0x3] %vm120, %v1256
    %s1259 = scalar_lea.vmem %s7, 8
    %1260 = vst.msk [vmem:[%s1259] sm:$0x3] %vm120, %v1241
    %s1261 = scalar_lea.vmem %s8, 6
    %1262 = vst.msk [vmem:[%s1261] sm:$0x3] %vm120, %v1246
    %v1263 = vld [vmem:[%s583] sm:$0x3]
    %v1264 = vld [vmem:[%s581] sm:$0x3]
    %v1265 = vld [vmem:[#allocation8] sm:$0xff]
    %v1266 = vld [vmem:[#allocation8 + $0x8] sm:$0xff]
    %v1267 = vld [vmem:[#allocation2] sm:$0x3]
    %v1268 = vld [vmem:[#allocation11] sm:$0xff]
    %v1269 = vld [vmem:[#allocation11 + $0x8] sm:$0xff]
    %v1270 = vld [vmem:[#allocation11 + $0x10] sm:$0xff]
    %v1271 = vld [vmem:[#allocation11 + $0x18] sm:$0xff]
    %v1273 = vsel %vm135, %v1267, 0
    %1275 = vmatpush.msra.mxu0 0.0
    %1276 = vmatpush.msra.mxu0 0.0
    %1277 = vmatpush.msra.mxu0 0.0
    %1278 = vmatpush.msra.mxu0 0.0
    %1279 = vmatpush.msra.mxu0 0.0
    %1280 = vmatpush.msra.mxu0 0.0
    %1281 = vmatpush.msra.mxu0 0.0
    %1282 = vmatpush.msra.mxu0 0.0
    %1283 = vmatpush.msra.mxu0 0.0
    %1284 = vmatpush.msra.mxu0 0.0
    %1285 = vmatpush.msra.mxu0 0.0
    %1286 = vmatpush.msra.mxu0 0.0
    %1287 = vmatpush.msra.mxu0 %v1271
    %1288 = vmatpush.msra.mxu0 %v1270
    %1289 = vmatpush.msra.mxu0 %v1269
    %1290 = vmatpush.msra.mxu0 %v1268
    %1291 = vmatmul.f32.gmra.mxu0 %v1273
    %v1292 = vpop.f32.mrf.mxu0
    %v1293 = vadd.f32 0.0, %v1292
    %1294 = vdwg.mxu0
    %v1296 = vsel %vm159, %v1263, 0
    %1298 = vmatpush.msra.mxu0 0.0
    %1299 = vmatpush.msra.mxu0 0.0
    %1300 = vmatpush.msra.mxu0 0.0
    %1301 = vmatpush.msra.mxu0 0.0
    %1302 = vmatpush.msra.mxu0 0.0
    %1303 = vmatpush.msra.mxu0 0.0
    %1304 = vmatpush.msra.mxu0 0.0
    %1305 = vmatpush.msra.mxu0 0.0
    %1306 = vmatpush.msra.mxu0 0.0
    %1307 = vmatpush.msra.mxu0 0.0
    %1308 = vmatpush.msra.mxu0 0.0
    %1309 = vmatpush.msra.mxu0 0.0
    %1310 = vmatpush.msra.mxu0 0.0
    %1311 = vmatpush.msra.mxu0 0.0
    %1312 = vmatpush.msra.mxu0 %v1266
    %1313 = vmatpush.msra.mxu0 %v1265
    %1314 = vmatmul.f32.gmra.mxu0 %v1296
    %v1315 = vpop.f32.mrf.mxu0
    %v1316 = vadd.f32 %v1293, %v1315
    %1317 = vdwg.mxu0
    %v1318 = vld [vmem:[%s5] sm:$0x1]
    %v1320 = vperm.slane %v1318, 0
    %v1322 = vadd.f32 %v1316, %v1320
    %v1323 = vld [vmem:[#allocation10] sm:$0xff]
    %v1324 = vld [vmem:[#allocation10 + $0x8] sm:$0xff]
    %v1325 = vld [vmem:[#allocation3] sm:$0x3]
    %v1326 = vld [vmem:[#allocation13] sm:$0xff]
    %v1327 = vld [vmem:[#allocation13 + $0x8] sm:$0xff]
    %v1328 = vld [vmem:[#allocation13 + $0x10] sm:$0xff]
    %v1329 = vld [vmem:[#allocation13 + $0x18] sm:$0xff]
    %v1331 = vsel %vm135, %v1325, 0
    %1333 = vmatpush.msra.mxu0 0.0
    %1334 = vmatpush.msra.mxu0 0.0
    %1335 = vmatpush.msra.mxu0 0.0
    %1336 = vmatpush.msra.mxu0 0.0
    %1337 = vmatpush.msra.mxu0 0.0
    %1338 = vmatpush.msra.mxu0 0.0
    %1339 = vmatpush.msra.mxu0 0.0
    %1340 = vmatpush.msra.mxu0 0.0
    %1341 = vmatpush.msra.mxu0 0.0
    %1342 = vmatpush.msra.mxu0 0.0
    %1343 = vmatpush.msra.mxu0 0.0
    %1344 = vmatpush.msra.mxu0 0.0
    %1345 = vmatpush.msra.mxu0 %v1329
    %1346 = vmatpush.msra.mxu0 %v1328
    %1347 = vmatpush.msra.mxu0 %v1327
    %1348 = vmatpush.msra.mxu0 %v1326
    %1349 = vmatmul.f32.gmra.mxu0 %v1331
    %v1350 = vpop.f32.mrf.mxu0
    %v1351 = vadd.f32 0.0, %v1350
    %1352 = vdwg.mxu0
    %v1354 = vsel %vm159, %v1264, 0
    %1356 = vmatpush.msra.mxu0 0.0
    %1357 = vmatpush.msra.mxu0 0.0
    %1358 = vmatpush.msra.mxu0 0.0
    %1359 = vmatpush.msra.mxu0 0.0
    %1360 = vmatpush.msra.mxu0 0.0
    %1361 = vmatpush.msra.mxu0 0.0
    %1362 = vmatpush.msra.mxu0 0.0
    %1363 = vmatpush.msra.mxu0 0.0
    %1364 = vmatpush.msra.mxu0 0.0
    %1365 = vmatpush.msra.mxu0 0.0
    %1366 = vmatpush.msra.mxu0 0.0
    %1367 = vmatpush.msra.mxu0 0.0
    %1368 = vmatpush.msra.mxu0 0.0
    %1369 = vmatpush.msra.mxu0 0.0
    %1370 = vmatpush.msra.mxu0 %v1324
    %1371 = vmatpush.msra.mxu0 %v1323
    %1372 = vmatmul.f32.gmra.mxu0 %v1354
    %v1373 = vpop.f32.mrf.mxu0
    %v1374 = vadd.f32 %v1351, %v1373
    %1375 = vdwg.mxu0
    %v1376 = vld [vmem:[#allocation14] sm:$0x1]
    %v1378 = vperm.slane %v1376, 0
    %v1380 = vadd.f32 %v1374, %v1378
    %v1381 = vld [vmem:[#allocation4] sm:$0x3]
    %v1382 = vxor.u32 %v1322, 2147483648
    %v1383 = vmul.f32 %v1382, 1.442695
    %v1384 = vpow.pop %v1383
    %v1385 = vadd.f32 %v1384, 1.0
    %v1386 = vrcp.pop %v1385
    %v1387 = vmul.f32 %v1385, %v1386
    %v1388 = vsub.f32 1.0, %v1387
    %v1389 = vmul.f32 %v1386, %v1388
    %v1390 = vadd.f32 %v1386, %v1389
    %vm1391 = vweird.f32 %v1385
    %vm1392 = vweird.f32 %v1386
    %vm1393 = vmor %vm1391, %vm1392
    %v1394 = vsel %vm1393, %v1386, %v1390
    %v1395 = vand.u32 2147483647, %v1385
    %vm1396 = vcmp.eq.f32.partialorder %v1395, 8.507059e+37
    %v1397 = vand.u32 %v1385, 2147483648
    %v1398 = vor.u32 1.1754944e-38, %v1397
    %v1399 = vsel %vm1396, %v1398, %v1394
    %v1400 = vmul.f32 1.0, %v1399
    %v1401 = vtanh.pop %v1322
    %1403 = vrot.lane.b32.xlu0 %v1381, 32
    %v1404 = vpop.permute.xlu0 %1403
    %v1406 = vmul.f32 %v1400, %v1404
    %1408 = vrot.lane.b32.xlu0 %v1401, 64
    %v1409 = vpop.permute.xlu0 %1408
    %v1411 = vmul.f32 %v1400, %v1409
    %1413 = vrot.lane.b32.xlu0 %v1411, 32
    %v1414 = vpop.permute.xlu0 %1413
    %v1416 = vadd.f32 %v1406, %v1414
    %v1417 = vtanh.pop %v1416
    %1419 = vrot.lane.b32.xlu0 %v1417, 64
    %v1420 = vpop.permute.xlu0 %1419
    %v1422 = vmul.f32 %v1400, %v1420
    %v1423 = vld [vmem:[#allocation5] sm:$0x3]
    %v1424 = vxor.u32 %v1380, 2147483648
    %v1425 = vmul.f32 %v1424, 1.442695
    %v1426 = vpow.pop %v1425
    %v1427 = vadd.f32 %v1426, 1.0
    %v1428 = vrcp.pop %v1427
    %v1429 = vmul.f32 %v1427, %v1428
    %v1430 = vsub.f32 1.0, %v1429
    %v1431 = vmul.f32 %v1428, %v1430
    %v1432 = vadd.f32 %v1428, %v1431
    %vm1433 = vweird.f32 %v1427
    %vm1434 = vweird.f32 %v1428
    %vm1435 = vmor %vm1433, %vm1434
    %v1436 = vsel %vm1435, %v1428, %v1432
    %v1437 = vand.u32 2147483647, %v1427
    %vm1438 = vcmp.eq.f32.partialorder %v1437, 8.507059e+37
    %v1439 = vand.u32 %v1427, 2147483648
    %v1440 = vor.u32 1.1754944e-38, %v1439
    %v1441 = vsel %vm1438, %v1440, %v1436
    %v1442 = vmul.f32 1.0, %v1441
    %v1443 = vtanh.pop %v1380
    %1445 = vrot.lane.b32.xlu0 %v1423, 32
    %v1446 = vpop.permute.xlu0 %1445
    %v1448 = vmul.f32 %v1442, %v1446
    %1450 = vrot.lane.b32.xlu0 %v1443, 64
    %v1451 = vpop.permute.xlu0 %1450
    %v1453 = vmul.f32 %v1442, %v1451
    %1455 = vrot.lane.b32.xlu0 %v1453, 32
    %v1456 = vpop.permute.xlu0 %1455
    %v1458 = vadd.f32 %v1448, %v1456
    %v1459 = vtanh.pop %v1458
    %1461 = vrot.lane.b32.xlu0 %v1459, 64
    %v1462 = vpop.permute.xlu0 %1461
    %v1464 = vmul.f32 %v1442, %v1462
    %1466 = vrot.lane.b32.xlu0 %v1422, 32
    %v1467 = vpop.permute.xlu0 %1466
    %1469 = vst.msk [vmem:[#allocation2] sm:$0x3] %vm120, %v1467
    %1471 = vrot.lane.b32.xlu0 %v1464, 32
    %v1472 = vpop.permute.xlu0 %1471
    %1474 = vst.msk [vmem:[#allocation3] sm:$0x3] %vm120, %v1472
    %1476 = vrot.lane.b32.xlu0 %v1416, 96
    %v1477 = vpop.permute.xlu0 %1476
    %1479 = vst.msk [vmem:[#allocation4] sm:$0x3] %vm120, %v1477
    %1481 = vrot.lane.b32.xlu0 %v1458, 96
    %v1482 = vpop.permute.xlu0 %1481
    %1484 = vst.msk [vmem:[#allocation5] sm:$0x3] %vm120, %v1482
    %s1485 = scalar_lea.vmem %s7, 10
    %1486 = vst.msk [vmem:[%s1485] sm:$0x3] %vm120, %v1467
    %s1487 = scalar_lea.vmem %s8, 4
    %1488 = vst.msk [vmem:[%s1487] sm:$0x3] %vm120, %v1472
    %v1489 = vld [vmem:[%s355] sm:$0x3]
    %v1490 = vld [vmem:[%s353] sm:$0x3]
    %v1491 = vld [vmem:[#allocation8] sm:$0xff]
    %v1492 = vld [vmem:[#allocation8 + $0x8] sm:$0xff]
    %v1493 = vld [vmem:[#allocation2] sm:$0x3]
    %v1494 = vld [vmem:[#allocation11] sm:$0xff]
    %v1495 = vld [vmem:[#allocation11 + $0x8] sm:$0xff]
    %v1496 = vld [vmem:[#allocation11 + $0x10] sm:$0xff]
    %v1497 = vld [vmem:[#allocation11 + $0x18] sm:$0xff]
    %v1499 = vsel %vm135, %v1493, 0
    %1501 = vmatpush.msra.mxu0 0.0
    %1502 = vmatpush.msra.mxu0 0.0
    %1503 = vmatpush.msra.mxu0 0.0
    %1504 = vmatpush.msra.mxu0 0.0
    %1505 = vmatpush.msra.mxu0 0.0
    %1506 = vmatpush.msra.mxu0 0.0
    %1507 = vmatpush.msra.mxu0 0.0
    %1508 = vmatpush.msra.mxu0 0.0
    %1509 = vmatpush.msra.mxu0 0.0
    %1510 = vmatpush.msra.mxu0 0.0
    %1511 = vmatpush.msra.mxu0 0.0
    %1512 = vmatpush.msra.mxu0 0.0
    %1513 = vmatpush.msra.mxu0 %v1497
    %1514 = vmatpush.msra.mxu0 %v1496
    %1515 = vmatpush.msra.mxu0 %v1495
    %1516 = vmatpush.msra.mxu0 %v1494
    %1517 = vmatmul.f32.gmra.mxu0 %v1499
    %v1518 = vpop.f32.mrf.mxu0
    %v1519 = vadd.f32 0.0, %v1518
    %1520 = vdwg.mxu0
    %v1522 = vsel %vm159, %v1489, 0
    %1524 = vmatpush.msra.mxu0 0.0
    %1525 = vmatpush.msra.mxu0 0.0
    %1526 = vmatpush.msra.mxu0 0.0
    %1527 = vmatpush.msra.mxu0 0.0
    %1528 = vmatpush.msra.mxu0 0.0
    %1529 = vmatpush.msra.mxu0 0.0
    %1530 = vmatpush.msra.mxu0 0.0
    %1531 = vmatpush.msra.mxu0 0.0
    %1532 = vmatpush.msra.mxu0 0.0
    %1533 = vmatpush.msra.mxu0 0.0
    %1534 = vmatpush.msra.mxu0 0.0
    %1535 = vmatpush.msra.mxu0 0.0
    %1536 = vmatpush.msra.mxu0 0.0
    %1537 = vmatpush.msra.mxu0 0.0
    %1538 = vmatpush.msra.mxu0 %v1492
    %1539 = vmatpush.msra.mxu0 %v1491
    %1540 = vmatmul.f32.gmra.mxu0 %v1522
    %v1541 = vpop.f32.mrf.mxu0
    %v1542 = vadd.f32 %v1519, %v1541
    %1543 = vdwg.mxu0
    %v1544 = vld [vmem:[%s5] sm:$0x1]
    %v1546 = vperm.slane %v1544, 0
    %v1548 = vadd.f32 %v1542, %v1546
    %v1549 = vld [vmem:[#allocation10] sm:$0xff]
    %v1550 = vld [vmem:[#allocation10 + $0x8] sm:$0xff]
    %v1551 = vld [vmem:[#allocation3] sm:$0x3]
    %v1552 = vld [vmem:[#allocation13] sm:$0xff]
    %v1553 = vld [vmem:[#allocation13 + $0x8] sm:$0xff]
    %v1554 = vld [vmem:[#allocation13 + $0x10] sm:$0xff]
    %v1555 = vld [vmem:[#allocation13 + $0x18] sm:$0xff]
    %v1557 = vsel %vm135, %v1551, 0
    %1559 = vmatpush.msra.mxu0 0.0
    %1560 = vmatpush.msra.mxu0 0.0
    %1561 = vmatpush.msra.mxu0 0.0
    %1562 = vmatpush.msra.mxu0 0.0
    %1563 = vmatpush.msra.mxu0 0.0
    %1564 = vmatpush.msra.mxu0 0.0
    %1565 = vmatpush.msra.mxu0 0.0
    %1566 = vmatpush.msra.mxu0 0.0
    %1567 = vmatpush.msra.mxu0 0.0
    %1568 = vmatpush.msra.mxu0 0.0
    %1569 = vmatpush.msra.mxu0 0.0
    %1570 = vmatpush.msra.mxu0 0.0
    %1571 = vmatpush.msra.mxu0 %v1555
    %1572 = vmatpush.msra.mxu0 %v1554
    %1573 = vmatpush.msra.mxu0 %v1553
    %1574 = vmatpush.msra.mxu0 %v1552
    %1575 = vmatmul.f32.gmra.mxu0 %v1557
    %v1576 = vpop.f32.mrf.mxu0
    %v1577 = vadd.f32 0.0, %v1576
    %1578 = vdwg.mxu0
    %v1580 = vsel %vm159, %v1490, 0
    %1582 = vmatpush.msra.mxu0 0.0
    %1583 = vmatpush.msra.mxu0 0.0
    %1584 = vmatpush.msra.mxu0 0.0
    %1585 = vmatpush.msra.mxu0 0.0
    %1586 = vmatpush.msra.mxu0 0.0
    %1587 = vmatpush.msra.mxu0 0.0
    %1588 = vmatpush.msra.mxu0 0.0
    %1589 = vmatpush.msra.mxu0 0.0
    %1590 = vmatpush.msra.mxu0 0.0
    %1591 = vmatpush.msra.mxu0 0.0
    %1592 = vmatpush.msra.mxu0 0.0
    %1593 = vmatpush.msra.mxu0 0.0
    %1594 = vmatpush.msra.mxu0 0.0
    %1595 = vmatpush.msra.mxu0 0.0
    %1596 = vmatpush.msra.mxu0 %v1550
    %1597 = vmatpush.msra.mxu0 %v1549
    %1598 = vmatmul.f32.gmra.mxu0 %v1580
    %v1599 = vpop.f32.mrf.mxu0
    %v1600 = vadd.f32 %v1577, %v1599
    %1601 = vdwg.mxu0
    %v1602 = vld [vmem:[#allocation14] sm:$0x1]
    %v1604 = vperm.slane %v1602, 0
    %v1606 = vadd.f32 %v1600, %v1604
    %v1607 = vld [vmem:[#allocation4] sm:$0x3]
    %v1608 = vxor.u32 %v1548, 2147483648
    %v1609 = vmul.f32 %v1608, 1.442695
    %v1610 = vpow.pop %v1609
    %v1611 = vadd.f32 %v1610, 1.0
    %v1612 = vrcp.pop %v1611
    %v1613 = vmul.f32 %v1611, %v1612
    %v1614 = vsub.f32 1.0, %v1613
    %v1615 = vmul.f32 %v1612, %v1614
    %v1616 = vadd.f32 %v1612, %v1615
    %vm1617 = vweird.f32 %v1611
    %vm1618 = vweird.f32 %v1612
    %vm1619 = vmor %vm1617, %vm1618
    %v1620 = vsel %vm1619, %v1612, %v1616
    %v1621 = vand.u32 2147483647, %v1611
    %vm1622 = vcmp.eq.f32.partialorder %v1621, 8.507059e+37
    %v1623 = vand.u32 %v1611, 2147483648
    %v1624 = vor.u32 1.1754944e-38, %v1623
    %v1625 = vsel %vm1622, %v1624, %v1620
    %v1626 = vmul.f32 1.0, %v1625
    %v1627 = vtanh.pop %v1548
    %1629 = vrot.lane.b32.xlu0 %v1607, 32
    %v1630 = vpop.permute.xlu0 %1629
    %v1632 = vmul.f32 %v1626, %v1630
    %1634 = vrot.lane.b32.xlu0 %v1627, 64
    %v1635 = vpop.permute.xlu0 %1634
    %v1637 = vmul.f32 %v1626, %v1635
    %1639 = vrot.lane.b32.xlu0 %v1637, 32
    %v1640 = vpop.permute.xlu0 %1639
    %v1642 = vadd.f32 %v1632, %v1640
    %v1643 = vtanh.pop %v1642
    %1645 = vrot.lane.b32.xlu0 %v1643, 64
    %v1646 = vpop.permute.xlu0 %1645
    %v1648 = vmul.f32 %v1626, %v1646
    %v1649 = vld [vmem:[#allocation5] sm:$0x3]
    %v1650 = vxor.u32 %v1606, 2147483648
    %v1651 = vmul.f32 %v1650, 1.442695
    %v1652 = vpow.pop %v1651
    %v1653 = vadd.f32 %v1652, 1.0
    %v1654 = vrcp.pop %v1653
    %v1655 = vmul.f32 %v1653, %v1654
    %v1656 = vsub.f32 1.0, %v1655
    %v1657 = vmul.f32 %v1654, %v1656
    %v1658 = vadd.f32 %v1654, %v1657
    %vm1659 = vweird.f32 %v1653
    %vm1660 = vweird.f32 %v1654
    %vm1661 = vmor %vm1659, %vm1660
    %v1662 = vsel %vm1661, %v1654, %v1658
    %v1663 = vand.u32 2147483647, %v1653
    %vm1664 = vcmp.eq.f32.partialorder %v1663, 8.507059e+37
    %v1665 = vand.u32 %v1653, 2147483648
    %v1666 = vor.u32 1.1754944e-38, %v1665
    %v1667 = vsel %vm1664, %v1666, %v1662
    %v1668 = vmul.f32 1.0, %v1667
    %v1669 = vtanh.pop %v1606
    %1671 = vrot.lane.b32.xlu0 %v1649, 32
    %v1672 = vpop.permute.xlu0 %1671
    %v1674 = vmul.f32 %v1668, %v1672
    %1676 = vrot.lane.b32.xlu0 %v1669, 64
    %v1677 = vpop.permute.xlu0 %1676
    %v1679 = vmul.f32 %v1668, %v1677
    %1681 = vrot.lane.b32.xlu0 %v1679, 32
    %v1682 = vpop.permute.xlu0 %1681
    %v1684 = vadd.f32 %v1674, %v1682
    %v1685 = vtanh.pop %v1684
    %1687 = vrot.lane.b32.xlu0 %v1685, 64
    %v1688 = vpop.permute.xlu0 %1687
    %v1690 = vmul.f32 %v1668, %v1688
    %1692 = vrot.lane.b32.xlu0 %v1648, 32
    %v1693 = vpop.permute.xlu0 %1692
    %1695 = vst.msk [vmem:[#allocation2] sm:$0x3] %vm120, %v1693
    %1697 = vrot.lane.b32.xlu0 %v1690, 32
    %v1698 = vpop.permute.xlu0 %1697
    %1700 = vst.msk [vmem:[#allocation3] sm:$0x3] %vm120, %v1698
    %1702 = vrot.lane.b32.xlu0 %v1642, 96
    %v1703 = vpop.permute.xlu0 %1702
    %1705 = vst.msk [vmem:[#allocation4] sm:$0x3] %vm120, %v1703
    %1707 = vrot.lane.b32.xlu0 %v1684, 96
    %v1708 = vpop.permute.xlu0 %1707
    %1710 = vst.msk [vmem:[#allocation5] sm:$0x3] %vm120, %v1708
    %s1711 = scalar_lea.vmem %s7, 12
    %1712 = vst.msk [vmem:[%s1711] sm:$0x3] %vm120, %v1693
    %s1713 = scalar_lea.vmem %s8, 2
    %1714 = vst.msk [vmem:[%s1713] sm:$0x3] %vm120, %v1698
    %v1715 = vld [vmem:[%s126] sm:$0x3]
    %v1716 = vld [vmem:[#allocation6] sm:$0x3]
    %v1717 = vld [vmem:[#allocation8] sm:$0xff]
    %v1718 = vld [vmem:[#allocation8 + $0x8] sm:$0xff]
    %v1719 = vld [vmem:[#allocation2] sm:$0x3]
    %v1720 = vld [vmem:[#allocation11] sm:$0xff]
    %v1721 = vld [vmem:[#allocation11 + $0x8] sm:$0xff]
    %v1722 = vld [vmem:[#allocation11 + $0x10] sm:$0xff]
    %v1723 = vld [vmem:[#allocation11 + $0x18] sm:$0xff]
    %v1725 = vsel %vm135, %v1719, 0
    %1727 = vmatpush.msra.mxu0 0.0
    %1728 = vmatpush.msra.mxu0 0.0
    %1729 = vmatpush.msra.mxu0 0.0
    %1730 = vmatpush.msra.mxu0 0.0
    %1731 = vmatpush.msra.mxu0 0.0
    %1732 = vmatpush.msra.mxu0 0.0
    %1733 = vmatpush.msra.mxu0 0.0
    %1734 = vmatpush.msra.mxu0 0.0
    %1735 = vmatpush.msra.mxu0 0.0
    %1736 = vmatpush.msra.mxu0 0.0
    %1737 = vmatpush.msra.mxu0 0.0
    %1738 = vmatpush.msra.mxu0 0.0
    %1739 = vmatpush.msra.mxu0 %v1723
    %1740 = vmatpush.msra.mxu0 %v1722
    %1741 = vmatpush.msra.mxu0 %v1721
    %1742 = vmatpush.msra.mxu0 %v1720
    %1743 = vmatmul.f32.gmra.mxu0 %v1725
    %v1744 = vpop.f32.mrf.mxu0
    %v1745 = vadd.f32 0.0, %v1744
    %1746 = vdwg.mxu0
    %v1748 = vsel %vm159, %v1715, 0
    %1750 = vmatpush.msra.mxu0 0.0
    %1751 = vmatpush.msra.mxu0 0.0
    %1752 = vmatpush.msra.mxu0 0.0
    %1753 = vmatpush.msra.mxu0 0.0
    %1754 = vmatpush.msra.mxu0 0.0
    %1755 = vmatpush.msra.mxu0 0.0
    %1756 = vmatpush.msra.mxu0 0.0
    %1757 = vmatpush.msra.mxu0 0.0
    %1758 = vmatpush.msra.mxu0 0.0
    %1759 = vmatpush.msra.mxu0 0.0
    %1760 = vmatpush.msra.mxu0 0.0
    %1761 = vmatpush.msra.mxu0 0.0
    %1762 = vmatpush.msra.mxu0 0.0
    %1763 = vmatpush.msra.mxu0 0.0
    %1764 = vmatpush.msra.mxu0 %v1718
    %1765 = vmatpush.msra.mxu0 %v1717
    %1766 = vmatmul.f32.gmra.mxu0 %v1748
    %v1767 = vpop.f32.mrf.mxu0
    %v1768 = vadd.f32 %v1745, %v1767
    %1769 = vdwg.mxu0
    %v1770 = vld [vmem:[%s5] sm:$0x1]
    %v1772 = vperm.slane %v1770, 0
    %v1774 = vadd.f32 %v1768, %v1772
    %v1775 = vld [vmem:[#allocation10] sm:$0xff]
    %v1776 = vld [vmem:[#allocation10 + $0x8] sm:$0xff]
    %v1777 = vld [vmem:[#allocation3] sm:$0x3]
    %v1778 = vld [vmem:[#allocation13] sm:$0xff]
    %v1779 = vld [vmem:[#allocation13 + $0x8] sm:$0xff]
    %v1780 = vld [vmem:[#allocation13 + $0x10] sm:$0xff]
    %v1781 = vld [vmem:[#allocation13 + $0x18] sm:$0xff]
    %v1783 = vsel %vm135, %v1777, 0
    %1785 = vmatpush.msra.mxu0 0.0
    %1786 = vmatpush.msra.mxu0 0.0
    %1787 = vmatpush.msra.mxu0 0.0
    %1788 = vmatpush.msra.mxu0 0.0
    %1789 = vmatpush.msra.mxu0 0.0
    %1790 = vmatpush.msra.mxu0 0.0
    %1791 = vmatpush.msra.mxu0 0.0
    %1792 = vmatpush.msra.mxu0 0.0
    %1793 = vmatpush.msra.mxu0 0.0
    %1794 = vmatpush.msra.mxu0 0.0
    %1795 = vmatpush.msra.mxu0 0.0
    %1796 = vmatpush.msra.mxu0 0.0
    %1797 = vmatpush.msra.mxu0 %v1781
    %1798 = vmatpush.msra.mxu0 %v1780
    %1799 = vmatpush.msra.mxu0 %v1779
    %1800 = vmatpush.msra.mxu0 %v1778
    %1801 = vmatmul.f32.gmra.mxu0 %v1783
    %v1802 = vpop.f32.mrf.mxu0
    %v1803 = vadd.f32 0.0, %v1802
    %1804 = vdwg.mxu0
    %v1806 = vsel %vm159, %v1716, 0
    %1808 = vmatpush.msra.mxu0 0.0
    %1809 = vmatpush.msra.mxu0 0.0
    %1810 = vmatpush.msra.mxu0 0.0
    %1811 = vmatpush.msra.mxu0 0.0
    %1812 = vmatpush.msra.mxu0 0.0
    %1813 = vmatpush.msra.mxu0 0.0
    %1814 = vmatpush.msra.mxu0 0.0
    %1815 = vmatpush.msra.mxu0 0.0
    %1816 = vmatpush.msra.mxu0 0.0
    %1817 = vmatpush.msra.mxu0 0.0
    %1818 = vmatpush.msra.mxu0 0.0
    %1819 = vmatpush.msra.mxu0 0.0
    %1820 = vmatpush.msra.mxu0 0.0
    %1821 = vmatpush.msra.mxu0 0.0
    %1822 = vmatpush.msra.mxu0 %v1776
    %1823 = vmatpush.msra.mxu0 %v1775
    %1824 = vmatmul.f32.gmra.mxu0 %v1806
    %v1825 = vpop.f32.mrf.mxu0
    %v1826 = vadd.f32 %v1803, %v1825
    %1827 = vdwg.mxu0
    %v1828 = vld [vmem:[#allocation14] sm:$0x1]
    %v1830 = vperm.slane %v1828, 0
    %v1832 = vadd.f32 %v1826, %v1830
    %v1833 = vld [vmem:[#allocation4] sm:$0x3]
    %v1834 = vxor.u32 %v1774, 2147483648
    %v1835 = vmul.f32 %v1834, 1.442695
    %v1836 = vpow.pop %v1835
    %v1837 = vadd.f32 %v1836, 1.0
    %v1838 = vrcp.pop %v1837
    %v1839 = vmul.f32 %v1837, %v1838
    %v1840 = vsub.f32 1.0, %v1839
    %v1841 = vmul.f32 %v1838, %v1840
    %v1842 = vadd.f32 %v1838, %v1841
    %vm1843 = vweird.f32 %v1837
    %vm1844 = vweird.f32 %v1838
    %vm1845 = vmor %vm1843, %vm1844
    %v1846 = vsel %vm1845, %v1838, %v1842
    %v1847 = vand.u32 2147483647, %v1837
    %vm1848 = vcmp.eq.f32.partialorder %v1847, 8.507059e+37
    %v1849 = vand.u32 %v1837, 2147483648
    %v1850 = vor.u32 1.1754944e-38, %v1849
    %v1851 = vsel %vm1848, %v1850, %v1846
    %v1852 = vmul.f32 1.0, %v1851
    %v1853 = vtanh.pop %v1774
    %1855 = vrot.lane.b32.xlu0 %v1833, 32
    %v1856 = vpop.permute.xlu0 %1855
    %v1858 = vmul.f32 %v1852, %v1856
    %1860 = vrot.lane.b32.xlu0 %v1853, 64
    %v1861 = vpop.permute.xlu0 %1860
    %v1863 = vmul.f32 %v1852, %v1861
    %1865 = vrot.lane.b32.xlu0 %v1863, 32
    %v1866 = vpop.permute.xlu0 %1865
    %v1868 = vadd.f32 %v1858, %v1866
    %v1869 = vtanh.pop %v1868
    %1871 = vrot.lane.b32.xlu0 %v1869, 64
    %v1872 = vpop.permute.xlu0 %1871
    %v1874 = vmul.f32 %v1852, %v1872
    %v1875 = vld [vmem:[#allocation5] sm:$0x3]
    %v1876 = vxor.u32 %v1832, 2147483648
    %v1877 = vmul.f32 %v1876, 1.442695
    %v1878 = vpow.pop %v1877
    %v1879 = vadd.f32 %v1878, 1.0
    %v1880 = vrcp.pop %v1879
    %v1881 = vmul.f32 %v1879, %v1880
    %v1882 = vsub.f32 1.0, %v1881
    %v1883 = vmul.f32 %v1880, %v1882
    %v1884 = vadd.f32 %v1880, %v1883
    %vm1885 = vweird.f32 %v1879
    %vm1886 = vweird.f32 %v1880
    %vm1887 = vmor %vm1885, %vm1886
    %v1888 = vsel %vm1887, %v1880, %v1884
    %v1889 = vand.u32 2147483647, %v1879
    %vm1890 = vcmp.eq.f32.partialorder %v1889, 8.507059e+37
    %v1891 = vand.u32 %v1879, 2147483648
    %v1892 = vor.u32 1.1754944e-38, %v1891
    %v1893 = vsel %vm1890, %v1892, %v1888
    %v1894 = vmul.f32 1.0, %v1893
    %v1895 = vtanh.pop %v1832
    %1897 = vrot.lane.b32.xlu0 %v1875, 32
    %v1898 = vpop.permute.xlu0 %1897
    %v1900 = vmul.f32 %v1894, %v1898
    %1902 = vrot.lane.b32.xlu0 %v1895, 64
    %v1903 = vpop.permute.xlu0 %1902
    %v1905 = vmul.f32 %v1894, %v1903
    %1907 = vrot.lane.b32.xlu0 %v1905, 32
    %v1908 = vpop.permute.xlu0 %1907
    %v1910 = vadd.f32 %v1900, %v1908
    %v1911 = vtanh.pop %v1910
    %1913 = vrot.lane.b32.xlu0 %v1911, 64
    %v1914 = vpop.permute.xlu0 %1913
    %v1916 = vmul.f32 %v1894, %v1914
    %1918 = vrot.lane.b32.xlu0 %v1874, 32
    %v1919 = vpop.permute.xlu0 %1918
    %1921 = vst.msk [vmem:[#allocation2] sm:$0x3] %vm120, %v1919
    %1923 = vrot.lane.b32.xlu0 %v1916, 32
    %v1924 = vpop.permute.xlu0 %1923
    %1926 = vst.msk [vmem:[#allocation3] sm:$0x3] %vm120, %v1924
    %1928 = vrot.lane.b32.xlu0 %v1868, 96
    %v1929 = vpop.permute.xlu0 %1928
    %1931 = vst.msk [vmem:[#allocation4] sm:$0x3] %vm120, %v1929
    %1933 = vrot.lane.b32.xlu0 %v1910, 96
    %v1934 = vpop.permute.xlu0 %1933
    %1936 = vst.msk [vmem:[#allocation5] sm:$0x3] %vm120, %v1934
    %s1937 = scalar_lea.vmem %s7, 14
    %1938 = vst.msk [vmem:[%s1937] sm:$0x3] %vm120, %v1919
    %1939 = vst.msk [vmem:[%s8] sm:$0x3] %vm120, %v1924
    // Predicated region
    $region54: #{_lambda_.2} parent=1 // pred_check
      _
    $region55: #{_lambda_.2} parent=1 // pred_check_branch
      %1941 = sbr.rel (0) target = $region57
    $region56: #{_lambda_.2} parent=1 // pred_region
      _
    $region57: #{_lambda_.2} parent=1 // pred_fallthru
      _
    // Predicated region
    $region58: #{_lambda_.2} parent=1 // pred_check
      _
    $region59: #{_lambda_.2} parent=1 // pred_check_branch
      %1943 = sbr.rel (0) target = $region61
    $region60: #{_lambda_.2} parent=1 // pred_region
      _
    $region61: #{_lambda_.2} parent=1 // pred_fallthru
      _
    // Predicated region
    $region62: #{_lambda_.2} parent=1 // pred_check
      _
    $region63: #{_lambda_.2} parent=1 // pred_check_branch
      %1945 = sbr.rel (0) target = $region65
    $region64: #{_lambda_.2} parent=1 // pred_region
      _
    $region65: #{_lambda_.2} parent=1 // pred_fallthru
      _
    // Predicated region
    $region66: #{_lambda_.2} parent=1 // pred_check
      _
    $region67: #{_lambda_.2} parent=1 // pred_check_branch
      %1947 = sbr.rel (0) target = $region69
    $region68: #{_lambda_.2} parent=1 // pred_region
      _
    $region69: #{_lambda_.2} parent=1 // pred_fallthru
      _
    %1948 = vsyncpa [#allocation7], 1
    %1949 = vsyncpa [#allocation9], 1
    %1950 = vsyncpa [#allocation12], 1
    %1951 = vsyncpa [#allocation15], 1

</llo_original>
